<compile_context>
chip_gen: v5e
topology: v5e:2x2
jax: 0.10.0
libtpu: 0.0.40
codegen_flags: <defaults>
</compile_context>

<pallas_src>
import functools
import math

import jax
import jax.numpy as jnp
from jax.experimental import pallas as pl
from jax.experimental.pallas import tpu as pltpu


# ---------------------------------------------------------------------------
# In-kernel helpers
# ---------------------------------------------------------------------------
def _bn_lrelu(y, gamma, beta, eps=1e-5, slope=0.2):
    """Train-mode BatchNorm2d (biased batch stats, two-pass variance) + LeakyReLU(0.2).

    y: (N*H*W, C) f32 with channels on the 128-lane axis; gamma/beta: (1, C) f32.
    """
    mean = jnp.mean(y, axis=0, keepdims=True)
    d = y - mean
    var = jnp.mean(d * d, axis=0, keepdims=True)
    z = d * (jax.lax.rsqrt(var + eps) * gamma) + beta
    return jnp.where(z >= 0.0, z, slope * z)


# ---------------------------------------------------------------------------
# Fused discriminator kernel (whole batch resident in VMEM)
# ---------------------------------------------------------------------------
def _disc_kernel(p1_ref, w1_ref, b1_ref, g1_ref, be1_ref,
                 w2_ref, b2_ref, g2_ref, be2_ref,
                 fcw_ref, fcb_ref,
                 out_ref,
                 a1_ref, pad1_ref, p2_ref,
                 *, N, H1, W1, C1, H2, W2, C2):
    f32 = jnp.float32
    half = W1 // 2            # columns per parity class (4)
    Hp = H1 + 4               # zero-padded image height (12)
    P = H2 * W2               # spatial positions per sample after conv2 (16)

    # --- layer 1: 5x5/s2 conv as ONE im2col matmul (bf16 in, f32 acc) + BN + LReLU -------
    y1 = jnp.dot(p1_ref[...], w1_ref[...], preferred_element_type=f32) + b1_ref[...]
    a1_ref[...] = _bn_lrelu(y1, g1_ref[...], be1_ref[...])      # rows ordered (n, q, r, j)

    # --- scatter a1 into a zero-padded, column-parity-split buffer -----------------------
    # pad1[(n*2+q)*Hp + h, jj, :] == zero_pad2(a1_image)[n, h, 2*jj + q, :]
    pad1_ref[...] = jnp.zeros(pad1_ref.shape, pad1_ref.dtype)   # halo (interior overwritten)

    def scatter_body(s, carry):                                 # s = n*2 + q
        src0 = pl.multiple_of(s * H1 * half, 8)
        blk = a1_ref[pl.ds(src0, H1 * half), :].reshape(H1, half, C1)
        pad1_ref[pl.ds(s * Hp + 2, H1), 1:1 + half, :] = blk    # one block store per (n, q)
        return carry
    jax.lax.fori_loop(0, 2 * N, scatter_body, 0)

    # --- layer-2 im2col: ONE strided read + ONE (P, C1) bf16 tile store per (n, tap) -----
    def im2col_body(n, carry):
        dst0 = pl.multiple_of(n * P, P)                         # 16-row (packed bf16) aligned
        for kh in range(5):
            for kw in range(5):
                t, q, ow = kh * 5 + kw, kw % 2, kw // 2
                tap = pad1_ref[pl.ds((2 * n + q) * Hp + kh, H2, stride=2), ow:ow + W2, :]
                p2_ref[pl.ds(dst0, P), t * C1:(t + 1) * C1] = (
                    tap.reshape(P, C1).astype(p2_ref.dtype))
        return carry
    jax.lax.fori_loop(0, N, im2col_body, 0)

    # --- layer 2: ONE big-K matmul (K = 25*C1 = 3200), then BN + LReLU --------------------
    y2 = jnp.dot(p2_ref[...], w2_ref[...], preferred_element_type=f32) + b2_ref[...]
    a2 = _bn_lrelu(y2, g2_ref[...], be2_ref[...])               # (N*P, C2)

    # --- FC head, vectorized: lane reduce over channels + sublane reduce over positions ---
    prod = a2.reshape(N, P, C2) * fcw_ref[...][None, :, :]
    s1 = jnp.sum(prod, axis=2)                                  # (N, P)
    out_ref[...] = jnp.sum(s1, axis=1, keepdims=True) + fcb_ref[...]


# ---------------------------------------------------------------------------
# Wrapper-side glue (one-time, tiny): layer-1 im2col of the raw image
# ---------------------------------------------------------------------------
def _build_patches1(x_nhwc, k_pad):
    """im2col for conv1 (5x5, s=2, p=2); rows ordered (n, q=c%2, r, j=c//2); K zero-padded."""
    N, Hin, Win, Cin = x_nhwc.shape
    Ho, Wo = Hin // 2, Win // 2
    xp = jnp.pad(x_nhwc, ((0, 0), (2, 2), (2, 2), (0, 0)))
    taps = [xp[:, kh:kh + Hin:2, kw:kw + Win:2, :]
            for kh in range(5) for kw in range(5)]              # each (N, Ho, Wo, Cin)
    p = jnp.stack(taps, axis=3)                                 # (N, Ho, Wo, 25, Cin)
    p = p.reshape(N, Ho, Wo // 2, 2, 25, Cin)                   # c -> (j, q)
    p = jnp.transpose(p, (0, 3, 1, 2, 4, 5))                    # (n, q, r, j, tap, ci)
    p = p.reshape(N * Ho * Wo, 25 * Cin)
    p = jnp.pad(p, ((0, 0), (0, k_pad - 25 * Cin)))             # K: 75 -> 128
    return p.astype(jnp.bfloat16)


def discriminator_forward(x_nchw, params):
    """x_nchw: (N, 3, 16, 16) like the PyTorch module; returns (N,) logits."""
    N = x_nchw.shape[0]
    img = x_nchw.shape[2]
    H1 = W1 = img // 2                       # 8
    H2 = W2 = img // 4                       # 4
    C1 = params["g1"].shape[-1]              # 128
    C2 = params["g2"].shape[-1]              # 256
    k1_pad = params["w1"].shape[0]           # 128 (padded K of conv1)

    x = jnp.transpose(x_nchw, (0, 2, 3, 1)).astype(jnp.float32)    # NCHW -> NHWC
    p1 = _build_patches1(x, k1_pad)                                # (N*H1*W1, 128) bf16

    kern = functools.partial(_disc_kernel, N=N, H1=H1, W1=W1, C1=C1,
                             H2=H2, W2=W2, C2=C2)
    out = pl.pallas_call(
        kern,
        out_shape=jax.ShapeDtypeStruct((N, 1), jnp.float32),
        scratch_shapes=[
            pltpu.VMEM((N * H1 * W1, C1), jnp.float32),                     # a1 (post BN/LReLU)
            pltpu.VMEM((N * 2 * (H1 + 4), W1 // 2 + 2, C1), jnp.float32),   # padded/split a1
            pltpu.VMEM((N * H2 * W2, 25 * C1), jnp.bfloat16),               # layer-2 im2col
        ],
        # Whole batch in one program so BN sees exact full-batch statistics.  Scratch is
        # ~0.4 MiB/sample + ~1.7 MiB of weights; 32 MiB is safe on v5e/v6e/v7x for the demo
        # batch sizes.  Larger batches should move to a batch grid + two-phase BN instead
        # of raising this limit (v7x only has 64 MiB of VMEM).
        compiler_params=pltpu.CompilerParams(vmem_limit_bytes=32 * 1024 * 1024),
    )(p1, params["w1"], params["b1"], params["g1"], params["be1"],
      params["w2"], params["b2"], params["g2"], params["be2"],
      params["fcw"], params["fcb"])
    return out[:, 0]                                               # squeeze(-1) -> (N,)


# ---------------------------------------------------------------------------
# Parameter init (matches the PyTorch __init__ distributions; kernel-friendly layout)
# ---------------------------------------------------------------------------
def init_params(key, img_size=16, input_nc=3, ndf=128):
    K = int(math.log2(float(img_size))) - 2
    assert K == 2, "fused kernel is specialized to img_size=16 (two conv blocks)"
    k1, k2, k3 = jax.random.split(key, 3)
    C0, C1, C2 = input_nc, ndf, ndf * 2
    H2 = W2 = img_size // 4

    def conv_init(k, cin, cout, k_pad=None):
        # PyTorch Conv2d weight (Cout, Cin, 5, 5) ~ N(0, 0.02); bias = 0.
        w_pt = 0.02 * jax.random.normal(k, (cout, cin, 5, 5), dtype=jnp.float32)
        # -> (kh, kw, ci, co) -> (25*ci, co) rows matching the im2col column order.
        w = jnp.transpose(w_pt, (2, 3, 1, 0)).reshape(25 * cin, cout)
        if k_pad is not None:
            w = jnp.pad(w, ((0, k_pad - 25 * cin), (0, 0)))       # K: 75 -> 128 (zeros)
        return w.astype(jnp.bfloat16)

    w1 = conv_init(k1, C0, C1, k_pad=128)
    w2 = conv_init(k2, C1, C2)

    feat = C2 * H2 * W2
    # PyTorch Linear weight (1, F) ~ N(0, 0.01); F ordered NCHW (co, r, c).
    fc_pt = 0.01 * jax.random.normal(k3, (1, feat), dtype=jnp.float32)
    # Permute once to the kernel's (r*W2 + c, co) layout -> no runtime transpose.
    fcw = jnp.transpose(fc_pt.reshape(C2, H2, W2), (1, 2, 0)).reshape(H2 * W2, C2)

    return dict(
        w1=w1, b1=jnp.zeros((1, C1), jnp.float32),
        g1=jnp.ones((1, C1), jnp.float32), be1=jnp.zeros((1, C1), jnp.float32),
        w2=w2, b2=jnp.zeros((1, C2), jnp.float32),
        g2=jnp.ones((1, C2), jnp.float32), be2=jnp.zeros((1, C2), jnp.float32),
        fcw=fcw, fcb=jnp.zeros((1, 1), jnp.float32),
    )


# ---------------------------------------------------------------------------
# Pure-JAX reference (same bf16 rounding of matmul inputs as the kernel) for a self-check
# ---------------------------------------------------------------------------
def _reference_forward(x_nchw, params):
    x = jnp.transpose(x_nchw, (0, 2, 3, 1)).astype(jnp.float32)

    def conv5s2(inp, w_flat, b):
        n, h, w, cin = inp.shape
        cout = w_flat.shape[1]
        xp = jnp.pad(inp, ((0, 0), (2, 2), (2, 2), (0, 0)))
        cols = jnp.stack([xp[:, kh:kh + h:2, kw:kw + w:2, :]
                          for kh in range(5) for kw in range(5)], axis=3)
        cols = cols.reshape(n * (h // 2) * (w // 2), 25 * cin)
        cols = cols.astype(jnp.bfloat16).astype(jnp.float32)
        y = cols @ w_flat[:25 * cin].astype(jnp.float32) + b
        return y.reshape(n, h // 2, w // 2, cout)

    def bn_lrelu(y, g, be, eps=1e-5):
        m = jnp.mean(y, axis=(0, 1, 2), keepdims=True)
        v = jnp.mean((y - m) ** 2, axis=(0, 1, 2), keepdims=True)
        z = (y - m) / jnp.sqrt(v + eps) * g.reshape(1, 1, 1, -1) + be.reshape(1, 1, 1, -1)
        return jnp.where(z >= 0.0, z, 0.2 * z)

    a1 = bn_lrelu(conv5s2(x, params["w1"], params["b1"]), params["g1"], params["be1"])
    a1 = a1.astype(jnp.bfloat16).astype(jnp.float32)
    a2 = bn_lrelu(conv5s2(a1, params["w2"], params["b2"]), params["g2"], params["be2"])
    h2, w2, c2 = a2.shape[1:]
    fcw = params["fcw"].reshape(h2, w2, c2)
    return jnp.einsum("nhwc,hwc->n", a2, fcw) + params["fcb"][0, 0]


if __name__ == "__main__":
    key = jax.random.PRNGKey(0)
    img_size, batch = 16, 2

    params = init_params(key, img_size=img_size)
    x = jax.random.normal(jax.random.fold_in(key, 999),
                          (batch, 3, img_size, img_size), dtype=jnp.float32)

    fwd = jax.jit(discriminator_forward)
    out = jax.block_until_ready(fwd(x, params))
    assert out.shape == (batch,) and out.dtype == jnp.float32

    ref = jax.block_until_ready(_reference_forward(x, params))
    assert jnp.allclose(out, ref, atol=1e-2, rtol=1e-2), (out, ref)
    print("KERNEL_OK")
</pallas_src>

<mosaic_0001>
module attributes {stable_mosaic.version = 11 : i64} {
  func.func @_disc_kernel(%arg0: memref<128x128xbf16, #tpu.memory_space<vmem>>, %arg1: memref<128x128xbf16, #tpu.memory_space<vmem>>, %arg2: memref<1x128xf32, #tpu.memory_space<vmem>>, %arg3: memref<1x128xf32, #tpu.memory_space<vmem>>, %arg4: memref<1x128xf32, #tpu.memory_space<vmem>>, %arg5: memref<3200x256xbf16, #tpu.memory_space<vmem>>, %arg6: memref<1x256xf32, #tpu.memory_space<vmem>>, %arg7: memref<1x256xf32, #tpu.memory_space<vmem>>, %arg8: memref<1x256xf32, #tpu.memory_space<vmem>>, %arg9: memref<16x256xf32, #tpu.memory_space<vmem>>, %arg10: memref<1x1xf32, #tpu.memory_space<vmem>>, %arg11: memref<2x1xf32, #tpu.memory_space<vmem>>, %arg12: memref<128x128xf32, #tpu.memory_space<vmem>>, %arg13: memref<48x6x128xf32, #tpu.memory_space<vmem>>, %arg14: memref<32x3200xbf16, #tpu.memory_space<vmem>>) attributes {dimension_semantics = [], scalar_prefetch = 0 : i64, scratch_operands = 3 : i64, tpu.core_type = #tpu.core_type<tc>} {
    %c0 = arith.constant 0 : index
    %c0_0 = arith.constant 0 : index
    %0 = vector.load %arg0[%c0, %c0_0] : memref<128x128xbf16, #tpu.memory_space<vmem>>, vector<128x128xbf16>
    %c0_1 = arith.constant 0 : index
    %c0_2 = arith.constant 0 : index
    %1 = vector.load %arg1[%c0_1, %c0_2] : memref<128x128xbf16, #tpu.memory_space<vmem>>, vector<128x128xbf16>
    %cst = arith.constant dense<0.000000e+00> : vector<128x128xf32>
    %2 = tpu.matmul %0, %1, %cst {dimension_numbers = #tpu.dot_dimension_numbers<[1], [0], [0], [1], [0, 0, 1, 1], [], []>} : vector<128x128xbf16>, vector<128x128xbf16>, vector<128x128xf32> -> vector<128x128xf32>
    %c0_3 = arith.constant 0 : index
    %c0_4 = arith.constant 0 : index
    %3 = vector.load %arg2[%c0_3, %c0_4] : memref<1x128xf32, #tpu.memory_space<vmem>>, vector<1x128xf32>
    %4 = vector.broadcast %3 : vector<1x128xf32> to vector<128x128xf32>
    %5 = arith.addf %2, %4 : vector<128x128xf32>
    %c0_5 = arith.constant 0 : index
    %c0_6 = arith.constant 0 : index
    %6 = vector.load %arg3[%c0_5, %c0_6] : memref<1x128xf32, #tpu.memory_space<vmem>>, vector<1x128xf32>
    %c0_7 = arith.constant 0 : index
    %c0_8 = arith.constant 0 : index
    %7 = vector.load %arg4[%c0_7, %c0_8] : memref<1x128xf32, #tpu.memory_space<vmem>>, vector<1x128xf32>
    %cst_9 = arith.constant dense<0.000000e+00> : vector<128xf32>
    %8 = vector.multi_reduction <add>, %5, %cst_9 [0] : vector<128x128xf32> to vector<128xf32>
    %9 = vector.shape_cast %8 : vector<128xf32> to vector<1x128xf32>
    %cst_10 = arith.constant 1.280000e+02 : f32
    %10 = vector.broadcast %cst_10 : f32 to vector<1x128xf32>
    %11 = arith.divf %9, %10 : vector<1x128xf32>
    %12 = vector.broadcast %11 : vector<1x128xf32> to vector<128x128xf32>
    %13 = arith.subf %5, %12 : vector<128x128xf32>
    %14 = arith.mulf %13, %13 : vector<128x128xf32>
    %cst_11 = arith.constant dense<0.000000e+00> : vector<128xf32>
    %15 = vector.multi_reduction <add>, %14, %cst_11 [0] : vector<128x128xf32> to vector<128xf32>
    %16 = vector.shape_cast %15 : vector<128xf32> to vector<1x128xf32>
    %cst_12 = arith.constant 1.280000e+02 : f32
    %17 = vector.broadcast %cst_12 : f32 to vector<1x128xf32>
    %18 = arith.divf %16, %17 : vector<1x128xf32>
    %cst_13 = arith.constant 9.99999974E-6 : f32
    %19 = vector.broadcast %cst_13 : f32 to vector<1x128xf32>
    %20 = arith.addf %18, %19 : vector<1x128xf32>
    %21 = math.rsqrt %20 : vector<1x128xf32>
    %22 = arith.mulf %21, %6 : vector<1x128xf32>
    %23 = vector.broadcast %22 : vector<1x128xf32> to vector<128x128xf32>
    %24 = arith.mulf %13, %23 : vector<128x128xf32>
    %25 = vector.broadcast %7 : vector<1x128xf32> to vector<128x128xf32>
    %26 = arith.addf %24, %25 : vector<128x128xf32>
    %cst_14 = arith.constant 0.000000e+00 : f32
    %27 = vector.broadcast %cst_14 : f32 to vector<128x128xf32>
    %28 = arith.cmpf oge, %26, %27 : vector<128x128xf32>
    %cst_15 = arith.constant 2.000000e-01 : f32
    %29 = vector.broadcast %cst_15 : f32 to vector<128x128xf32>
    %30 = arith.mulf %29, %26 : vector<128x128xf32>
    %31 = arith.select %28, %26, %30 : vector<128x128xi1>, vector<128x128xf32>
    %c0_16 = arith.constant 0 : index
    %c0_17 = arith.constant 0 : index
    %32 = vector.load %arg12[%c0_16, %c0_17] : memref<128x128xf32, #tpu.memory_space<vmem>>, vector<128x128xf32>
    tpu.vector_store %arg12[%c0_16, %c0_17], %31 {strides = array<i32>} : memref<128x128xf32, #tpu.memory_space<vmem>>, vector<128x128xf32>,
    %cst_18 = arith.constant 0.000000e+00 : f32
    %33 = vector.broadcast %cst_18 : f32 to vector<48x6x128xf32>
    %c0_19 = arith.constant 0 : index
    %c0_20 = arith.constant 0 : index
    %c0_21 = arith.constant 0 : index
    %34 = vector.load %arg13[%c0_19, %c0_20, %c0_21] : memref<48x6x128xf32, #tpu.memory_space<vmem>>, vector<48x6x128xf32>
    tpu.vector_store %arg13[%c0_19, %c0_20, %c0_21], %33 {strides = array<i32>} : memref<48x6x128xf32, #tpu.memory_space<vmem>>, vector<48x6x128xf32>,
    %c0_i32 = arith.constant 0 : i32
    %c4_i32 = arith.constant 4 : i32
    %35 = arith.addi %c0_i32, %c4_i32 : i32
    %c1_i32 = arith.constant 1 : i32
    scf.for %arg15 = %c0_i32 to %35 step %c1_i32  : i32 {
      %c8_i32 = arith.constant 8 : i32
      %81 = arith.muli %arg15, %c8_i32 : i32
      %c4_i32_52 = arith.constant 4 : i32
      %82 = arith.muli %81, %c4_i32_52 : i32
      %83 = tpu.assume_multiple %82, 8 : i32
      %84 = arith.index_cast %83 : i32 to index
      %c0_53 = arith.constant 0 : index
      %85 = vector.load %arg12[%84, %c0_53] : memref<128x128xf32, #tpu.memory_space<vmem>>, vector<32x128xf32>
      %86 = vector.shape_cast %85 : vector<32x128xf32> to vector<8x4x128xf32>
      %c12_i32 = arith.constant 12 : i32
      %87 = arith.muli %arg15, %c12_i32 : i32
      %c2_i32_54 = arith.constant 2 : i32
      %88 = arith.addi %87, %c2_i32_54 : i32
      %89 = arith.index_cast %88 : i32 to index
      %c1 = arith.constant 1 : index
      %c0_55 = arith.constant 0 : index
      %90 = vector.load %arg13[%89, %c1, %c0_55] : memref<48x6x128xf32, #tpu.memory_space<vmem>>, vector<8x4x128xf32>
      tpu.vector_store %arg13[%89, %c1, %c0_55], %86 {strides = array<i32>} : memref<48x6x128xf32, #tpu.memory_space<vmem>>, vector<8x4x128xf32>,
    }
    %c4_i32_22 = arith.constant 4 : i32
    %c0_i32_23 = arith.constant 0 : i32
    %c2_i32 = arith.constant 2 : i32
    %36 = arith.addi %c0_i32_23, %c2_i32 : i32
    %c1_i32_24 = arith.constant 1 : i32
    scf.for %arg15 = %c0_i32_23 to %36 step %c1_i32_24  : i32 {
      %c16_i32 = arith.constant 16 : i32
      %81 = arith.muli %arg15, %c16_i32 : i32
      %82 = tpu.assume_multiple %81, 16 : i32
      %c2_i32_52 = arith.constant 2 : i32
      %83 = arith.muli %c2_i32_52, %arg15 : i32
      %c0_i32_53 = arith.constant 0 : i32
      %84 = arith.addi %83, %c0_i32_53 : i32
      %c12_i32 = arith.constant 12 : i32
      %85 = arith.muli %84, %c12_i32 : i32
      %c0_i32_54 = arith.constant 0 : i32
      %86 = arith.addi %85, %c0_i32_54 : i32
      %87 = arith.index_cast %86 : i32 to index
      %c0_55 = arith.constant 0 : index
      %c0_56 = arith.constant 0 : index
      %88 = tpu.strided_load %arg13[%87, %c0_55, %c0_56] {strides = array<i32: 2, 1, 1>} : memref<48x6x128xf32, #tpu.memory_space<vmem>>, vector<4x4x128xf32>
      %89 = vector.shape_cast %88 : vector<4x4x128xf32> to vector<16x128xf32>
      %90 = arith.truncf %89 : vector<16x128xf32> to vector<16x128xbf16>
      %91 = arith.index_cast %82 : i32 to index
      %c0_57 = arith.constant 0 : index
      %92 = vector.load %arg14[%91, %c0_57] : memref<32x3200xbf16, #tpu.memory_space<vmem>>, vector<16x128xbf16>
      tpu.vector_store %arg14[%91, %c0_57], %90 {strides = array<i32>} : memref<32x3200xbf16, #tpu.memory_space<vmem>>, vector<16x128xbf16>,
      %c2_i32_58 = arith.constant 2 : i32
      %93 = arith.muli %c2_i32_58, %arg15 : i32
      %c1_i32_59 = arith.constant 1 : i32
      %94 = arith.addi %93, %c1_i32_59 : i32
      %c12_i32_60 = arith.constant 12 : i32
      %95 = arith.muli %94, %c12_i32_60 : i32
      %c0_i32_61 = arith.constant 0 : i32
      %96 = arith.addi %95, %c0_i32_61 : i32
      %97 = arith.index_cast %96 : i32 to index
      %c0_62 = arith.constant 0 : index
      %c0_63 = arith.constant 0 : index
      %98 = tpu.strided_load %arg13[%97, %c0_62, %c0_63] {strides = array<i32: 2, 1, 1>} : memref<48x6x128xf32, #tpu.memory_space<vmem>>, vector<4x4x128xf32>
      %99 = vector.shape_cast %98 : vector<4x4x128xf32> to vector<16x128xf32>
      %100 = arith.truncf %99 : vector<16x128xf32> to vector<16x128xbf16>
      %101 = arith.index_cast %82 : i32 to index
      %c128 = arith.constant 128 : index
      %102 = vector.load %arg14[%101, %c128] : memref<32x3200xbf16, #tpu.memory_space<vmem>>, vector<16x128xbf16>
      tpu.vector_store %arg14[%101, %c128], %100 {strides = array<i32>} : memref<32x3200xbf16, #tpu.memory_space<vmem>>, vector<16x128xbf16>,
      %c2_i32_64 = arith.constant 2 : i32
      %103 = arith.muli %c2_i32_64, %arg15 : i32
      %c0_i32_65 = arith.constant 0 : i32
      %104 = arith.addi %103, %c0_i32_65 : i32
      %c12_i32_66 = arith.constant 12 : i32
      %105 = arith.muli %104, %c12_i32_66 : i32
      %c0_i32_67 = arith.constant 0 : i32
      %106 = arith.addi %105, %c0_i32_67 : i32
      %107 = arith.index_cast %106 : i32 to index
      %c1 = arith.constant 1 : index
      %c0_68 = arith.constant 0 : index
      %108 = tpu.strided_load %arg13[%107, %c1, %c0_68] {strides = array<i32: 2, 1, 1>} : memref<48x6x128xf32, #tpu.memory_space<vmem>>, vector<4x4x128xf32>
      %109 = vector.shape_cast %108 : vector<4x4x128xf32> to vector<16x128xf32>
      %110 = arith.truncf %109 : vector<16x128xf32> to vector<16x128xbf16>
      %111 = arith.index_cast %82 : i32 to index
      %c256 = arith.constant 256 : index
      %112 = vector.load %arg14[%111, %c256] : memref<32x3200xbf16, #tpu.memory_space<vmem>>, vector<16x128xbf16>
      tpu.vector_store %arg14[%111, %c256], %110 {strides = array<i32>} : memref<32x3200xbf16, #tpu.memory_space<vmem>>, vector<16x128xbf16>,
      %c2_i32_69 = arith.constant 2 : i32
      %113 = arith.muli %c2_i32_69, %arg15 : i32
      %c1_i32_70 = arith.constant 1 : i32
      %114 = arith.addi %113, %c1_i32_70 : i32
      %c12_i32_71 = arith.constant 12 : i32
      %115 = arith.muli %114, %c12_i32_71 : i32
      %c0_i32_72 = arith.constant 0 : i32
      %116 = arith.addi %115, %c0_i32_72 : i32
      %117 = arith.index_cast %116 : i32 to index
      %c1_73 = arith.constant 1 : index
      %c0_74 = arith.constant 0 : index
      %118 = tpu.strided_load %arg13[%117, %c1_73, %c0_74] {strides = array<i32: 2, 1, 1>} : memref<48x6x128xf32, #tpu.memory_space<vmem>>, vector<4x4x128xf32>
      %119 = vector.shape_cast %118 : vector<4x4x128xf32> to vector<16x128xf32>
      %120 = arith.truncf %119 : vector<16x128xf32> to vector<16x128xbf16>
      %121 = arith.index_cast %82 : i32 to index
      %c384 = arith.constant 384 : index
      %122 = vector.load %arg14[%121, %c384] : memref<32x3200xbf16, #tpu.memory_space<vmem>>, vector<16x128xbf16>
      tpu.vector_store %arg14[%121, %c384], %120 {strides = array<i32>} : memref<32x3200xbf16, #tpu.memory_space<vmem>>, vector<16x128xbf16>,
      %c2_i32_75 = arith.constant 2 : i32
      %123 = arith.muli %c2_i32_75, %arg15 : i32
      %c0_i32_76 = arith.constant 0 : i32
      %124 = arith.addi %123, %c0_i32_76 : i32
      %c12_i32_77 = arith.constant 12 : i32
      %125 = arith.muli %124, %c12_i32_77 : i32
      %c0_i32_78 = arith.constant 0 : i32
      %126 = arith.addi %125, %c0_i32_78 : i32
      %127 = arith.index_cast %126 : i32 to index
      %c2 = arith.constant 2 : index
      %c0_79 = arith.constant 0 : index
      %128 = tpu.strided_load %arg13[%127, %c2, %c0_79] {strides = array<i32: 2, 1, 1>} : memref<48x6x128xf32, #tpu.memory_space<vmem>>, vector<4x4x128xf32>
      %129 = vector.shape_cast %128 : vector<4x4x128xf32> to vector<16x128xf32>
      %130 = arith.truncf %129 : vector<16x128xf32> to vector<16x128xbf16>
      %131 = arith.index_cast %82 : i32 to index
      %c512 = arith.constant 512 : index
      %132 = vector.load %arg14[%131, %c512] : memref<32x3200xbf16, #tpu.memory_space<vmem>>, vector<16x128xbf16>
      tpu.vector_store %arg14[%131, %c512], %130 {strides = array<i32>} : memref<32x3200xbf16, #tpu.memory_space<vmem>>, vector<16x128xbf16>,
      %c2_i32_80 = arith.constant 2 : i32
      %133 = arith.muli %c2_i32_80, %arg15 : i32
      %c0_i32_81 = arith.constant 0 : i32
      %134 = arith.addi %133, %c0_i32_81 : i32
      %c12_i32_82 = arith.constant 12 : i32
      %135 = arith.muli %134, %c12_i32_82 : i32
      %c1_i32_83 = arith.constant 1 : i32
      %136 = arith.addi %135, %c1_i32_83 : i32
      %137 = arith.index_cast %136 : i32 to index
      %c0_84 = arith.constant 0 : index
      %c0_85 = arith.constant 0 : index
      %138 = tpu.strided_load %arg13[%137, %c0_84, %c0_85] {strides = array<i32: 2, 1, 1>} : memref<48x6x128xf32, #tpu.memory_space<vmem>>, vector<4x4x128xf32>
      %139 = vector.shape_cast %138 : vector<4x4x128xf32> to vector<16x128xf32>
      %140 = arith.truncf %139 : vector<16x128xf32> to vector<16x128xbf16>
      %141 = arith.index_cast %82 : i32 to index
      %c640 = arith.constant 640 : index
      %142 = vector.load %arg14[%141, %c640] : memref<32x3200xbf16, #tpu.memory_space<vmem>>, vector<16x128xbf16>
      tpu.vector_store %arg14[%141, %c640], %140 {strides = array<i32>} : memref<32x3200xbf16, #tpu.memory_space<vmem>>, vector<16x128xbf16>,
      %c2_i32_86 = arith.constant 2 : i32
      %143 = arith.muli %c2_i32_86, %arg15 : i32
      %c1_i32_87 = arith.constant 1 : i32
      %144 = arith.addi %143, %c1_i32_87 : i32
      %c12_i32_88 = arith.constant 12 : i32
      %145 = arith.muli %144, %c12_i32_88 : i32
      %c1_i32_89 = arith.constant 1 : i32
      %146 = arith.addi %145, %c1_i32_89 : i32
      %147 = arith.index_cast %146 : i32 to index
      %c0_90 = arith.constant 0 : index
      %c0_91 = arith.constant 0 : index
      %148 = tpu.strided_load %arg13[%147, %c0_90, %c0_91] {strides = array<i32: 2, 1, 1>} : memref<48x6x128xf32, #tpu.memory_space<vmem>>, vector<4x4x128xf32>
      %149 = vector.shape_cast %148 : vector<4x4x128xf32> to vector<16x128xf32>
      %150 = arith.truncf %149 : vector<16x128xf32> to vector<16x128xbf16>
      %151 = arith.index_cast %82 : i32 to index
      %c768 = arith.constant 768 : index
      %152 = vector.load %arg14[%151, %c768] : memref<32x3200xbf16, #tpu.memory_space<vmem>>, vector<16x128xbf16>
      tpu.vector_store %arg14[%151, %c768], %150 {strides = array<i32>} : memref<32x3200xbf16, #tpu.memory_space<vmem>>, vector<16x128xbf16>,
      %c2_i32_92 = arith.constant 2 : i32
      %153 = arith.muli %c2_i32_92, %arg15 : i32
      %c0_i32_93 = arith.constant 0 : i32
      %154 = arith.addi %153, %c0_i32_93 : i32
      %c12_i32_94 = arith.constant 12 : i32
      %155 = arith.muli %154, %c12_i32_94 : i32
      %c1_i32_95 = arith.constant 1 : i32
      %156 = arith.addi %155, %c1_i32_95 : i32
      %157 = arith.index_cast %156 : i32 to index
      %c1_96 = arith.constant 1 : index
      %c0_97 = arith.constant 0 : index
      %158 = tpu.strided_load %arg13[%157, %c1_96, %c0_97] {strides = array<i32: 2, 1, 1>} : memref<48x6x128xf32, #tpu.memory_space<vmem>>, vector<4x4x128xf32>
      %159 = vector.shape_cast %158 : vector<4x4x128xf32> to vector<16x128xf32>
      %160 = arith.truncf %159 : vector<16x128xf32> to vector<16x128xbf16>
      %161 = arith.index_cast %82 : i32 to index
      %c896 = arith.constant 896 : index
      %162 = vector.load %arg14[%161, %c896] : memref<32x3200xbf16, #tpu.memory_space<vmem>>, vector<16x128xbf16>
      tpu.vector_store %arg14[%161, %c896], %160 {strides = array<i32>} : memref<32x3200xbf16, #tpu.memory_space<vmem>>, vector<16x128xbf16>,
      %c2_i32_98 = arith.constant 2 : i32
      %163 = arith.muli %c2_i32_98, %arg15 : i32
      %c1_i32_99 = arith.constant 1 : i32
      %164 = arith.addi %163, %c1_i32_99 : i32
      %c12_i32_100 = arith.constant 12 : i32
      %165 = arith.muli %164, %c12_i32_100 : i32
      %c1_i32_101 = arith.constant 1 : i32
      %166 = arith.addi %165, %c1_i32_101 : i32
      %167 = arith.index_cast %166 : i32 to index
      %c1_102 = arith.constant 1 : index
      %c0_103 = arith.constant 0 : index
      %168 = tpu.strided_load %arg13[%167, %c1_102, %c0_103] {strides = array<i32: 2, 1, 1>} : memref<48x6x128xf32, #tpu.memory_space<vmem>>, vector<4x4x128xf32>
      %169 = vector.shape_cast %168 : vector<4x4x128xf32> to vector<16x128xf32>
      %170 = arith.truncf %169 : vector<16x128xf32> to vector<16x128xbf16>
      %171 = arith.index_cast %82 : i32 to index
      %c1024 = arith.constant 1024 : index
      %172 = vector.load %arg14[%171, %c1024] : memref<32x3200xbf16, #tpu.memory_space<vmem>>, vector<16x128xbf16>
      tpu.vector_store %arg14[%171, %c1024], %170 {strides = array<i32>} : memref<32x3200xbf16, #tpu.memory_space<vmem>>, vector<16x128xbf16>,
      %c2_i32_104 = arith.constant 2 : i32
      %173 = arith.muli %c2_i32_104, %arg15 : i32
      %c0_i32_105 = arith.constant 0 : i32
      %174 = arith.addi %173, %c0_i32_105 : i32
      %c12_i32_106 = arith.constant 12 : i32
      %175 = arith.muli %174, %c12_i32_106 : i32
      %c1_i32_107 = arith.constant 1 : i32
      %176 = arith.addi %175, %c1_i32_107 : i32
      %177 = arith.index_cast %176 : i32 to index
      %c2_108 = arith.constant 2 : index
      %c0_109 = arith.constant 0 : index
      %178 = tpu.strided_load %arg13[%177, %c2_108, %c0_109] {strides = array<i32: 2, 1, 1>} : memref<48x6x128xf32, #tpu.memory_space<vmem>>, vector<4x4x128xf32>
      %179 = vector.shape_cast %178 : vector<4x4x128xf32> to vector<16x128xf32>
      %180 = arith.truncf %179 : vector<16x128xf32> to vector<16x128xbf16>
      %181 = arith.index_cast %82 : i32 to index
      %c1152 = arith.constant 1152 : index
      %182 = vector.load %arg14[%181, %c1152] : memref<32x3200xbf16, #tpu.memory_space<vmem>>, vector<16x128xbf16>
      tpu.vector_store %arg14[%181, %c1152], %180 {strides = array<i32>} : memref<32x3200xbf16, #tpu.memory_space<vmem>>, vector<16x128xbf16>,
      %c2_i32_110 = arith.constant 2 : i32
      %183 = arith.muli %c2_i32_110, %arg15 : i32
      %c0_i32_111 = arith.constant 0 : i32
      %184 = arith.addi %183, %c0_i32_111 : i32
      %c12_i32_112 = arith.constant 12 : i32
      %185 = arith.muli %184, %c12_i32_112 : i32
      %c2_i32_113 = arith.constant 2 : i32
      %186 = arith.addi %185, %c2_i32_113 : i32
      %187 = arith.index_cast %186 : i32 to index
      %c0_114 = arith.constant 0 : index
      %c0_115 = arith.constant 0 : index
      %188 = tpu.strided_load %arg13[%187, %c0_114, %c0_115] {strides = array<i32: 2, 1, 1>} : memref<48x6x128xf32, #tpu.memory_space<vmem>>, vector<4x4x128xf32>
      %189 = vector.shape_cast %188 : vector<4x4x128xf32> to vector<16x128xf32>
      %190 = arith.truncf %189 : vector<16x128xf32> to vector<16x128xbf16>
      %191 = arith.index_cast %82 : i32 to index
      %c1280 = arith.constant 1280 : index
      %192 = vector.load %arg14[%191, %c1280] : memref<32x3200xbf16, #tpu.memory_space<vmem>>, vector<16x128xbf16>
      tpu.vector_store %arg14[%191, %c1280], %190 {strides = array<i32>} : memref<32x3200xbf16, #tpu.memory_space<vmem>>, vector<16x128xbf16>,
      %c2_i32_116 = arith.constant 2 : i32
      %193 = arith.muli %c2_i32_116, %arg15 : i32
      %c1_i32_117 = arith.constant 1 : i32
      %194 = arith.addi %193, %c1_i32_117 : i32
      %c12_i32_118 = arith.constant 12 : i32
      %195 = arith.muli %194, %c12_i32_118 : i32
      %c2_i32_119 = arith.constant 2 : i32
      %196 = arith.addi %195, %c2_i32_119 : i32
      %197 = arith.index_cast %196 : i32 to index
      %c0_120 = arith.constant 0 : index
      %c0_121 = arith.constant 0 : index
      %198 = tpu.strided_load %arg13[%197, %c0_120, %c0_121] {strides = array<i32: 2, 1, 1>} : memref<48x6x128xf32, #tpu.memory_space<vmem>>, vector<4x4x128xf32>
      %199 = vector.shape_cast %198 : vector<4x4x128xf32> to vector<16x128xf32>
      %200 = arith.truncf %199 : vector<16x128xf32> to vector<16x128xbf16>
      %201 = arith.index_cast %82 : i32 to index
      %c1408 = arith.constant 1408 : index
      %202 = vector.load %arg14[%201, %c1408] : memref<32x3200xbf16, #tpu.memory_space<vmem>>, vector<16x128xbf16>
      tpu.vector_store %arg14[%201, %c1408], %200 {strides = array<i32>} : memref<32x3200xbf16, #tpu.memory_space<vmem>>, vector<16x128xbf16>,
      %c2_i32_122 = arith.constant 2 : i32
      %203 = arith.muli %c2_i32_122, %arg15 : i32
      %c0_i32_123 = arith.constant 0 : i32
      %204 = arith.addi %203, %c0_i32_123 : i32
      %c12_i32_124 = arith.constant 12 : i32
      %205 = arith.muli %204, %c12_i32_124 : i32
      %c2_i32_125 = arith.constant 2 : i32
      %206 = arith.addi %205, %c2_i32_125 : i32
      %207 = arith.index_cast %206 : i32 to index
      %c1_126 = arith.constant 1 : index
      %c0_127 = arith.constant 0 : index
      %208 = tpu.strided_load %arg13[%207, %c1_126, %c0_127] {strides = array<i32: 2, 1, 1>} : memref<48x6x128xf32, #tpu.memory_space<vmem>>, vector<4x4x128xf32>
      %209 = vector.shape_cast %208 : vector<4x4x128xf32> to vector<16x128xf32>
      %210 = arith.truncf %209 : vector<16x128xf32> to vector<16x128xbf16>
      %211 = arith.index_cast %82 : i32 to index
      %c1536 = arith.constant 1536 : index
      %212 = vector.load %arg14[%211, %c1536] : memref<32x3200xbf16, #tpu.memory_space<vmem>>, vector<16x128xbf16>
      tpu.vector_store %arg14[%211, %c1536], %210 {strides = array<i32>} : memref<32x3200xbf16, #tpu.memory_space<vmem>>, vector<16x128xbf16>,
      %c2_i32_128 = arith.constant 2 : i32
      %213 = arith.muli %c2_i32_128, %arg15 : i32
      %c1_i32_129 = arith.constant 1 : i32
      %214 = arith.addi %213, %c1_i32_129 : i32
      %c12_i32_130 = arith.constant 12 : i32
      %215 = arith.muli %214, %c12_i32_130 : i32
      %c2_i32_131 = arith.constant 2 : i32
      %216 = arith.addi %215, %c2_i32_131 : i32
      %217 = arith.index_cast %216 : i32 to index
      %c1_132 = arith.constant 1 : index
      %c0_133 = arith.constant 0 : index
      %218 = tpu.strided_load %arg13[%217, %c1_132, %c0_133] {strides = array<i32: 2, 1, 1>} : memref<48x6x128xf32, #tpu.memory_space<vmem>>, vector<4x4x128xf32>
      %219 = vector.shape_cast %218 : vector<4x4x128xf32> to vector<16x128xf32>
      %220 = arith.truncf %219 : vector<16x128xf32> to vector<16x128xbf16>
      %221 = arith.index_cast %82 : i32 to index
      %c1664 = arith.constant 1664 : index
      %222 = vector.load %arg14[%221, %c1664] : memref<32x3200xbf16, #tpu.memory_space<vmem>>, vector<16x128xbf16>
      tpu.vector_store %arg14[%221, %c1664], %220 {strides = array<i32>} : memref<32x3200xbf16, #tpu.memory_space<vmem>>, vector<16x128xbf16>,
      %c2_i32_134 = arith.constant 2 : i32
      %223 = arith.muli %c2_i32_134, %arg15 : i32
      %c0_i32_135 = arith.constant 0 : i32
      %224 = arith.addi %223, %c0_i32_135 : i32
      %c12_i32_136 = arith.constant 12 : i32
      %225 = arith.muli %224, %c12_i32_136 : i32
      %c2_i32_137 = arith.constant 2 : i32
      %226 = arith.addi %225, %c2_i32_137 : i32
      %227 = arith.index_cast %226 : i32 to index
      %c2_138 = arith.constant 2 : index
      %c0_139 = arith.constant 0 : index
      %228 = tpu.strided_load %arg13[%227, %c2_138, %c0_139] {strides = array<i32: 2, 1, 1>} : memref<48x6x128xf32, #tpu.memory_space<vmem>>, vector<4x4x128xf32>
      %229 = vector.shape_cast %228 : vector<4x4x128xf32> to vector<16x128xf32>
      %230 = arith.truncf %229 : vector<16x128xf32> to vector<16x128xbf16>
      %231 = arith.index_cast %82 : i32 to index
      %c1792 = arith.constant 1792 : index
      %232 = vector.load %arg14[%231, %c1792] : memref<32x3200xbf16, #tpu.memory_space<vmem>>, vector<16x128xbf16>
      tpu.vector_store %arg14[%231, %c1792], %230 {strides = array<i32>} : memref<32x3200xbf16, #tpu.memory_space<vmem>>, vector<16x128xbf16>,
      %c2_i32_140 = arith.constant 2 : i32
      %233 = arith.muli %c2_i32_140, %arg15 : i32
      %c0_i32_141 = arith.constant 0 : i32
      %234 = arith.addi %233, %c0_i32_141 : i32
      %c12_i32_142 = arith.constant 12 : i32
      %235 = arith.muli %234, %c12_i32_142 : i32
      %c3_i32 = arith.constant 3 : i32
      %236 = arith.addi %235, %c3_i32 : i32
      %237 = arith.index_cast %236 : i32 to index
      %c0_143 = arith.constant 0 : index
      %c0_144 = arith.constant 0 : index
      %238 = tpu.strided_load %arg13[%237, %c0_143, %c0_144] {strides = array<i32: 2, 1, 1>} : memref<48x6x128xf32, #tpu.memory_space<vmem>>, vector<4x4x128xf32>
      %239 = vector.shape_cast %238 : vector<4x4x128xf32> to vector<16x128xf32>
      %240 = arith.truncf %239 : vector<16x128xf32> to vector<16x128xbf16>
      %241 = arith.index_cast %82 : i32 to index
      %c1920 = arith.constant 1920 : index
      %242 = vector.load %arg14[%241, %c1920] : memref<32x3200xbf16, #tpu.memory_space<vmem>>, vector<16x128xbf16>
      tpu.vector_store %arg14[%241, %c1920], %240 {strides = array<i32>} : memref<32x3200xbf16, #tpu.memory_space<vmem>>, vector<16x128xbf16>,
      %c2_i32_145 = arith.constant 2 : i32
      %243 = arith.muli %c2_i32_145, %arg15 : i32
      %c1_i32_146 = arith.constant 1 : i32
      %244 = arith.addi %243, %c1_i32_146 : i32
      %c12_i32_147 = arith.constant 12 : i32
      %245 = arith.muli %244, %c12_i32_147 : i32
      %c3_i32_148 = arith.constant 3 : i32
      %246 = arith.addi %245, %c3_i32_148 : i32
      %247 = arith.index_cast %246 : i32 to index
      %c0_149 = arith.constant 0 : index
      %c0_150 = arith.constant 0 : index
      %248 = tpu.strided_load %arg13[%247, %c0_149, %c0_150] {strides = array<i32: 2, 1, 1>} : memref<48x6x128xf32, #tpu.memory_space<vmem>>, vector<4x4x128xf32>
      %249 = vector.shape_cast %248 : vector<4x4x128xf32> to vector<16x128xf32>
      %250 = arith.truncf %249 : vector<16x128xf32> to vector<16x128xbf16>
      %251 = arith.index_cast %82 : i32 to index
      %c2048 = arith.constant 2048 : index
      %252 = vector.load %arg14[%251, %c2048] : memref<32x3200xbf16, #tpu.memory_space<vmem>>, vector<16x128xbf16>
      tpu.vector_store %arg14[%251, %c2048], %250 {strides = array<i32>} : memref<32x3200xbf16, #tpu.memory_space<vmem>>, vector<16x128xbf16>,
      %c2_i32_151 = arith.constant 2 : i32
      %253 = arith.muli %c2_i32_151, %arg15 : i32
      %c0_i32_152 = arith.constant 0 : i32
      %254 = arith.addi %253, %c0_i32_152 : i32
      %c12_i32_153 = arith.constant 12 : i32
      %255 = arith.muli %254, %c12_i32_153 : i32
      %c3_i32_154 = arith.constant 3 : i32
      %256 = arith.addi %255, %c3_i32_154 : i32
      %257 = arith.index_cast %256 : i32 to index
      %c1_155 = arith.constant 1 : index
      %c0_156 = arith.constant 0 : index
      %258 = tpu.strided_load %arg13[%257, %c1_155, %c0_156] {strides = array<i32: 2, 1, 1>} : memref<48x6x128xf32, #tpu.memory_space<vmem>>, vector<4x4x128xf32>
      %259 = vector.shape_cast %258 : vector<4x4x128xf32> to vector<16x128xf32>
      %260 = arith.truncf %259 : vector<16x128xf32> to vector<16x128xbf16>
      %261 = arith.index_cast %82 : i32 to index
      %c2176 = arith.constant 2176 : index
      %262 = vector.load %arg14[%261, %c2176] : memref<32x3200xbf16, #tpu.memory_space<vmem>>, vector<16x128xbf16>
      tpu.vector_store %arg14[%261, %c2176], %260 {strides = array<i32>} : memref<32x3200xbf16, #tpu.memory_space<vmem>>, vector<16x128xbf16>,
      %c2_i32_157 = arith.constant 2 : i32
      %263 = arith.muli %c2_i32_157, %arg15 : i32
      %c1_i32_158 = arith.constant 1 : i32
      %264 = arith.addi %263, %c1_i32_158 : i32
      %c12_i32_159 = arith.constant 12 : i32
      %265 = arith.muli %264, %c12_i32_159 : i32
      %c3_i32_160 = arith.constant 3 : i32
      %266 = arith.addi %265, %c3_i32_160 : i32
      %267 = arith.index_cast %266 : i32 to index
      %c1_161 = arith.constant 1 : index
      %c0_162 = arith.constant 0 : index
      %268 = tpu.strided_load %arg13[%267, %c1_161, %c0_162] {strides = array<i32: 2, 1, 1>} : memref<48x6x128xf32, #tpu.memory_space<vmem>>, vector<4x4x128xf32>
      %269 = vector.shape_cast %268 : vector<4x4x128xf32> to vector<16x128xf32>
      %270 = arith.truncf %269 : vector<16x128xf32> to vector<16x128xbf16>
      %271 = arith.index_cast %82 : i32 to index
      %c2304 = arith.constant 2304 : index
      %272 = vector.load %arg14[%271, %c2304] : memref<32x3200xbf16, #tpu.memory_space<vmem>>, vector<16x128xbf16>
      tpu.vector_store %arg14[%271, %c2304], %270 {strides = array<i32>} : memref<32x3200xbf16, #tpu.memory_space<vmem>>, vector<16x128xbf16>,
      %c2_i32_163 = arith.constant 2 : i32
      %273 = arith.muli %c2_i32_163, %arg15 : i32
      %c0_i32_164 = arith.constant 0 : i32
      %274 = arith.addi %273, %c0_i32_164 : i32
      %c12_i32_165 = arith.constant 12 : i32
      %275 = arith.muli %274, %c12_i32_165 : i32
      %c3_i32_166 = arith.constant 3 : i32
      %276 = arith.addi %275, %c3_i32_166 : i32
      %277 = arith.index_cast %276 : i32 to index
      %c2_167 = arith.constant 2 : index
      %c0_168 = arith.constant 0 : index
      %278 = tpu.strided_load %arg13[%277, %c2_167, %c0_168] {strides = array<i32: 2, 1, 1>} : memref<48x6x128xf32, #tpu.memory_space<vmem>>, vector<4x4x128xf32>
      %279 = vector.shape_cast %278 : vector<4x4x128xf32> to vector<16x128xf32>
      %280 = arith.truncf %279 : vector<16x128xf32> to vector<16x128xbf16>
      %281 = arith.index_cast %82 : i32 to index
      %c2432 = arith.constant 2432 : index
      %282 = vector.load %arg14[%281, %c2432] : memref<32x3200xbf16, #tpu.memory_space<vmem>>, vector<16x128xbf16>
      tpu.vector_store %arg14[%281, %c2432], %280 {strides = array<i32>} : memref<32x3200xbf16, #tpu.memory_space<vmem>>, vector<16x128xbf16>,
      %c2_i32_169 = arith.constant 2 : i32
      %283 = arith.muli %c2_i32_169, %arg15 : i32
      %c0_i32_170 = arith.constant 0 : i32
      %284 = arith.addi %283, %c0_i32_170 : i32
      %c12_i32_171 = arith.constant 12 : i32
      %285 = arith.muli %284, %c12_i32_171 : i32
      %c4_i32_172 = arith.constant 4 : i32
      %286 = arith.addi %285, %c4_i32_172 : i32
      %287 = arith.index_cast %286 : i32 to index
      %c0_173 = arith.constant 0 : index
      %c0_174 = arith.constant 0 : index
      %288 = tpu.strided_load %arg13[%287, %c0_173, %c0_174] {strides = array<i32: 2, 1, 1>} : memref<48x6x128xf32, #tpu.memory_space<vmem>>, vector<4x4x128xf32>
      %289 = vector.shape_cast %288 : vector<4x4x128xf32> to vector<16x128xf32>
      %290 = arith.truncf %289 : vector<16x128xf32> to vector<16x128xbf16>
      %291 = arith.index_cast %82 : i32 to index
      %c2560 = arith.constant 2560 : index
      %292 = vector.load %arg14[%291, %c2560] : memref<32x3200xbf16, #tpu.memory_space<vmem>>, vector<16x128xbf16>
      tpu.vector_store %arg14[%291, %c2560], %290 {strides = array<i32>} : memref<32x3200xbf16, #tpu.memory_space<vmem>>, vector<16x128xbf16>,
      %c2_i32_175 = arith.constant 2 : i32
      %293 = arith.muli %c2_i32_175, %arg15 : i32
      %c1_i32_176 = arith.constant 1 : i32
      %294 = arith.addi %293, %c1_i32_176 : i32
      %c12_i32_177 = arith.constant 12 : i32
      %295 = arith.muli %294, %c12_i32_177 : i32
      %c4_i32_178 = arith.constant 4 : i32
      %296 = arith.addi %295, %c4_i32_178 : i32
      %297 = arith.index_cast %296 : i32 to index
      %c0_179 = arith.constant 0 : index
      %c0_180 = arith.constant 0 : index
      %298 = tpu.strided_load %arg13[%297, %c0_179, %c0_180] {strides = array<i32: 2, 1, 1>} : memref<48x6x128xf32, #tpu.memory_space<vmem>>, vector<4x4x128xf32>
      %299 = vector.shape_cast %298 : vector<4x4x128xf32> to vector<16x128xf32>
      %300 = arith.truncf %299 : vector<16x128xf32> to vector<16x128xbf16>
      %301 = arith.index_cast %82 : i32 to index
      %c2688 = arith.constant 2688 : index
      %302 = vector.load %arg14[%301, %c2688] : memref<32x3200xbf16, #tpu.memory_space<vmem>>, vector<16x128xbf16>
      tpu.vector_store %arg14[%301, %c2688], %300 {strides = array<i32>} : memref<32x3200xbf16, #tpu.memory_space<vmem>>, vector<16x128xbf16>,
      %c2_i32_181 = arith.constant 2 : i32
      %303 = arith.muli %c2_i32_181, %arg15 : i32
      %c0_i32_182 = arith.constant 0 : i32
      %304 = arith.addi %303, %c0_i32_182 : i32
      %c12_i32_183 = arith.constant 12 : i32
      %305 = arith.muli %304, %c12_i32_183 : i32
      %c4_i32_184 = arith.constant 4 : i32
      %306 = arith.addi %305, %c4_i32_184 : i32
      %307 = arith.index_cast %306 : i32 to index
      %c1_185 = arith.constant 1 : index
      %c0_186 = arith.constant 0 : index
      %308 = tpu.strided_load %arg13[%307, %c1_185, %c0_186] {strides = array<i32: 2, 1, 1>} : memref<48x6x128xf32, #tpu.memory_space<vmem>>, vector<4x4x128xf32>
      %309 = vector.shape_cast %308 : vector<4x4x128xf32> to vector<16x128xf32>
      %310 = arith.truncf %309 : vector<16x128xf32> to vector<16x128xbf16>
      %311 = arith.index_cast %82 : i32 to index
      %c2816 = arith.constant 2816 : index
      %312 = vector.load %arg14[%311, %c2816] : memref<32x3200xbf16, #tpu.memory_space<vmem>>, vector<16x128xbf16>
      tpu.vector_store %arg14[%311, %c2816], %310 {strides = array<i32>} : memref<32x3200xbf16, #tpu.memory_space<vmem>>, vector<16x128xbf16>,
      %c2_i32_187 = arith.constant 2 : i32
      %313 = arith.muli %c2_i32_187, %arg15 : i32
      %c1_i32_188 = arith.constant 1 : i32
      %314 = arith.addi %313, %c1_i32_188 : i32
      %c12_i32_189 = arith.constant 12 : i32
      %315 = arith.muli %314, %c12_i32_189 : i32
      %c4_i32_190 = arith.constant 4 : i32
      %316 = arith.addi %315, %c4_i32_190 : i32
      %317 = arith.index_cast %316 : i32 to index
      %c1_191 = arith.constant 1 : index
      %c0_192 = arith.constant 0 : index
      %318 = tpu.strided_load %arg13[%317, %c1_191, %c0_192] {strides = array<i32: 2, 1, 1>} : memref<48x6x128xf32, #tpu.memory_space<vmem>>, vector<4x4x128xf32>
      %319 = vector.shape_cast %318 : vector<4x4x128xf32> to vector<16x128xf32>
      %320 = arith.truncf %319 : vector<16x128xf32> to vector<16x128xbf16>
      %321 = arith.index_cast %82 : i32 to index
      %c2944 = arith.constant 2944 : index
      %322 = vector.load %arg14[%321, %c2944] : memref<32x3200xbf16, #tpu.memory_space<vmem>>, vector<16x128xbf16>
      tpu.vector_store %arg14[%321, %c2944], %320 {strides = array<i32>} : memref<32x3200xbf16, #tpu.memory_space<vmem>>, vector<16x128xbf16>,
      %c2_i32_193 = arith.constant 2 : i32
      %323 = arith.muli %c2_i32_193, %arg15 : i32
      %c0_i32_194 = arith.constant 0 : i32
      %324 = arith.addi %323, %c0_i32_194 : i32
      %c12_i32_195 = arith.constant 12 : i32
      %325 = arith.muli %324, %c12_i32_195 : i32
      %c4_i32_196 = arith.constant 4 : i32
      %326 = arith.addi %325, %c4_i32_196 : i32
      %327 = arith.index_cast %326 : i32 to index
      %c2_197 = arith.constant 2 : index
      %c0_198 = arith.constant 0 : index
      %328 = tpu.strided_load %arg13[%327, %c2_197, %c0_198] {strides = array<i32: 2, 1, 1>} : memref<48x6x128xf32, #tpu.memory_space<vmem>>, vector<4x4x128xf32>
      %329 = vector.shape_cast %328 : vector<4x4x128xf32> to vector<16x128xf32>
      %330 = arith.truncf %329 : vector<16x128xf32> to vector<16x128xbf16>
      %331 = arith.index_cast %82 : i32 to index
      %c3072 = arith.constant 3072 : index
      %332 = vector.load %arg14[%331, %c3072] : memref<32x3200xbf16, #tpu.memory_space<vmem>>, vector<16x128xbf16>
      tpu.vector_store %arg14[%331, %c3072], %330 {strides = array<i32>} : memref<32x3200xbf16, #tpu.memory_space<vmem>>, vector<16x128xbf16>,
    }
    %c2_i32_25 = arith.constant 2 : i32
    %c0_26 = arith.constant 0 : index
    %c0_27 = arith.constant 0 : index
    %37 = vector.load %arg14[%c0_26, %c0_27] : memref<32x3200xbf16, #tpu.memory_space<vmem>>, vector<32x3200xbf16>
    %c0_28 = arith.constant 0 : index
    %c0_29 = arith.constant 0 : index
    %38 = vector.load %arg5[%c0_28, %c0_29] : memref<3200x256xbf16, #tpu.memory_space<vmem>>, vector<3200x256xbf16>
    %cst_30 = arith.constant dense<0.000000e+00> : vector<32x256xf32>
    %39 = tpu.matmul %37, %38, %cst_30 {dimension_numbers = #tpu.dot_dimension_numbers<[1], [0], [0], [1], [0, 0, 1, 1], [], []>} : vector<32x3200xbf16>, vector<3200x256xbf16>, vector<32x256xf32> -> vector<32x256xf32>
    %c0_31 = arith.constant 0 : index
    %c0_32 = arith.constant 0 : index
    %40 = vector.load %arg6[%c0_31, %c0_32] : memref<1x256xf32, #tpu.memory_space<vmem>>, vector<1x256xf32>
    %41 = vector.broadcast %40 : vector<1x256xf32> to vector<32x256xf32>
    %42 = arith.addf %39, %41 : vector<32x256xf32>
    %c0_33 = arith.constant 0 : index
    %c0_34 = arith.constant 0 : index
    %43 = vector.load %arg7[%c0_33, %c0_34] : memref<1x256xf32, #tpu.memory_space<vmem>>, vector<1x256xf32>
    %c0_35 = arith.constant 0 : index
    %c0_36 = arith.constant 0 : index
    %44 = vector.load %arg8[%c0_35, %c0_36] : memref<1x256xf32, #tpu.memory_space<vmem>>, vector<1x256xf32>
    %cst_37 = arith.constant dense<0.000000e+00> : vector<256xf32>
    %45 = vector.multi_reduction <add>, %42, %cst_37 [0] : vector<32x256xf32> to vector<256xf32>
    %46 = vector.shape_cast %45 : vector<256xf32> to vector<1x256xf32>
    %cst_38 = arith.constant 3.200000e+01 : f32
    %47 = vector.broadcast %cst_38 : f32 to vector<1x256xf32>
    %48 = arith.divf %46, %47 : vector<1x256xf32>
    %49 = vector.broadcast %48 : vector<1x256xf32> to vector<32x256xf32>
    %50 = arith.subf %42, %49 : vector<32x256xf32>
    %51 = arith.mulf %50, %50 : vector<32x256xf32>
    %cst_39 = arith.constant dense<0.000000e+00> : vector<256xf32>
    %52 = vector.multi_reduction <add>, %51, %cst_39 [0] : vector<32x256xf32> to vector<256xf32>
    %53 = vector.shape_cast %52 : vector<256xf32> to vector<1x256xf32>
    %cst_40 = arith.constant 3.200000e+01 : f32
    %54 = vector.broadcast %cst_40 : f32 to vector<1x256xf32>
    %55 = arith.divf %53, %54 : vector<1x256xf32>
    %cst_41 = arith.constant 9.99999974E-6 : f32
    %56 = vector.broadcast %cst_41 : f32 to vector<1x256xf32>
    %57 = arith.addf %55, %56 : vector<1x256xf32>
    %58 = math.rsqrt %57 : vector<1x256xf32>
    %59 = arith.mulf %58, %43 : vector<1x256xf32>
    %60 = vector.broadcast %59 : vector<1x256xf32> to vector<32x256xf32>
    %61 = arith.mulf %50, %60 : vector<32x256xf32>
    %62 = vector.broadcast %44 : vector<1x256xf32> to vector<32x256xf32>
    %63 = arith.addf %61, %62 : vector<32x256xf32>
    %cst_42 = arith.constant 0.000000e+00 : f32
    %64 = vector.broadcast %cst_42 : f32 to vector<32x256xf32>
    %65 = arith.cmpf oge, %63, %64 : vector<32x256xf32>
    %cst_43 = arith.constant 2.000000e-01 : f32
    %66 = vector.broadcast %cst_43 : f32 to vector<32x256xf32>
    %67 = arith.mulf %66, %63 : vector<32x256xf32>
    %68 = arith.select %65, %63, %67 : vector<32x256xi1>, vector<32x256xf32>
    %69 = vector.shape_cast %68 : vector<32x256xf32> to vector<2x16x256xf32>
    %c0_44 = arith.constant 0 : index
    %c0_45 = arith.constant 0 : index
    %70 = vector.load %arg9[%c0_44, %c0_45] : memref<16x256xf32, #tpu.memory_space<vmem>>, vector<16x256xf32>
    %71 = vector.shape_cast %70 : vector<16x256xf32> to vector<1x16x256xf32>
    %72 = vector.broadcast %71 : vector<1x16x256xf32> to vector<2x16x256xf32>
    %73 = arith.mulf %69, %72 : vector<2x16x256xf32>
    %cst_46 = arith.constant dense<0.000000e+00> : vector<2x16xf32>
    %74 = vector.multi_reduction <add>, %73, %cst_46 [2] : vector<2x16x256xf32> to vector<2x16xf32>
    %cst_47 = arith.constant dense<0.000000e+00> : vector<2xf32>
    %75 = vector.multi_reduction <add>, %74, %cst_47 [1] : vector<2x16xf32> to vector<2xf32>
    %76 = vector.shape_cast %75 : vector<2xf32> to vector<2x1xf32>
    %c0_48 = arith.constant 0 : index
    %c0_49 = arith.constant 0 : index
    %77 = vector.load %arg10[%c0_48, %c0_49] : memref<1x1xf32, #tpu.memory_space<vmem>>, vector<1x1xf32>
    %78 = vector.broadcast %77 : vector<1x1xf32> to vector<2x1xf32>
    %79 = arith.addf %76, %78 : vector<2x1xf32>
    %c0_50 = arith.constant 0 : index
    %c0_51 = arith.constant 0 : index
    %80 = vector.load %arg11[%c0_50, %c0_51] : memref<2x1xf32, #tpu.memory_space<vmem>>, vector<2x1xf32>
    tpu.vector_store %arg11[%c0_50, %c0_51], %79 {strides = array<i32>} : memref<2x1xf32, #tpu.memory_space<vmem>>, vector<2x1xf32>,
    return
  }
}

</mosaic_0001>

<llo_original>
// kernel: discriminator_forward.1
$region0: #{discriminator_forward.1}
  #allocation0 [shape = 'u32[]', space=smem, size = 0x4, offset = 0x4, fixed_abs, tag = 'smem constant byte address 0x4 - core index']
  #allocation1 [shape = 'u32[72,128]{1,0:T(1,128)}', space=vmem, size = 0x9000, scoped, tag = 'internal scratch']
  #allocation2 [shape = 'f32[128,128]{1,0:T(8,128)}', space=vmem, size = 0x10000, scoped, tag = 'scratch operand']
  #allocation3 [shape = 'f32[48,6,128]{2,1,0:T(8,128)}', space=vmem, size = 0x30000, scoped, tag = 'scratch operand']
  #allocation4 [shape = 'bf16[32,3200]{1,0:T(8,128)(2,1)}', space=vmem, size = 0x32000, scoped, tag = 'scratch operand']
  #allocation5 [shape = 'f32[1,1]{1,0:T(1,128)S(1)}', space=vmem, size = 0x200, scoped, tag = 'scoped memory for discriminator_forward.1']
  %s0 = inlined_call_operand.vmem [shape: bf16[128,128], index: 0, kind: input, shape index: {}]
  %s1 = inlined_call_operand.vmem [shape: bf16[128,128], index: 1, kind: input, shape index: {}]
  %s2 = inlined_call_operand.vmem [shape: f32[1,128], index: 2, kind: input, shape index: {}]
  %s3 = inlined_call_operand.vmem [shape: f32[1,128], index: 3, kind: input, shape index: {}]
  %s4 = inlined_call_operand.vmem [shape: f32[1,128], index: 4, kind: input, shape index: {}]
  %s5 = inlined_call_operand.vmem [shape: bf16[3200,256], index: 5, kind: input, shape index: {}]
  %s6 = inlined_call_operand.vmem [shape: f32[1,256], index: 6, kind: input, shape index: {}]
  %s7 = inlined_call_operand.vmem [shape: f32[1,256], index: 7, kind: input, shape index: {}]
  %s8 = inlined_call_operand.vmem [shape: f32[1,256], index: 8, kind: input, shape index: {}]
  %s9 = inlined_call_operand.vmem [shape: f32[16,256], index: 9, kind: input, shape index: {}]
  %s10 = inlined_call_operand.<no memory space> [shape: f32[1,1], index: 10, kind: input, shape index: {}]
  %s11 = inlined_call_operand.vmem [shape: f32[2,1], index: 11, kind: output, shape index: {}]
  %s12 = sld [smem:[#allocation0]]
  $region68: #{discriminator_forward.1} parent=0
    _
  %s14 = ssub.s32 1, %s12
  %s15 = scalar_select 0, %s14, %s12
  %v16 = vstv %s10
  %17 = vst [vmem:[#allocation5] sm:$0x1] %v16
  // Predicated region
  $region2: #{discriminator_forward.1} parent=0 // pred_check
    _
  $region3: #{discriminator_forward.1} parent=0 // pred_check_branch
    %19 = sbr.rel (0) target = $region5
  $region4: #{discriminator_forward.1} parent=0 // pred_region
    _
  $region5: #{discriminator_forward.1} parent=0 // pred_fallthru
    _
  // Predicated region
  $region6: #{discriminator_forward.1} parent=0 // pred_check
    _
  $region7: #{discriminator_forward.1} parent=0 // pred_check_branch
    %21 = sbr.rel (0) target = $region9
  $region8: #{discriminator_forward.1} parent=0 // pred_region
    _
  $region9: #{discriminator_forward.1} parent=0 // pred_fallthru
    _
  // Predicated region
  $region10: #{discriminator_forward.1} parent=0 // pred_check
    _
  $region11: #{discriminator_forward.1} parent=0 // pred_check_branch
    %23 = sbr.rel (0) target = $region13
  $region12: #{discriminator_forward.1} parent=0 // pred_region
    _
  $region13: #{discriminator_forward.1} parent=0 // pred_fallthru
    _
  // Predicated region
  $region14: #{discriminator_forward.1} parent=0 // pred_check
    _
  $region15: #{discriminator_forward.1} parent=0 // pred_check_branch
    %25 = sbr.rel (0) target = $region17
  $region16: #{discriminator_forward.1} parent=0 // pred_region
    _
  $region17: #{discriminator_forward.1} parent=0 // pred_fallthru
    _
  // Predicated region
  $region18: #{discriminator_forward.1} parent=0 // pred_check
    _
  $region19: #{discriminator_forward.1} parent=0 // pred_check_branch
    %27 = sbr.rel (0) target = $region21
  $region20: #{discriminator_forward.1} parent=0 // pred_region
    _
  $region21: #{discriminator_forward.1} parent=0 // pred_fallthru
    _
  // Predicated region
  $region22: #{discriminator_forward.1} parent=0 // pred_check
    _
  $region23: #{discriminator_forward.1} parent=0 // pred_check_branch
    %29 = sbr.rel (0) target = $region25
  $region24: #{discriminator_forward.1} parent=0 // pred_region
    _
  $region25: #{discriminator_forward.1} parent=0 // pred_fallthru
    _
  // Predicated region
  $region26: #{discriminator_forward.1} parent=0 // pred_check
    _
  $region27: #{discriminator_forward.1} parent=0 // pred_check_branch
    %31 = sbr.rel (0) target = $region29
  $region28: #{discriminator_forward.1} parent=0 // pred_region
    _
  $region29: #{discriminator_forward.1} parent=0 // pred_fallthru
    _
  // Predicated region
  $region30: #{discriminator_forward.1} parent=0 // pred_check
    _
  $region31: #{discriminator_forward.1} parent=0 // pred_check_branch
    %33 = sbr.rel (0) target = $region33
  $region32: #{discriminator_forward.1} parent=0 // pred_region
    _
  $region33: #{discriminator_forward.1} parent=0 // pred_fallthru
    _
  // Predicated region
  $region34: #{discriminator_forward.1} parent=0 // pred_check
    _
  $region35: #{discriminator_forward.1} parent=0 // pred_check_branch
    %35 = sbr.rel (0) target = $region37
  $region36: #{discriminator_forward.1} parent=0 // pred_region
    _
  $region37: #{discriminator_forward.1} parent=0 // pred_fallthru
    _
  // Predicated region
  $region38: #{discriminator_forward.1} parent=0 // pred_check
    _
  $region39: #{discriminator_forward.1} parent=0 // pred_check_branch
    %37 = sbr.rel (0) target = $region41
  $region40: #{discriminator_forward.1} parent=0 // pred_region
    _
  $region41: #{discriminator_forward.1} parent=0 // pred_fallthru
    _
  // Predicated region
  $region42: #{discriminator_forward.1} parent=0 // pred_check
    _
  $region43: #{discriminator_forward.1} parent=0 // pred_check_branch
    %39 = sbr.rel (0) target = $region45
  $region44: #{discriminator_forward.1} parent=0 // pred_region
    _
  $region45: #{discriminator_forward.1} parent=0 // pred_fallthru
    _
  %v40 = vld [vmem:[%s0] sm:$0xf]
  %v41 = vld [vmem:[%s0 + $0x4] sm:$0xf]
  %v42 = vld [vmem:[%s0 + $0x8] sm:$0xf]
  %v43 = vld [vmem:[%s0 + $0xc] sm:$0xf]
  %v44 = vld [vmem:[%s0 + $0x10] sm:$0xf]
  %v45 = vld [vmem:[%s0 + $0x14] sm:$0xf]
  %v46 = vld [vmem:[%s0 + $0x18] sm:$0xf]
  %v47 = vld [vmem:[%s0 + $0x1c] sm:$0xf]
  %v48 = vld [vmem:[%s0 + $0x20] sm:$0xf]
  %v49 = vld [vmem:[%s0 + $0x24] sm:$0xf]
  %v50 = vld [vmem:[%s0 + $0x28] sm:$0xf]
  %v51 = vld [vmem:[%s0 + $0x2c] sm:$0xf]
  %v52 = vld [vmem:[%s0 + $0x30] sm:$0xf]
  %v53 = vld [vmem:[%s0 + $0x34] sm:$0xf]
  %v54 = vld [vmem:[%s0 + $0x38] sm:$0xf]
  %v55 = vld [vmem:[%s0 + $0x3c] sm:$0xf]
  %v56 = vld [vmem:[%s1] sm:$0xf]
  %v57 = vld [vmem:[%s1 + $0x4] sm:$0xf]
  %v58 = vld [vmem:[%s1 + $0x8] sm:$0xf]
  %v59 = vld [vmem:[%s1 + $0xc] sm:$0xf]
  %v60 = vld [vmem:[%s1 + $0x10] sm:$0xf]
  %v61 = vld [vmem:[%s1 + $0x14] sm:$0xf]
  %v62 = vld [vmem:[%s1 + $0x18] sm:$0xf]
  %v63 = vld [vmem:[%s1 + $0x1c] sm:$0xf]
  %v64 = vld [vmem:[%s1 + $0x20] sm:$0xf]
  %v65 = vld [vmem:[%s1 + $0x24] sm:$0xf]
  %v66 = vld [vmem:[%s1 + $0x28] sm:$0xf]
  %v67 = vld [vmem:[%s1 + $0x2c] sm:$0xf]
  %v68 = vld [vmem:[%s1 + $0x30] sm:$0xf]
  %v69 = vld [vmem:[%s1 + $0x34] sm:$0xf]
  %v70 = vld [vmem:[%s1 + $0x38] sm:$0xf]
  %v71 = vld [vmem:[%s1 + $0x3c] sm:$0xf]
  %v72 = vld [vmem:[%s2] sm:$0x1]
  %v74 = vperm.slane %v72, 0
  %v92 = vunpack.c.l.b16 %v40
  %v93 = vunpack.c.l.b16 %v41
  %v94 = vunpack.c.l.b16 %v42
  %v95 = vunpack.c.l.b16 %v43
  %v96 = vunpack.c.l.b16 %v44
  %v97 = vunpack.c.l.b16 %v45
  %v98 = vunpack.c.l.b16 %v46
  %v99 = vunpack.c.l.b16 %v47
  %v100 = vunpack.c.l.b16 %v48
  %v101 = vunpack.c.l.b16 %v49
  %v102 = vunpack.c.l.b16 %v50
  %v103 = vunpack.c.l.b16 %v51
  %v104 = vunpack.c.l.b16 %v52
  %v105 = vunpack.c.l.b16 %v53
  %v106 = vunpack.c.l.b16 %v54
  %v107 = vunpack.c.l.b16 %v55
  %v108 = vpack.c.b16 %v93, %v92
  %v109 = vpack.c.b16 %v95, %v94
  %v110 = vpack.c.b16 %v97, %v96
  %v111 = vpack.c.b16 %v99, %v98
  %v112 = vpack.c.b16 %v101, %v100
  %v113 = vpack.c.b16 %v103, %v102
  %v114 = vpack.c.b16 %v105, %v104
  %v115 = vpack.c.b16 %v107, %v106
  %v140 = vunpack.c.l.b16 %v56
  %v141 = vunpack.c.l.b16 %v57
  %v142 = vunpack.c.l.b16 %v58
  %v143 = vunpack.c.l.b16 %v59
  %v144 = vunpack.c.l.b16 %v60
  %v145 = vunpack.c.l.b16 %v61
  %v146 = vunpack.c.l.b16 %v62
  %v147 = vunpack.c.l.b16 %v63
  %v148 = vunpack.c.l.b16 %v64
  %v149 = vunpack.c.l.b16 %v65
  %v150 = vunpack.c.l.b16 %v66
  %v151 = vunpack.c.l.b16 %v67
  %v152 = vunpack.c.l.b16 %v68
  %v153 = vunpack.c.l.b16 %v69
  %v154 = vunpack.c.l.b16 %v70
  %v155 = vunpack.c.l.b16 %v71
  %v156 = vpack.c.b16 %v141, %v140
  %v157 = vpack.c.b16 %v143, %v142
  %v158 = vpack.c.b16 %v145, %v144
  %v159 = vpack.c.b16 %v147, %v146
  %v160 = vpack.c.b16 %v149, %v148
  %v161 = vpack.c.b16 %v151, %v150
  %v162 = vpack.c.b16 %v153, %v152
  %v163 = vpack.c.b16 %v155, %v154
  %172 = vmatpush.bf16.msra.mxu0 %v163
  %173 = vmatpush.bf16.msra.mxu0 %v162
  %174 = vmatpush.bf16.msra.mxu0 %v161
  %175 = vmatpush.bf16.msra.mxu0 %v160
  %176 = vmatpush.bf16.msra.mxu0 %v159
  %177 = vmatpush.bf16.msra.mxu0 %v158
  %178 = vmatpush.bf16.msra.mxu0 %v157
  %179 = vmatpush.bf16.msra.mxu0 %v156
  %180 = vmatmul.bf16.gmra.mxu0 %v108
  %v181 = vpop.f32.mrf.mxu0
  %v182 = vadd.f32 %v74, %v181
  %v183 = vpop.f32.mrf.mxu0
  %v184 = vadd.f32 %v74, %v183
  %185 = vmatmul.bf16.gmra.mxu0 %v109
  %v186 = vpop.f32.mrf.mxu0
  %v187 = vadd.f32 %v74, %v186
  %v188 = vpop.f32.mrf.mxu0
  %v189 = vadd.f32 %v74, %v188
  %190 = vmatmul.bf16.gmra.mxu0 %v110
  %v191 = vpop.f32.mrf.mxu0
  %v192 = vadd.f32 %v74, %v191
  %v193 = vpop.f32.mrf.mxu0
  %v194 = vadd.f32 %v74, %v193
  %195 = vmatmul.bf16.gmra.mxu0 %v111
  %v196 = vpop.f32.mrf.mxu0
  %v197 = vadd.f32 %v74, %v196
  %v198 = vpop.f32.mrf.mxu0
  %v199 = vadd.f32 %v74, %v198
  %200 = vmatmul.bf16.gmra.mxu0 %v112
  %v201 = vpop.f32.mrf.mxu0
  %v202 = vadd.f32 %v74, %v201
  %v203 = vpop.f32.mrf.mxu0
  %v204 = vadd.f32 %v74, %v203
  %205 = vmatmul.bf16.gmra.mxu0 %v113
  %v206 = vpop.f32.mrf.mxu0
  %v207 = vadd.f32 %v74, %v206
  %v208 = vpop.f32.mrf.mxu0
  %v209 = vadd.f32 %v74, %v208
  %210 = vmatmul.bf16.gmra.mxu0 %v114
  %v211 = vpop.f32.mrf.mxu0
  %v212 = vadd.f32 %v74, %v211
  %v213 = vpop.f32.mrf.mxu0
  %v214 = vadd.f32 %v74, %v213
  %215 = vmatmul.bf16.gmra.mxu0 %v115
  %v216 = vpop.f32.mrf.mxu0
  %v217 = vadd.f32 %v74, %v216
  %v218 = vpop.f32.mrf.mxu0
  %v219 = vadd.f32 %v74, %v218
  %220 = vdwg.mxu0
  %v221 = vld [vmem:[%s3] sm:$0x1]
  %v222 = vld [vmem:[%s4] sm:$0x1]
  %v223 = vadd.f32 %v182, %v184
  %v224 = vadd.f32 %v223, %v187
  %v225 = vadd.f32 %v224, %v189
  %v226 = vadd.f32 %v225, %v192
  %v227 = vadd.f32 %v226, %v194
  %v228 = vadd.f32 %v227, %v197
  %v229 = vadd.f32 %v228, %v199
  %v230 = vadd.f32 %v229, %v202
  %v231 = vadd.f32 %v230, %v204
  %v232 = vadd.f32 %v231, %v207
  %v233 = vadd.f32 %v232, %v209
  %v234 = vadd.f32 %v233, %v212
  %v235 = vadd.f32 %v234, %v214
  %v236 = vadd.f32 %v235, %v217
  %v237 = vadd.f32 %v236, %v219
  %v238 = vrot.slane %v237, 4
  %v239 = vadd.f32 %v237, %v238
  %v240 = vrot.slane %v239, 2
  %v241 = vadd.f32 %v239, %v240
  %v242 = vrot.slane %v241, 1
  %v243 = vadd.f32 %v241, %v242
  %v244 = vrcp.pop 128.0
  %v245 = vmul.f32 128.0, %v244
  %v246 = vsub.f32 1.0, %v245
  %v247 = vmul.f32 %v244, %v246
  %v248 = vadd.f32 %v244, %v247
  %vm249 = vweird.f32 %v244
  %v250 = vsel %vm249, %v244, %v248
  %v251 = vmul.f32 %v243, %v250
  %v252 = vsub.f32 %v182, %v251
  %v253 = vsub.f32 %v184, %v251
  %v254 = vsub.f32 %v187, %v251
  %v255 = vsub.f32 %v189, %v251
  %v256 = vsub.f32 %v192, %v251
  %v257 = vsub.f32 %v194, %v251
  %v258 = vsub.f32 %v197, %v251
  %v259 = vsub.f32 %v199, %v251
  %v260 = vsub.f32 %v202, %v251
  %v261 = vsub.f32 %v204, %v251
  %v262 = vsub.f32 %v207, %v251
  %v263 = vsub.f32 %v209, %v251
  %v264 = vsub.f32 %v212, %v251
  %v265 = vsub.f32 %v214, %v251
  %v266 = vsub.f32 %v217, %v251
  %v267 = vsub.f32 %v219, %v251
  %v268 = vmul.f32 %v252, %v252
  %v269 = vmul.f32 %v253, %v253
  %v270 = vmul.f32 %v254, %v254
  %v271 = vmul.f32 %v255, %v255
  %v272 = vmul.f32 %v256, %v256
  %v273 = vmul.f32 %v257, %v257
  %v274 = vmul.f32 %v258, %v258
  %v275 = vmul.f32 %v259, %v259
  %v276 = vmul.f32 %v260, %v260
  %v277 = vmul.f32 %v261, %v261
  %v278 = vmul.f32 %v262, %v262
  %v279 = vmul.f32 %v263, %v263
  %v280 = vmul.f32 %v264, %v264
  %v281 = vmul.f32 %v265, %v265
  %v282 = vmul.f32 %v266, %v266
  %v283 = vmul.f32 %v267, %v267
  %v284 = vadd.f32 %v268, %v269
  %v285 = vadd.f32 %v284, %v270
  %v286 = vadd.f32 %v285, %v271
  %v287 = vadd.f32 %v286, %v272
  %v288 = vadd.f32 %v287, %v273
  %v289 = vadd.f32 %v288, %v274
  %v290 = vadd.f32 %v289, %v275
  %v291 = vadd.f32 %v290, %v276
  %v292 = vadd.f32 %v291, %v277
  %v293 = vadd.f32 %v292, %v278
  %v294 = vadd.f32 %v293, %v279
  %v295 = vadd.f32 %v294, %v280
  %v296 = vadd.f32 %v295, %v281
  %v297 = vadd.f32 %v296, %v282
  %v298 = vadd.f32 %v297, %v283
  %v299 = vrot.slane %v298, 4
  %v300 = vadd.f32 %v298, %v299
  %v301 = vrot.slane %v300, 2
  %v302 = vadd.f32 %v300, %v301
  %v303 = vrot.slane %v302, 1
  %v304 = vadd.f32 %v302, %v303
  %v305 = vmul.f32 %v304, %v250
  %v306 = vadd.f32 %v305, 1e-05
  %v307 = vrsqrt.pop %v306
  %v308 = vmul.f32 %v307, %v306
  %v309 = vmul.f32 %v308, %v307
  %v310 = vmul.f32 0.5, %v309
  %v311 = vsub.f32 1.5, %v310
  %v312 = vmul.f32 %v307, %v311
  %vm313 = vweird.f32 %v306
  %vm314 = vweird.f32 %v307
  %vm315 = vmor %vm313, %vm314
  %v316 = vsel %vm315, %v307, %v312
  %v317 = vmul.f32 %v316, %v221
  %v318 = vperm.slane %v317, 0
  %v319 = vmul.f32 %v252, %v318
  %v320 = vmul.f32 %v253, %v318
  %v321 = vmul.f32 %v254, %v318
  %v322 = vmul.f32 %v255, %v318
  %v323 = vmul.f32 %v256, %v318
  %v324 = vmul.f32 %v257, %v318
  %v325 = vmul.f32 %v258, %v318
  %v326 = vmul.f32 %v259, %v318
  %v327 = vmul.f32 %v260, %v318
  %v328 = vmul.f32 %v261, %v318
  %v329 = vmul.f32 %v262, %v318
  %v330 = vmul.f32 %v263, %v318
  %v331 = vmul.f32 %v264, %v318
  %v332 = vmul.f32 %v265, %v318
  %v333 = vmul.f32 %v266, %v318
  %v334 = vmul.f32 %v267, %v318
  %v336 = vperm.slane %v222, 0
  %v338 = vadd.f32 %v319, %v336
  %v339 = vadd.f32 %v320, %v336
  %v340 = vadd.f32 %v321, %v336
  %v341 = vadd.f32 %v322, %v336
  %v342 = vadd.f32 %v323, %v336
  %v343 = vadd.f32 %v324, %v336
  %v344 = vadd.f32 %v325, %v336
  %v345 = vadd.f32 %v326, %v336
  %v346 = vadd.f32 %v327, %v336
  %v347 = vadd.f32 %v328, %v336
  %v348 = vadd.f32 %v329, %v336
  %v349 = vadd.f32 %v330, %v336
  %v350 = vadd.f32 %v331, %v336
  %v351 = vadd.f32 %v332, %v336
  %v352 = vadd.f32 %v333, %v336
  %v353 = vadd.f32 %v334, %v336
  %vm354 = vcmp.ge.f32.partialorder %v338, 0.0
  %vm355 = vcmp.ge.f32.partialorder %v339, 0.0
  %vm356 = vcmp.ge.f32.partialorder %v340, 0.0
  %vm357 = vcmp.ge.f32.partialorder %v341, 0.0
  %vm358 = vcmp.ge.f32.partialorder %v342, 0.0
  %vm359 = vcmp.ge.f32.partialorder %v343, 0.0
  %vm360 = vcmp.ge.f32.partialorder %v344, 0.0
  %vm361 = vcmp.ge.f32.partialorder %v345, 0.0
  %vm362 = vcmp.ge.f32.partialorder %v346, 0.0
  %vm363 = vcmp.ge.f32.partialorder %v347, 0.0
  %vm364 = vcmp.ge.f32.partialorder %v348, 0.0
  %vm365 = vcmp.ge.f32.partialorder %v349, 0.0
  %vm366 = vcmp.ge.f32.partialorder %v350, 0.0
  %vm367 = vcmp.ge.f32.partialorder %v351, 0.0
  %vm368 = vcmp.ge.f32.partialorder %v352, 0.0
  %vm369 = vcmp.ge.f32.partialorder %v353, 0.0
  %v370 = vmul.f32 %v338, 0.2
  %v371 = vmul.f32 %v339, 0.2
  %v372 = vmul.f32 %v340, 0.2
  %v373 = vmul.f32 %v341, 0.2
  %v374 = vmul.f32 %v342, 0.2
  %v375 = vmul.f32 %v343, 0.2
  %v376 = vmul.f32 %v344, 0.2
  %v377 = vmul.f32 %v345, 0.2
  %v378 = vmul.f32 %v346, 0.2
  %v379 = vmul.f32 %v347, 0.2
  %v380 = vmul.f32 %v348, 0.2
  %v381 = vmul.f32 %v349, 0.2
  %v382 = vmul.f32 %v350, 0.2
  %v383 = vmul.f32 %v351, 0.2
  %v384 = vmul.f32 %v352, 0.2
  %v385 = vmul.f32 %v353, 0.2
  %v386 = vsel %vm354, %v338, %v370
  %v387 = vsel %vm355, %v339, %v371
  %v388 = vsel %vm356, %v340, %v372
  %v389 = vsel %vm357, %v341, %v373
  %v390 = vsel %vm358, %v342, %v374
  %v391 = vsel %vm359, %v343, %v375
  %v392 = vsel %vm360, %v344, %v376
  %v393 = vsel %vm361, %v345, %v377
  %v394 = vsel %vm362, %v346, %v378
  %v395 = vsel %vm363, %v347, %v379
  %v396 = vsel %vm364, %v348, %v380
  %v397 = vsel %vm365, %v349, %v381
  %v398 = vsel %vm366, %v350, %v382
  %v399 = vsel %vm367, %v351, %v383
  %v400 = vsel %vm368, %v352, %v384
  %v401 = vsel %vm369, %v353, %v385
  %402 = vst [vmem:[#allocation2] sm:$0xff] %v386
  %403 = vst [vmem:[#allocation2 + $0x8] sm:$0xff] %v387
  %404 = vst [vmem:[#allocation2 + $0x10] sm:$0xff] %v388
  %405 = vst [vmem:[#allocation2 + $0x18] sm:$0xff] %v389
  %406 = vst [vmem:[#allocation2 + $0x20] sm:$0xff] %v390
  %407 = vst [vmem:[#allocation2 + $0x28] sm:$0xff] %v391
  %408 = vst [vmem:[#allocation2 + $0x30] sm:$0xff] %v392
  %409 = vst [vmem:[#allocation2 + $0x38] sm:$0xff] %v393
  %410 = vst [vmem:[#allocation2 + $0x40] sm:$0xff] %v394
  %411 = vst [vmem:[#allocation2 + $0x48] sm:$0xff] %v395
  %412 = vst [vmem:[#allocation2 + $0x50] sm:$0xff] %v396
  %413 = vst [vmem:[#allocation2 + $0x58] sm:$0xff] %v397
  %414 = vst [vmem:[#allocation2 + $0x60] sm:$0xff] %v398
  %415 = vst [vmem:[#allocation2 + $0x68] sm:$0xff] %v399
  %416 = vst [vmem:[#allocation2 + $0x70] sm:$0xff] %v400
  %417 = vst [vmem:[#allocation2 + $0x78] sm:$0xff] %v401
  %418 = vst [vmem:[#allocation3] sm:$0x3f] 0.0
  %419 = vst [vmem:[#allocation3 + $0x8] sm:$0x3f] 0.0
  %420 = vst [vmem:[#allocation3 + $0x10] sm:$0x3f] 0.0
  %421 = vst [vmem:[#allocation3 + $0x18] sm:$0x3f] 0.0
  %422 = vst [vmem:[#allocation3 + $0x20] sm:$0x3f] 0.0
  %423 = vst [vmem:[#allocation3 + $0x28] sm:$0x3f] 0.0
  %424 = vst [vmem:[#allocation3 + $0x30] sm:$0x3f] 0.0
  %425 = vst [vmem:[#allocation3 + $0x38] sm:$0x3f] 0.0
  %426 = vst [vmem:[#allocation3 + $0x40] sm:$0x3f] 0.0
  %427 = vst [vmem:[#allocation3 + $0x48] sm:$0x3f] 0.0
  %428 = vst [vmem:[#allocation3 + $0x50] sm:$0x3f] 0.0
  %429 = vst [vmem:[#allocation3 + $0x58] sm:$0x3f] 0.0
  %430 = vst [vmem:[#allocation3 + $0x60] sm:$0x3f] 0.0
  %431 = vst [vmem:[#allocation3 + $0x68] sm:$0x3f] 0.0
  %432 = vst [vmem:[#allocation3 + $0x70] sm:$0x3f] 0.0
  %433 = vst [vmem:[#allocation3 + $0x78] sm:$0x3f] 0.0
  %434 = vst [vmem:[#allocation3 + $0x80] sm:$0x3f] 0.0
  %435 = vst [vmem:[#allocation3 + $0x88] sm:$0x3f] 0.0
  %436 = vst [vmem:[#allocation3 + $0x90] sm:$0x3f] 0.0
  %437 = vst [vmem:[#allocation3 + $0x98] sm:$0x3f] 0.0
  %438 = vst [vmem:[#allocation3 + $0xa0] sm:$0x3f] 0.0
  %439 = vst [vmem:[#allocation3 + $0xa8] sm:$0x3f] 0.0
  %440 = vst [vmem:[#allocation3 + $0xb0] sm:$0x3f] 0.0
  %441 = vst [vmem:[#allocation3 + $0xb8] sm:$0x3f] 0.0
  %442 = vst [vmem:[#allocation3 + $0xc0] sm:$0x3f] 0.0
  %443 = vst [vmem:[#allocation3 + $0xc8] sm:$0x3f] 0.0
  %444 = vst [vmem:[#allocation3 + $0xd0] sm:$0x3f] 0.0
  %445 = vst [vmem:[#allocation3 + $0xd8] sm:$0x3f] 0.0
  %446 = vst [vmem:[#allocation3 + $0xe0] sm:$0x3f] 0.0
  %447 = vst [vmem:[#allocation3 + $0xe8] sm:$0x3f] 0.0
  %448 = vst [vmem:[#allocation3 + $0xf0] sm:$0x3f] 0.0
  %449 = vst [vmem:[#allocation3 + $0xf8] sm:$0x3f] 0.0
  %450 = vst [vmem:[#allocation3 + $0x100] sm:$0x3f] 0.0
  %451 = vst [vmem:[#allocation3 + $0x108] sm:$0x3f] 0.0
  %452 = vst [vmem:[#allocation3 + $0x110] sm:$0x3f] 0.0
  %453 = vst [vmem:[#allocation3 + $0x118] sm:$0x3f] 0.0
  %454 = vst [vmem:[#allocation3 + $0x120] sm:$0x3f] 0.0
  %455 = vst [vmem:[#allocation3 + $0x128] sm:$0x3f] 0.0
  %456 = vst [vmem:[#allocation3 + $0x130] sm:$0x3f] 0.0
  %457 = vst [vmem:[#allocation3 + $0x138] sm:$0x3f] 0.0
  %458 = vst [vmem:[#allocation3 + $0x140] sm:$0x3f] 0.0
  %459 = vst [vmem:[#allocation3 + $0x148] sm:$0x3f] 0.0
  %460 = vst [vmem:[#allocation3 + $0x150] sm:$0x3f] 0.0
  %461 = vst [vmem:[#allocation3 + $0x158] sm:$0x3f] 0.0
  %462 = vst [vmem:[#allocation3 + $0x160] sm:$0x3f] 0.0
  %463 = vst [vmem:[#allocation3 + $0x168] sm:$0x3f] 0.0
  %464 = vst [vmem:[#allocation3 + $0x170] sm:$0x3f] 0.0
  %465 = vst [vmem:[#allocation3 + $0x178] sm:$0x3f] 0.0
  loop: start=0, step=1, limit=4
  $region46: #{discriminator_forward.1} parent=0 // loop_pre_header
    _
  $region47: #{discriminator_forward.1} parent=0 // loop_header
    %s467 = sphi 0, %s471
    %p468 = scmp.ge.s32.totalorder %s467, 4
  $region48: #{discriminator_forward.1} parent=0 // loop_header_branch
    %470 = sbr.rel (%p468) target = $region52
  $region49: #{discriminator_forward.1} parent=0 // loop_body
    %s472 = smul.u32 %s467, 32
    %s473 = scalar_lea.vmem [#allocation2], %s472
    %v474 = vld [vmem:[%s473] sm:$0xff]
    %v475 = vld [vmem:[%s473 + $0x8] sm:$0xff]
    %v476 = vld [vmem:[%s473 + $0x10] sm:$0xff]
    %v477 = vld [vmem:[%s473 + $0x18] sm:$0xff]
    %v482 = vrot.slane %v474, 4
    %v483 = vrot.slane %v475, 4
    %v484 = vrot.slane %v476, 4
    %v485 = vrot.slane %v477, 4
    %s490 = smul.u32 %s467, 12
    %s491 = sadd.s32 %s490, 2
    %s492 = smul.u32 %s491, 8
    %s493 = scalar_lea.vmem [#allocation3], %s492
    %494 = vst [vmem:[%s493 + $0x1] sm:$0xf] %v474
    %495 = vst [vmem:[%s493 + $0x9] sm:$0xf] %v482
    %496 = vst [vmem:[%s493 + $0x11] sm:$0xf] %v475
    %497 = vst [vmem:[%s493 + $0x19] sm:$0xf] %v483
    %498 = vst [vmem:[%s493 + $0x21] sm:$0xf] %v476
    %499 = vst [vmem:[%s493 + $0x29] sm:$0xf] %v484
    %500 = vst [vmem:[%s493 + $0x31] sm:$0xf] %v477
    %501 = vst [vmem:[%s493 + $0x39] sm:$0xf] %v485
  $region50: #{discriminator_forward.1} parent=0 // loop_footer
    %s471 = sadd.s32 1, %s467
  $region51: #{discriminator_forward.1} parent=0 // loop_footer_branch
    %466 = sbr.rel target = $region47
  $region52: #{discriminator_forward.1} parent=0 // loop_exit
    _
  loop: start=0, step=1, limit=2
  $region53: #{discriminator_forward.1} parent=0 // loop_pre_header
    _
  $region54: #{discriminator_forward.1} parent=0 // loop_header
    %s503 = sphi 0, %s507
    %p504 = scmp.ge.s32.totalorder %s503, 2
  $region55: #{discriminator_forward.1} parent=0 // loop_header_branch
    %506 = sbr.rel (%p504) target = $region59
  $region56: #{discriminator_forward.1} parent=0 // loop_body
    %s508 = smul.u32 %s503, 16
    %s509 = smul.u32 %s503, 24
    %s510 = smul.u32 %s509, 8
    %s511 = scalar_lea.vmem [#allocation3], %s510
    %v512 = vld [vmem:[%s511] sm:$0xf]
    %v513 = vld [vmem:[%s511 + $0x10] sm:$0xf]
    %v514 = vld [vmem:[%s511 + $0x20] sm:$0xf]
    %v515 = vld [vmem:[%s511 + $0x30] sm:$0xf]
    %520 = vst [vmem:[#allocation1] ss:$2 sm:$0xff] %v512
    %s521 = scalar_lea.vmem [#allocation1], 1
    %522 = vst [vmem:[%s521] ss:$2 sm:$0xff] %v513
    %s523 = scalar_lea.vmem [#allocation1], 16
    %524 = vst [vmem:[%s523] ss:$2 sm:$0xff] %v514
    %s525 = scalar_lea.vmem [#allocation1], 17
    %526 = vst [vmem:[%s525] ss:$2 sm:$0xff] %v515
    %v527 = vld.sshfl [vmem:[#allocation1] sm:$0xff pattern:$0x75316420]
    %v528 = vld.sshfl [vmem:[#allocation1 + $0x10] sm:$0xff pattern:$0x75316420]
    %v531 = vpack.c.bf16 %v527, %v527
    %v532 = vpack.c.bf16 %v528, %v528
    %s533 = sshra.s32 %s508, 3
    %s534 = sand.u32 %s508, 7
    %s535 = smul.u32 %s533, 25
    %s536 = smul.addr %s535, 4
    %s537 = scalar_lea.vmem [#allocation4], %s536
    %538 = vst [vmem:[%s537] sm:$0xf] %v531
    %539 = vst [vmem:[%s537 + $0x64] sm:$0xf] %v532
    %s540 = smul.u32 %s503, 2
    %s541 = sadd.s32 %s540, 1
    %s542 = smul.u32 %s541, 12
    %s543 = smul.u32 %s542, 8
    %s544 = scalar_lea.vmem [#allocation3], %s543
    %v545 = vld [vmem:[%s544] sm:$0xf]
    %v546 = vld [vmem:[%s544 + $0x10] sm:$0xf]
    %v547 = vld [vmem:[%s544 + $0x20] sm:$0xf]
    %v548 = vld [vmem:[%s544 + $0x30] sm:$0xf]
    %553 = vst [vmem:[#allocation1] ss:$2 sm:$0xff] %v545
    %s554 = scalar_lea.vmem [#allocation1], 1
    %555 = vst [vmem:[%s554] ss:$2 sm:$0xff] %v546
    %s556 = scalar_lea.vmem [#allocation1], 16
    %557 = vst [vmem:[%s556] ss:$2 sm:$0xff] %v547
    %s558 = scalar_lea.vmem [#allocation1], 17
    %559 = vst [vmem:[%s558] ss:$2 sm:$0xff] %v548
    %v560 = vld.sshfl [vmem:[#allocation1] sm:$0xff pattern:$0x75316420]
    %v561 = vld.sshfl [vmem:[#allocation1 + $0x10] sm:$0xff pattern:$0x75316420]
    %v564 = vpack.c.bf16 %v560, %v560
    %v565 = vpack.c.bf16 %v561, %v561
    %566 = vst [vmem:[%s537 + $0x4] sm:$0xf] %v564
    %567 = vst [vmem:[%s537 + $0x68] sm:$0xf] %v565
    %v568 = vld [vmem:[%s511 + $0x1] sm:$0xf]
    %v569 = vld [vmem:[%s511 + $0x11] sm:$0xf]
    %v570 = vld [vmem:[%s511 + $0x21] sm:$0xf]
    %v571 = vld [vmem:[%s511 + $0x31] sm:$0xf]
    %576 = vst [vmem:[#allocation1] ss:$2 sm:$0xff] %v568
    %s577 = scalar_lea.vmem [#allocation1], 1
    %578 = vst [vmem:[%s577] ss:$2 sm:$0xff] %v569
    %s579 = scalar_lea.vmem [#allocation1], 16
    %580 = vst [vmem:[%s579] ss:$2 sm:$0xff] %v570
    %s581 = scalar_lea.vmem [#allocation1], 17
    %582 = vst [vmem:[%s581] ss:$2 sm:$0xff] %v571
    %v583 = vld.sshfl [vmem:[#allocation1] sm:$0xff pattern:$0x75316420]
    %v584 = vld.sshfl [vmem:[#allocation1 + $0x10] sm:$0xff pattern:$0x75316420]
    %v587 = vpack.c.bf16 %v583, %v583
    %v588 = vpack.c.bf16 %v584, %v584
    %589 = vst [vmem:[%s537 + $0x8] sm:$0xf] %v587
    %590 = vst [vmem:[%s537 + $0x6c] sm:$0xf] %v588
    %v591 = vld [vmem:[%s544 + $0x1] sm:$0xf]
    %v592 = vld [vmem:[%s544 + $0x11] sm:$0xf]
    %v593 = vld [vmem:[%s544 + $0x21] sm:$0xf]
    %v594 = vld [vmem:[%s544 + $0x31] sm:$0xf]
    %599 = vst [vmem:[#allocation1] ss:$2 sm:$0xff] %v591
    %s600 = scalar_lea.vmem [#allocation1], 1
    %601 = vst [vmem:[%s600] ss:$2 sm:$0xff] %v592
    %s602 = scalar_lea.vmem [#allocation1], 16
    %603 = vst [vmem:[%s602] ss:$2 sm:$0xff] %v593
    %s604 = scalar_lea.vmem [#allocation1], 17
    %605 = vst [vmem:[%s604] ss:$2 sm:$0xff] %v594
    %v606 = vld.sshfl [vmem:[#allocation1] sm:$0xff pattern:$0x75316420]
    %v607 = vld.sshfl [vmem:[#allocation1 + $0x10] sm:$0xff pattern:$0x75316420]
    %v610 = vpack.c.bf16 %v606, %v606
    %v611 = vpack.c.bf16 %v607, %v607
    %612 = vst [vmem:[%s537 + $0xc] sm:$0xf] %v610
    %613 = vst [vmem:[%s537 + $0x70] sm:$0xf] %v611
    %v614 = vld [vmem:[%s511 + $0x2] sm:$0xf]
    %v615 = vld [vmem:[%s511 + $0x12] sm:$0xf]
    %v616 = vld [vmem:[%s511 + $0x22] sm:$0xf]
    %v617 = vld [vmem:[%s511 + $0x32] sm:$0xf]
    %622 = vst [vmem:[#allocation1] ss:$2 sm:$0xff] %v614
    %s623 = scalar_lea.vmem [#allocation1], 1
    %624 = vst [vmem:[%s623] ss:$2 sm:$0xff] %v615
    %s625 = scalar_lea.vmem [#allocation1], 16
    %626 = vst [vmem:[%s625] ss:$2 sm:$0xff] %v616
    %s627 = scalar_lea.vmem [#allocation1], 17
    %628 = vst [vmem:[%s627] ss:$2 sm:$0xff] %v617
    %v629 = vld.sshfl [vmem:[#allocation1] sm:$0xff pattern:$0x75316420]
    %v630 = vld.sshfl [vmem:[#allocation1 + $0x10] sm:$0xff pattern:$0x75316420]
    %v633 = vpack.c.bf16 %v629, %v629
    %v634 = vpack.c.bf16 %v630, %v630
    %635 = vst [vmem:[%s537 + $0x10] sm:$0xf] %v633
    %636 = vst [vmem:[%s537 + $0x74] sm:$0xf] %v634
    %s637 = sadd.s32 %s509, 1
    %s638 = smul.u32 %s637, 8
    %s639 = scalar_lea.vmem [#allocation3], %s638
    %v640 = vld [vmem:[%s639] sm:$0xf]
    %v641 = vld [vmem:[%s639 + $0x10] sm:$0xf]
    %v642 = vld [vmem:[%s639 + $0x20] sm:$0xf]
    %v643 = vld [vmem:[%s639 + $0x30] sm:$0xf]
    %648 = vst [vmem:[#allocation1] ss:$2 sm:$0xff] %v640
    %s649 = scalar_lea.vmem [#allocation1], 1
    %650 = vst [vmem:[%s649] ss:$2 sm:$0xff] %v641
    %s651 = scalar_lea.vmem [#allocation1], 16
    %652 = vst [vmem:[%s651] ss:$2 sm:$0xff] %v642
    %s653 = scalar_lea.vmem [#allocation1], 17
    %654 = vst [vmem:[%s653] ss:$2 sm:$0xff] %v643
    %v655 = vld.sshfl [vmem:[#allocation1] sm:$0xff pattern:$0x75316420]
    %v656 = vld.sshfl [vmem:[#allocation1 + $0x10] sm:$0xff pattern:$0x75316420]
    %v659 = vpack.c.bf16 %v655, %v655
    %v660 = vpack.c.bf16 %v656, %v656
    %661 = vst [vmem:[%s537 + $0x14] sm:$0xf] %v659
    %662 = vst [vmem:[%s537 + $0x78] sm:$0xf] %v660
    %s663 = sadd.s32 %s542, 1
    %s664 = smul.u32 %s663, 8
    %s665 = scalar_lea.vmem [#allocation3], %s664
    %v666 = vld [vmem:[%s665] sm:$0xf]
    %v667 = vld [vmem:[%s665 + $0x10] sm:$0xf]
    %v668 = vld [vmem:[%s665 + $0x20] sm:$0xf]
    %v669 = vld [vmem:[%s665 + $0x30] sm:$0xf]
    %674 = vst [vmem:[#allocation1] ss:$2 sm:$0xff] %v666
    %s675 = scalar_lea.vmem [#allocation1], 1
    %676 = vst [vmem:[%s675] ss:$2 sm:$0xff] %v667
    %s677 = scalar_lea.vmem [#allocation1], 16
    %678 = vst [vmem:[%s677] ss:$2 sm:$0xff] %v668
    %s679 = scalar_lea.vmem [#allocation1], 17
    %680 = vst [vmem:[%s679] ss:$2 sm:$0xff] %v669
    %v681 = vld.sshfl [vmem:[#allocation1] sm:$0xff pattern:$0x75316420]
    %v682 = vld.sshfl [vmem:[#allocation1 + $0x10] sm:$0xff pattern:$0x75316420]
    %v685 = vpack.c.bf16 %v681, %v681
    %v686 = vpack.c.bf16 %v682, %v682
    %687 = vst [vmem:[%s537 + $0x18] sm:$0xf] %v685
    %688 = vst [vmem:[%s537 + $0x7c] sm:$0xf] %v686
    %v689 = vld [vmem:[%s639 + $0x1] sm:$0xf]
    %v690 = vld [vmem:[%s639 + $0x11] sm:$0xf]
    %v691 = vld [vmem:[%s639 + $0x21] sm:$0xf]
    %v692 = vld [vmem:[%s639 + $0x31] sm:$0xf]
    %697 = vst [vmem:[#allocation1] ss:$2 sm:$0xff] %v689
    %s698 = scalar_lea.vmem [#allocation1], 1
    %699 = vst [vmem:[%s698] ss:$2 sm:$0xff] %v690
    %s700 = scalar_lea.vmem [#allocation1], 16
    %701 = vst [vmem:[%s700] ss:$2 sm:$0xff] %v691
    %s702 = scalar_lea.vmem [#allocation1], 17
    %703 = vst [vmem:[%s702] ss:$2 sm:$0xff] %v692
    %v704 = vld.sshfl [vmem:[#allocation1] sm:$0xff pattern:$0x75316420]
    %v705 = vld.sshfl [vmem:[#allocation1 + $0x10] sm:$0xff pattern:$0x75316420]
    %v708 = vpack.c.bf16 %v704, %v704
    %v709 = vpack.c.bf16 %v705, %v705
    %710 = vst [vmem:[%s537 + $0x1c] sm:$0xf] %v708
    %711 = vst [vmem:[%s537 + $0x80] sm:$0xf] %v709
    %v712 = vld [vmem:[%s665 + $0x1] sm:$0xf]
    %v713 = vld [vmem:[%s665 + $0x11] sm:$0xf]
    %v714 = vld [vmem:[%s665 + $0x21] sm:$0xf]
    %v715 = vld [vmem:[%s665 + $0x31] sm:$0xf]
    %720 = vst [vmem:[#allocation1] ss:$2 sm:$0xff] %v712
    %s721 = scalar_lea.vmem [#allocation1], 1
    %722 = vst [vmem:[%s721] ss:$2 sm:$0xff] %v713
    %s723 = scalar_lea.vmem [#allocation1], 16
    %724 = vst [vmem:[%s723] ss:$2 sm:$0xff] %v714
    %s725 = scalar_lea.vmem [#allocation1], 17
    %726 = vst [vmem:[%s725] ss:$2 sm:$0xff] %v715
    %v727 = vld.sshfl [vmem:[#allocation1] sm:$0xff pattern:$0x75316420]
    %v728 = vld.sshfl [vmem:[#allocation1 + $0x10] sm:$0xff pattern:$0x75316420]
    %v731 = vpack.c.bf16 %v727, %v727
    %v732 = vpack.c.bf16 %v728, %v728
    %733 = vst [vmem:[%s537 + $0x20] sm:$0xf] %v731
    %734 = vst [vmem:[%s537 + $0x84] sm:$0xf] %v732
    %v735 = vld [vmem:[%s639 + $0x2] sm:$0xf]
    %v736 = vld [vmem:[%s639 + $0x12] sm:$0xf]
    %v737 = vld [vmem:[%s639 + $0x22] sm:$0xf]
    %v738 = vld [vmem:[%s639 + $0x32] sm:$0xf]
    %743 = vst [vmem:[#allocation1] ss:$2 sm:$0xff] %v735
    %s744 = scalar_lea.vmem [#allocation1], 1
    %745 = vst [vmem:[%s744] ss:$2 sm:$0xff] %v736
    %s746 = scalar_lea.vmem [#allocation1], 16
    %747 = vst [vmem:[%s746] ss:$2 sm:$0xff] %v737
    %s748 = scalar_lea.vmem [#allocation1], 17
    %749 = vst [vmem:[%s748] ss:$2 sm:$0xff] %v738
    %v750 = vld.sshfl [vmem:[#allocation1] sm:$0xff pattern:$0x75316420]
    %v751 = vld.sshfl [vmem:[#allocation1 + $0x10] sm:$0xff pattern:$0x75316420]
    %v754 = vpack.c.bf16 %v750, %v750
    %v755 = vpack.c.bf16 %v751, %v751
    %756 = vst [vmem:[%s537 + $0x24] sm:$0xf] %v754
    %757 = vst [vmem:[%s537 + $0x88] sm:$0xf] %v755
    %s758 = sadd.s32 %s509, 2
    %s759 = smul.u32 %s758, 8
    %s760 = scalar_lea.vmem [#allocation3], %s759
    %v761 = vld [vmem:[%s760] sm:$0xf]
    %v762 = vld [vmem:[%s760 + $0x10] sm:$0xf]
    %v763 = vld [vmem:[%s760 + $0x20] sm:$0xf]
    %v764 = vld [vmem:[%s760 + $0x30] sm:$0xf]
    %769 = vst [vmem:[#allocation1] ss:$2 sm:$0xff] %v761
    %s770 = scalar_lea.vmem [#allocation1], 1
    %771 = vst [vmem:[%s770] ss:$2 sm:$0xff] %v762
    %s772 = scalar_lea.vmem [#allocation1], 16
    %773 = vst [vmem:[%s772] ss:$2 sm:$0xff] %v763
    %s774 = scalar_lea.vmem [#allocation1], 17
    %775 = vst [vmem:[%s774] ss:$2 sm:$0xff] %v764
    %v776 = vld.sshfl [vmem:[#allocation1] sm:$0xff pattern:$0x75316420]
    %v777 = vld.sshfl [vmem:[#allocation1 + $0x10] sm:$0xff pattern:$0x75316420]
    %v780 = vpack.c.bf16 %v776, %v776
    %v781 = vpack.c.bf16 %v777, %v777
    %782 = vst [vmem:[%s537 + $0x28] sm:$0xf] %v780
    %783 = vst [vmem:[%s537 + $0x8c] sm:$0xf] %v781
    %s784 = sadd.s32 %s542, 2
    %s785 = smul.u32 %s784, 8
    %s786 = scalar_lea.vmem [#allocation3], %s785
    %v787 = vld [vmem:[%s786] sm:$0xf]
    %v788 = vld [vmem:[%s786 + $0x10] sm:$0xf]
    %v789 = vld [vmem:[%s786 + $0x20] sm:$0xf]
    %v790 = vld [vmem:[%s786 + $0x30] sm:$0xf]
    %795 = vst [vmem:[#allocation1] ss:$2 sm:$0xff] %v787
    %s796 = scalar_lea.vmem [#allocation1], 1
    %797 = vst [vmem:[%s796] ss:$2 sm:$0xff] %v788
    %s798 = scalar_lea.vmem [#allocation1], 16
    %799 = vst [vmem:[%s798] ss:$2 sm:$0xff] %v789
    %s800 = scalar_lea.vmem [#allocation1], 17
    %801 = vst [vmem:[%s800] ss:$2 sm:$0xff] %v790
    %v802 = vld.sshfl [vmem:[#allocation1] sm:$0xff pattern:$0x75316420]
    %v803 = vld.sshfl [vmem:[#allocation1 + $0x10] sm:$0xff pattern:$0x75316420]
    %v806 = vpack.c.bf16 %v802, %v802
    %v807 = vpack.c.bf16 %v803, %v803
    %808 = vst [vmem:[%s537 + $0x2c] sm:$0xf] %v806
    %809 = vst [vmem:[%s537 + $0x90] sm:$0xf] %v807
    %v810 = vld [vmem:[%s760 + $0x1] sm:$0xf]
    %v811 = vld [vmem:[%s760 + $0x11] sm:$0xf]
    %v812 = vld [vmem:[%s760 + $0x21] sm:$0xf]
    %v813 = vld [vmem:[%s760 + $0x31] sm:$0xf]
    %818 = vst [vmem:[#allocation1] ss:$2 sm:$0xff] %v810
    %s819 = scalar_lea.vmem [#allocation1], 1
    %820 = vst [vmem:[%s819] ss:$2 sm:$0xff] %v811
    %s821 = scalar_lea.vmem [#allocation1], 16
    %822 = vst [vmem:[%s821] ss:$2 sm:$0xff] %v812
    %s823 = scalar_lea.vmem [#allocation1], 17
    %824 = vst [vmem:[%s823] ss:$2 sm:$0xff] %v813
    %v825 = vld.sshfl [vmem:[#allocation1] sm:$0xff pattern:$0x75316420]
    %v826 = vld.sshfl [vmem:[#allocation1 + $0x10] sm:$0xff pattern:$0x75316420]
    %v829 = vpack.c.bf16 %v825, %v825
    %v830 = vpack.c.bf16 %v826, %v826
    %831 = vst [vmem:[%s537 + $0x30] sm:$0xf] %v829
    %832 = vst [vmem:[%s537 + $0x94] sm:$0xf] %v830
    %v833 = vld [vmem:[%s786 + $0x1] sm:$0xf]
    %v834 = vld [vmem:[%s786 + $0x11] sm:$0xf]
    %v835 = vld [vmem:[%s786 + $0x21] sm:$0xf]
    %v836 = vld [vmem:[%s786 + $0x31] sm:$0xf]
    %841 = vst [vmem:[#allocation1] ss:$2 sm:$0xff] %v833
    %s842 = scalar_lea.vmem [#allocation1], 1
    %843 = vst [vmem:[%s842] ss:$2 sm:$0xff] %v834
    %s844 = scalar_lea.vmem [#allocation1], 16
    %845 = vst [vmem:[%s844] ss:$2 sm:$0xff] %v835
    %s846 = scalar_lea.vmem [#allocation1], 17
    %847 = vst [vmem:[%s846] ss:$2 sm:$0xff] %v836
    %v848 = vld.sshfl [vmem:[#allocation1] sm:$0xff pattern:$0x75316420]
    %v849 = vld.sshfl [vmem:[#allocation1 + $0x10] sm:$0xff pattern:$0x75316420]
    %v852 = vpack.c.bf16 %v848, %v848
    %v853 = vpack.c.bf16 %v849, %v849
    %854 = vst [vmem:[%s537 + $0x34] sm:$0xf] %v852
    %855 = vst [vmem:[%s537 + $0x98] sm:$0xf] %v853
    %v856 = vld [vmem:[%s760 + $0x2] sm:$0xf]
    %v857 = vld [vmem:[%s760 + $0x12] sm:$0xf]
    %v858 = vld [vmem:[%s760 + $0x22] sm:$0xf]
    %v859 = vld [vmem:[%s760 + $0x32] sm:$0xf]
    %864 = vst [vmem:[#allocation1] ss:$2 sm:$0xff] %v856
    %s865 = scalar_lea.vmem [#allocation1], 1
    %866 = vst [vmem:[%s865] ss:$2 sm:$0xff] %v857
    %s867 = scalar_lea.vmem [#allocation1], 16
    %868 = vst [vmem:[%s867] ss:$2 sm:$0xff] %v858
    %s869 = scalar_lea.vmem [#allocation1], 17
    %870 = vst [vmem:[%s869] ss:$2 sm:$0xff] %v859
    %v871 = vld.sshfl [vmem:[#allocation1] sm:$0xff pattern:$0x75316420]
    %v872 = vld.sshfl [vmem:[#allocation1 + $0x10] sm:$0xff pattern:$0x75316420]
    %v875 = vpack.c.bf16 %v871, %v871
    %v876 = vpack.c.bf16 %v872, %v872
    %877 = vst [vmem:[%s537 + $0x38] sm:$0xf] %v875
    %878 = vst [vmem:[%s537 + $0x9c] sm:$0xf] %v876
    %s879 = sadd.s32 %s509, 3
    %s880 = smul.u32 %s879, 8
    %s881 = scalar_lea.vmem [#allocation3], %s880
    %v882 = vld [vmem:[%s881] sm:$0xf]
    %v883 = vld [vmem:[%s881 + $0x10] sm:$0xf]
    %v884 = vld [vmem:[%s881 + $0x20] sm:$0xf]
    %v885 = vld [vmem:[%s881 + $0x30] sm:$0xf]
    %890 = vst [vmem:[#allocation1] ss:$2 sm:$0xff] %v882
    %s891 = scalar_lea.vmem [#allocation1], 1
    %892 = vst [vmem:[%s891] ss:$2 sm:$0xff] %v883
    %s893 = scalar_lea.vmem [#allocation1], 16
    %894 = vst [vmem:[%s893] ss:$2 sm:$0xff] %v884
    %s895 = scalar_lea.vmem [#allocation1], 17
    %896 = vst [vmem:[%s895] ss:$2 sm:$0xff] %v885
    %v897 = vld.sshfl [vmem:[#allocation1] sm:$0xff pattern:$0x75316420]
    %v898 = vld.sshfl [vmem:[#allocation1 + $0x10] sm:$0xff pattern:$0x75316420]
    %v901 = vpack.c.bf16 %v897, %v897
    %v902 = vpack.c.bf16 %v898, %v898
    %903 = vst [vmem:[%s537 + $0x3c] sm:$0xf] %v901
    %904 = vst [vmem:[%s537 + $0xa0] sm:$0xf] %v902
    %s905 = sadd.s32 %s542, 3
    %s906 = smul.u32 %s905, 8
    %s907 = scalar_lea.vmem [#allocation3], %s906
    %v908 = vld [vmem:[%s907] sm:$0xf]
    %v909 = vld [vmem:[%s907 + $0x10] sm:$0xf]
    %v910 = vld [vmem:[%s907 + $0x20] sm:$0xf]
    %v911 = vld [vmem:[%s907 + $0x30] sm:$0xf]
    %916 = vst [vmem:[#allocation1] ss:$2 sm:$0xff] %v908
    %s917 = scalar_lea.vmem [#allocation1], 1
    %918 = vst [vmem:[%s917] ss:$2 sm:$0xff] %v909
    %s919 = scalar_lea.vmem [#allocation1], 16
    %920 = vst [vmem:[%s919] ss:$2 sm:$0xff] %v910
    %s921 = scalar_lea.vmem [#allocation1], 17
    %922 = vst [vmem:[%s921] ss:$2 sm:$0xff] %v911
    %v923 = vld.sshfl [vmem:[#allocation1] sm:$0xff pattern:$0x75316420]
    %v924 = vld.sshfl [vmem:[#allocation1 + $0x10] sm:$0xff pattern:$0x75316420]
    %v927 = vpack.c.bf16 %v923, %v923
    %v928 = vpack.c.bf16 %v924, %v924
    %929 = vst [vmem:[%s537 + $0x40] sm:$0xf] %v927
    %930 = vst [vmem:[%s537 + $0xa4] sm:$0xf] %v928
    %v931 = vld [vmem:[%s881 + $0x1] sm:$0xf]
    %v932 = vld [vmem:[%s881 + $0x11] sm:$0xf]
    %v933 = vld [vmem:[%s881 + $0x21] sm:$0xf]
    %v934 = vld [vmem:[%s881 + $0x31] sm:$0xf]
    %939 = vst [vmem:[#allocation1] ss:$2 sm:$0xff] %v931
    %s940 = scalar_lea.vmem [#allocation1], 1
    %941 = vst [vmem:[%s940] ss:$2 sm:$0xff] %v932
    %s942 = scalar_lea.vmem [#allocation1], 16
    %943 = vst [vmem:[%s942] ss:$2 sm:$0xff] %v933
    %s944 = scalar_lea.vmem [#allocation1], 17
    %945 = vst [vmem:[%s944] ss:$2 sm:$0xff] %v934
    %v946 = vld.sshfl [vmem:[#allocation1] sm:$0xff pattern:$0x75316420]
    %v947 = vld.sshfl [vmem:[#allocation1 + $0x10] sm:$0xff pattern:$0x75316420]
    %v950 = vpack.c.bf16 %v946, %v946
    %v951 = vpack.c.bf16 %v947, %v947
    %952 = vst [vmem:[%s537 + $0x44] sm:$0xf] %v950
    %953 = vst [vmem:[%s537 + $0xa8] sm:$0xf] %v951
    %v954 = vld [vmem:[%s907 + $0x1] sm:$0xf]
    %v955 = vld [vmem:[%s907 + $0x11] sm:$0xf]
    %v956 = vld [vmem:[%s907 + $0x21] sm:$0xf]
    %v957 = vld [vmem:[%s907 + $0x31] sm:$0xf]
    %962 = vst [vmem:[#allocation1] ss:$2 sm:$0xff] %v954
    %s963 = scalar_lea.vmem [#allocation1], 1
    %964 = vst [vmem:[%s963] ss:$2 sm:$0xff] %v955
    %s965 = scalar_lea.vmem [#allocation1], 16
    %966 = vst [vmem:[%s965] ss:$2 sm:$0xff] %v956
    %s967 = scalar_lea.vmem [#allocation1], 17
    %968 = vst [vmem:[%s967] ss:$2 sm:$0xff] %v957
    %v969 = vld.sshfl [vmem:[#allocation1] sm:$0xff pattern:$0x75316420]
    %v970 = vld.sshfl [vmem:[#allocation1 + $0x10] sm:$0xff pattern:$0x75316420]
    %v973 = vpack.c.bf16 %v969, %v969
    %v974 = vpack.c.bf16 %v970, %v970
    %975 = vst [vmem:[%s537 + $0x48] sm:$0xf] %v973
    %976 = vst [vmem:[%s537 + $0xac] sm:$0xf] %v974
    %v977 = vld [vmem:[%s881 + $0x2] sm:$0xf]
    %v978 = vld [vmem:[%s881 + $0x12] sm:$0xf]
    %v979 = vld [vmem:[%s881 + $0x22] sm:$0xf]
    %v980 = vld [vmem:[%s881 + $0x32] sm:$0xf]
    %985 = vst [vmem:[#allocation1] ss:$2 sm:$0xff] %v977
    %s986 = scalar_lea.vmem [#allocation1], 1
    %987 = vst [vmem:[%s986] ss:$2 sm:$0xff] %v978
    %s988 = scalar_lea.vmem [#allocation1], 16
    %989 = vst [vmem:[%s988] ss:$2 sm:$0xff] %v979
    %s990 = scalar_lea.vmem [#allocation1], 17
    %991 = vst [vmem:[%s990] ss:$2 sm:$0xff] %v980
    %v992 = vld.sshfl [vmem:[#allocation1] sm:$0xff pattern:$0x75316420]
    %v993 = vld.sshfl [vmem:[#allocation1 + $0x10] sm:$0xff pattern:$0x75316420]
    %v996 = vpack.c.bf16 %v992, %v992
    %v997 = vpack.c.bf16 %v993, %v993
    %998 = vst [vmem:[%s537 + $0x4c] sm:$0xf] %v996
    %999 = vst [vmem:[%s537 + $0xb0] sm:$0xf] %v997
    %s1000 = sadd.s32 %s509, 4
    %s1001 = smul.u32 %s1000, 8
    %s1002 = scalar_lea.vmem [#allocation3], %s1001
    %v1003 = vld [vmem:[%s1002] sm:$0xf]
    %v1004 = vld [vmem:[%s1002 + $0x10] sm:$0xf]
    %v1005 = vld [vmem:[%s1002 + $0x20] sm:$0xf]
    %v1006 = vld [vmem:[%s1002 + $0x30] sm:$0xf]
    %1011 = vst [vmem:[#allocation1] ss:$2 sm:$0xff] %v1003
    %s1012 = scalar_lea.vmem [#allocation1], 1
    %1013 = vst [vmem:[%s1012] ss:$2 sm:$0xff] %v1004
    %s1014 = scalar_lea.vmem [#allocation1], 16
    %1015 = vst [vmem:[%s1014] ss:$2 sm:$0xff] %v1005
    %s1016 = scalar_lea.vmem [#allocation1], 17
    %1017 = vst [vmem:[%s1016] ss:$2 sm:$0xff] %v1006
    %v1018 = vld.sshfl [vmem:[#allocation1] sm:$0xff pattern:$0x75316420]
    %v1019 = vld.sshfl [vmem:[#allocation1 + $0x10] sm:$0xff pattern:$0x75316420]
    %v1022 = vpack.c.bf16 %v1018, %v1018
    %v1023 = vpack.c.bf16 %v1019, %v1019
    %1024 = vst [vmem:[%s537 + $0x50] sm:$0xf] %v1022
    %1025 = vst [vmem:[%s537 + $0xb4] sm:$0xf] %v1023
    %s1026 = sadd.s32 %s542, 4
    %s1027 = smul.u32 %s1026, 8
    %s1028 = scalar_lea.vmem [#allocation3], %s1027
    %v1029 = vld [vmem:[%s1028] sm:$0xf]
    %v1030 = vld [vmem:[%s1028 + $0x10] sm:$0xf]
    %v1031 = vld [vmem:[%s1028 + $0x20] sm:$0xf]
    %v1032 = vld [vmem:[%s1028 + $0x30] sm:$0xf]
    %1037 = vst [vmem:[#allocation1] ss:$2 sm:$0xff] %v1029
    %s1038 = scalar_lea.vmem [#allocation1], 1
    %1039 = vst [vmem:[%s1038] ss:$2 sm:$0xff] %v1030
    %s1040 = scalar_lea.vmem [#allocation1], 16
    %1041 = vst [vmem:[%s1040] ss:$2 sm:$0xff] %v1031
    %s1042 = scalar_lea.vmem [#allocation1], 17
    %1043 = vst [vmem:[%s1042] ss:$2 sm:$0xff] %v1032
    %v1044 = vld.sshfl [vmem:[#allocation1] sm:$0xff pattern:$0x75316420]
    %v1045 = vld.sshfl [vmem:[#allocation1 + $0x10] sm:$0xff pattern:$0x75316420]
    %v1048 = vpack.c.bf16 %v1044, %v1044
    %v1049 = vpack.c.bf16 %v1045, %v1045
    %1050 = vst [vmem:[%s537 + $0x54] sm:$0xf] %v1048
    %1051 = vst [vmem:[%s537 + $0xb8] sm:$0xf] %v1049
    %v1052 = vld [vmem:[%s1002 + $0x1] sm:$0xf]
    %v1053 = vld [vmem:[%s1002 + $0x11] sm:$0xf]
    %v1054 = vld [vmem:[%s1002 + $0x21] sm:$0xf]
    %v1055 = vld [vmem:[%s1002 + $0x31] sm:$0xf]
    %1060 = vst [vmem:[#allocation1] ss:$2 sm:$0xff] %v1052
    %s1061 = scalar_lea.vmem [#allocation1], 1
    %1062 = vst [vmem:[%s1061] ss:$2 sm:$0xff] %v1053
    %s1063 = scalar_lea.vmem [#allocation1], 16
    %1064 = vst [vmem:[%s1063] ss:$2 sm:$0xff] %v1054
    %s1065 = scalar_lea.vmem [#allocation1], 17
    %1066 = vst [vmem:[%s1065] ss:$2 sm:$0xff] %v1055
    %v1067 = vld.sshfl [vmem:[#allocation1] sm:$0xff pattern:$0x75316420]
    %v1068 = vld.sshfl [vmem:[#allocation1 + $0x10] sm:$0xff pattern:$0x75316420]
    %v1071 = vpack.c.bf16 %v1067, %v1067
    %v1072 = vpack.c.bf16 %v1068, %v1068
    %1073 = vst [vmem:[%s537 + $0x58] sm:$0xf] %v1071
    %1074 = vst [vmem:[%s537 + $0xbc] sm:$0xf] %v1072
    %v1075 = vld [vmem:[%s1028 + $0x1] sm:$0xf]
    %v1076 = vld [vmem:[%s1028 + $0x11] sm:$0xf]
    %v1077 = vld [vmem:[%s1028 + $0x21] sm:$0xf]
    %v1078 = vld [vmem:[%s1028 + $0x31] sm:$0xf]
    %1083 = vst [vmem:[#allocation1] ss:$2 sm:$0xff] %v1075
    %s1084 = scalar_lea.vmem [#allocation1], 1
    %1085 = vst [vmem:[%s1084] ss:$2 sm:$0xff] %v1076
    %s1086 = scalar_lea.vmem [#allocation1], 16
    %1087 = vst [vmem:[%s1086] ss:$2 sm:$0xff] %v1077
    %s1088 = scalar_lea.vmem [#allocation1], 17
    %1089 = vst [vmem:[%s1088] ss:$2 sm:$0xff] %v1078
    %v1090 = vld.sshfl [vmem:[#allocation1] sm:$0xff pattern:$0x75316420]
    %v1091 = vld.sshfl [vmem:[#allocation1 + $0x10] sm:$0xff pattern:$0x75316420]
    %v1094 = vpack.c.bf16 %v1090, %v1090
    %v1095 = vpack.c.bf16 %v1091, %v1091
    %1096 = vst [vmem:[%s537 + $0x5c] sm:$0xf] %v1094
    %1097 = vst [vmem:[%s537 + $0xc0] sm:$0xf] %v1095
    %v1098 = vld [vmem:[%s1002 + $0x2] sm:$0xf]
    %v1099 = vld [vmem:[%s1002 + $0x12] sm:$0xf]
    %v1100 = vld [vmem:[%s1002 + $0x22] sm:$0xf]
    %v1101 = vld [vmem:[%s1002 + $0x32] sm:$0xf]
    %1106 = vst [vmem:[#allocation1] ss:$2 sm:$0xff] %v1098
    %s1107 = scalar_lea.vmem [#allocation1], 1
    %1108 = vst [vmem:[%s1107] ss:$2 sm:$0xff] %v1099
    %s1109 = scalar_lea.vmem [#allocation1], 16
    %1110 = vst [vmem:[%s1109] ss:$2 sm:$0xff] %v1100
    %s1111 = scalar_lea.vmem [#allocation1], 17
    %1112 = vst [vmem:[%s1111] ss:$2 sm:$0xff] %v1101
    %v1113 = vld.sshfl [vmem:[#allocation1] sm:$0xff pattern:$0x75316420]
    %v1114 = vld.sshfl [vmem:[#allocation1 + $0x10] sm:$0xff pattern:$0x75316420]
    %v1117 = vpack.c.bf16 %v1113, %v1113
    %v1118 = vpack.c.bf16 %v1114, %v1114
    %1119 = vst [vmem:[%s537 + $0x60] sm:$0xf] %v1117
    %1120 = vst [vmem:[%s537 + $0xc4] sm:$0xf] %v1118
  $region57: #{discriminator_forward.1} parent=0 // loop_footer
    %s507 = sadd.s32 1, %s503
  $region58: #{discriminator_forward.1} parent=0 // loop_footer_branch
    %502 = sbr.rel target = $region54
  $region59: #{discriminator_forward.1} parent=0 // loop_exit
    _
  %v1121 = vld [vmem:[#allocation4] sm:$0xff]
  %v1122 = vld [vmem:[#allocation4 + $0x8] sm:$0xff]
  %v1123 = vld [vmem:[#allocation4 + $0x10] sm:$0xff]
  %v1124 = vld [vmem:[#allocation4 + $0x18] sm:$0xff]
  %v1125 = vld [vmem:[#allocation4 + $0x20] sm:$0xff]
  %v1126 = vld [vmem:[#allocation4 + $0x28] sm:$0xff]
  %v1127 = vld [vmem:[#allocation4 + $0x30] sm:$0xff]
  %v1128 = vld [vmem:[#allocation4 + $0x38] sm:$0xff]
  %v1129 = vld [vmem:[#allocation4 + $0x40] sm:$0xff]
  %v1130 = vld [vmem:[#allocation4 + $0x48] sm:$0xff]
  %v1131 = vld [vmem:[#allocation4 + $0x50] sm:$0xff]
  %v1132 = vld [vmem:[#allocation4 + $0x58] sm:$0xff]
  %v1133 = vld [vmem:[#allocation4 + $0x60] sm:$0xf]
  %v1134 = vld [vmem:[#allocation4 + $0x64] sm:$0xff]
  %v1135 = vld [vmem:[#allocation4 + $0x6c] sm:$0xff]
  %v1136 = vld [vmem:[#allocation4 + $0x74] sm:$0xff]
  %v1137 = vld [vmem:[#allocation4 + $0x7c] sm:$0xff]
  %v1138 = vld [vmem:[#allocation4 + $0x84] sm:$0xff]
  %v1139 = vld [vmem:[#allocation4 + $0x8c] sm:$0xff]
  %v1140 = vld [vmem:[#allocation4 + $0x94] sm:$0xff]
  %v1141 = vld [vmem:[#allocation4 + $0x9c] sm:$0xff]
  %v1142 = vld [vmem:[#allocation4 + $0xa4] sm:$0xff]
  %v1143 = vld [vmem:[#allocation4 + $0xac] sm:$0xff]
  %v1144 = vld [vmem:[#allocation4 + $0xb4] sm:$0xff]
  %v1145 = vld [vmem:[#allocation4 + $0xbc] sm:$0xff]
  %v1146 = vld [vmem:[#allocation4 + $0xc4] sm:$0xf]
  %v1147 = vld [vmem:[#allocation4 + $0xc8] sm:$0xff]
  %v1148 = vld [vmem:[#allocation4 + $0xd0] sm:$0xff]
  %v1149 = vld [vmem:[#allocation4 + $0xd8] sm:$0xff]
  %v1150 = vld [vmem:[#allocation4 + $0xe0] sm:$0xff]
  %v1151 = vld [vmem:[#allocation4 + $0xe8] sm:$0xff]
  %v1152 = vld [vmem:[#allocation4 + $0xf0] sm:$0xff]
  %v1153 = vld [vmem:[#allocation4 + $0xf8] sm:$0xff]
  %v1154 = vld [vmem:[#allocation4 + $0x100] sm:$0xff]
  %v1155 = vld [vmem:[#allocation4 + $0x108] sm:$0xff]
  %v1156 = vld [vmem:[#allocation4 + $0x110] sm:$0xff]
  %v1157 = vld [vmem:[#allocation4 + $0x118] sm:$0xff]
  %v1158 = vld [vmem:[#allocation4 + $0x120] sm:$0xff]
  %v1159 = vld [vmem:[#allocation4 + $0x128] sm:$0xf]
  %v1160 = vld [vmem:[#allocation4 + $0x12c] sm:$0xff]
  %v1161 = vld [vmem:[#allocation4 + $0x134] sm:$0xff]
  %v1162 = vld [vmem:[#allocation4 + $0x13c] sm:$0xff]
  %v1163 = vld [vmem:[#allocation4 + $0x144] sm:$0xff]
  %v1164 = vld [vmem:[#allocation4 + $0x14c] sm:$0xff]
  %v1165 = vld [vmem:[#allocation4 + $0x154] sm:$0xff]
  %v1166 = vld [vmem:[#allocation4 + $0x15c] sm:$0xff]
  %v1167 = vld [vmem:[#allocation4 + $0x164] sm:$0xff]
  %v1168 = vld [vmem:[#allocation4 + $0x16c] sm:$0xff]
  %v1169 = vld [vmem:[#allocation4 + $0x174] sm:$0xff]
  %v1170 = vld [vmem:[#allocation4 + $0x17c] sm:$0xff]
  %v1171 = vld [vmem:[#allocation4 + $0x184] sm:$0xff]
  %v1172 = vld [vmem:[#allocation4 + $0x18c] sm:$0xf]
  %v1173 = vld [vmem:[%s5] sm:$0xff]
  %v1174 = vld [vmem:[%s5 + $0x8] sm:$0xff]
  %v1175 = vld [vmem:[%s5 + $0x10] sm:$0xff]
  %v1176 = vld [vmem:[%s5 + $0x18] sm:$0xff]
  %v1177 = vld [vmem:[%s5 + $0x20] sm:$0xff]
  %v1178 = vld [vmem:[%s5 + $0x28] sm:$0xff]
  %v1179 = vld [vmem:[%s5 + $0x30] sm:$0xff]
  %v1180 = vld [vmem:[%s5 + $0x38] sm:$0xff]
  %v1181 = vld [vmem:[%s5 + $0x40] sm:$0xff]
  %v1182 = vld [vmem:[%s5 + $0x48] sm:$0xff]
  %v1183 = vld [vmem:[%s5 + $0x50] sm:$0xff]
  %v1184 = vld [vmem:[%s5 + $0x58] sm:$0xff]
  %v1185 = vld [vmem:[%s5 + $0x60] sm:$0xff]
  %v1186 = vld [vmem:[%s5 + $0x68] sm:$0xff]
  %v1187 = vld [vmem:[%s5 + $0x70] sm:$0xff]
  %v1188 = vld [vmem:[%s5 + $0x78] sm:$0xff]
  %v1189 = vld [vmem:[%s5 + $0x80] sm:$0xff]
  %v1190 = vld [vmem:[%s5 + $0x88] sm:$0xff]
  %v1191 = vld [vmem:[%s5 + $0x90] sm:$0xff]
  %v1192 = vld [vmem:[%s5 + $0x98] sm:$0xff]
  %v1193 = vld [vmem:[%s5 + $0xa0] sm:$0xff]
  %v1194 = vld [vmem:[%s5 + $0xa8] sm:$0xff]
  %v1195 = vld [vmem:[%s5 + $0xb0] sm:$0xff]
  %v1196 = vld [vmem:[%s5 + $0xb8] sm:$0xff]
  %v1197 = vld [vmem:[%s5 + $0xc0] sm:$0xff]
  %v1198 = vld [vmem:[%s5 + $0xc8] sm:$0xff]
  %v1199 = vld [vmem:[%s5 + $0xd0] sm:$0xff]
  %v1200 = vld [vmem:[%s5 + $0xd8] sm:$0xff]
  %v1201 = vld [vmem:[%s5 + $0xe0] sm:$0xff]
  %v1202 = vld [vmem:[%s5 + $0xe8] sm:$0xff]
  %v1203 = vld [vmem:[%s5 + $0xf0] sm:$0xff]
  %v1204 = vld [vmem:[%s5 + $0xf8] sm:$0xff]
  %v1205 = vld [vmem:[%s5 + $0x100] sm:$0xff]
  %v1206 = vld [vmem:[%s5 + $0x108] sm:$0xff]
  %v1207 = vld [vmem:[%s5 + $0x110] sm:$0xff]
  %v1208 = vld [vmem:[%s5 + $0x118] sm:$0xff]
  %v1209 = vld [vmem:[%s5 + $0x120] sm:$0xff]
  %v1210 = vld [vmem:[%s5 + $0x128] sm:$0xff]
  %v1211 = vld [vmem:[%s5 + $0x130] sm:$0xff]
  %v1212 = vld [vmem:[%s5 + $0x138] sm:$0xff]
  %v1213 = vld [vmem:[%s5 + $0x140] sm:$0xff]
  %v1214 = vld [vmem:[%s5 + $0x148] sm:$0xff]
  %v1215 = vld [vmem:[%s5 + $0x150] sm:$0xff]
  %v1216 = vld [vmem:[%s5 + $0x158] sm:$0xff]
  %v1217 = vld [vmem:[%s5 + $0x160] sm:$0xff]
  %v1218 = vld [vmem:[%s5 + $0x168] sm:$0xff]
  %v1219 = vld [vmem:[%s5 + $0x170] sm:$0xff]
  %v1220 = vld [vmem:[%s5 + $0x178] sm:$0xff]
  %v1221 = vld [vmem:[%s5 + $0x180] sm:$0xff]
  %v1222 = vld [vmem:[%s5 + $0x188] sm:$0xff]
  %v1223 = vld [vmem:[%s5 + $0x190] sm:$0xff]
  %v1224 = vld [vmem:[%s5 + $0x198] sm:$0xff]
  %v1225 = vld [vmem:[%s5 + $0x1a0] sm:$0xff]
  %v1226 = vld [vmem:[%s5 + $0x1a8] sm:$0xff]
  %v1227 = vld [vmem:[%s5 + $0x1b0] sm:$0xff]
  %v1228 = vld [vmem:[%s5 + $0x1b8] sm:$0xff]
  %v1229 = vld [vmem:[%s5 + $0x1c0] sm:$0xff]
  %v1230 = vld [vmem:[%s5 + $0x1c8] sm:$0xff]
  %v1231 = vld [vmem:[%s5 + $0x1d0] sm:$0xff]
  %v1232 = vld [vmem:[%s5 + $0x1d8] sm:$0xff]
  %v1233 = vld [vmem:[%s5 + $0x1e0] sm:$0xff]
  %v1234 = vld [vmem:[%s5 + $0x1e8] sm:$0xff]
  %v1235 = vld [vmem:[%s5 + $0x1f0] sm:$0xff]
  %v1236 = vld [vmem:[%s5 + $0x1f8] sm:$0xff]
  %v1237 = vld [vmem:[%s5 + $0x200] sm:$0xff]
  %v1238 = vld [vmem:[%s5 + $0x208] sm:$0xff]
  %v1239 = vld [vmem:[%s5 + $0x210] sm:$0xff]
  %v1240 = vld [vmem:[%s5 + $0x218] sm:$0xff]
  %v1241 = vld [vmem:[%s5 + $0x220] sm:$0xff]
  %v1242 = vld [vmem:[%s5 + $0x228] sm:$0xff]
  %v1243 = vld [vmem:[%s5 + $0x230] sm:$0xff]
  %v1244 = vld [vmem:[%s5 + $0x238] sm:$0xff]
  %v1245 = vld [vmem:[%s5 + $0x240] sm:$0xff]
  %v1246 = vld [vmem:[%s5 + $0x248] sm:$0xff]
  %v1247 = vld [vmem:[%s5 + $0x250] sm:$0xff]
  %v1248 = vld [vmem:[%s5 + $0x258] sm:$0xff]
  %v1249 = vld [vmem:[%s5 + $0x260] sm:$0xff]
  %v1250 = vld [vmem:[%s5 + $0x268] sm:$0xff]
  %v1251 = vld [vmem:[%s5 + $0x270] sm:$0xff]
  %v1252 = vld [vmem:[%s5 + $0x278] sm:$0xff]
  %v1253 = vld [vmem:[%s5 + $0x280] sm:$0xff]
  %v1254 = vld [vmem:[%s5 + $0x288] sm:$0xff]
  %v1255 = vld [vmem:[%s5 + $0x290] sm:$0xff]
  %v1256 = vld [vmem:[%s5 + $0x298] sm:$0xff]
  %v1257 = vld [vmem:[%s5 + $0x2a0] sm:$0xff]
  %v1258 = vld [vmem:[%s5 + $0x2a8] sm:$0xff]
  %v1259 = vld [vmem:[%s5 + $0x2b0] sm:$0xff]
  %v1260 = vld [vmem:[%s5 + $0x2b8] sm:$0xff]
  %v1261 = vld [vmem:[%s5 + $0x2c0] sm:$0xff]
  %v1262 = vld [vmem:[%s5 + $0x2c8] sm:$0xff]
  %v1263 = vld [vmem:[%s5 + $0x2d0] sm:$0xff]
  %v1264 = vld [vmem:[%s5 + $0x2d8] sm:$0xff]
  %v1265 = vld [vmem:[%s5 + $0x2e0] sm:$0xff]
  %v1266 = vld [vmem:[%s5 + $0x2e8] sm:$0xff]
  %v1267 = vld [vmem:[%s5 + $0x2f0] sm:$0xff]
  %v1268 = vld [vmem:[%s5 + $0x2f8] sm:$0xff]
  %v1269 = vld [vmem:[%s5 + $0x300] sm:$0xff]
  %v1270 = vld [vmem:[%s5 + $0x308] sm:$0xff]
  %v1271 = vld [vmem:[%s5 + $0x310] sm:$0xff]
  %v1272 = vld [vmem:[%s5 + $0x318] sm:$0xff]
  %v1273 = vld [vmem:[%s5 + $0x320] sm:$0xff]
  %v1274 = vld [vmem:[%s5 + $0x328] sm:$0xff]
  %v1275 = vld [vmem:[%s5 + $0x330] sm:$0xff]
  %v1276 = vld [vmem:[%s5 + $0x338] sm:$0xff]
  %v1277 = vld [vmem:[%s5 + $0x340] sm:$0xff]
  %v1278 = vld [vmem:[%s5 + $0x348] sm:$0xff]
  %v1279 = vld [vmem:[%s5 + $0x350] sm:$0xff]
  %v1280 = vld [vmem:[%s5 + $0x358] sm:$0xff]
  %v1281 = vld [vmem:[%s5 + $0x360] sm:$0xff]
  %v1282 = vld [vmem:[%s5 + $0x368] sm:$0xff]
  %v1283 = vld [vmem:[%s5 + $0x370] sm:$0xff]
  %v1284 = vld [vmem:[%s5 + $0x378] sm:$0xff]
  %v1285 = vld [vmem:[%s5 + $0x380] sm:$0xff]
  %v1286 = vld [vmem:[%s5 + $0x388] sm:$0xff]
  %v1287 = vld [vmem:[%s5 + $0x390] sm:$0xff]
  %v1288 = vld [vmem:[%s5 + $0x398] sm:$0xff]
  %v1289 = vld [vmem:[%s5 + $0x3a0] sm:$0xff]
  %v1290 = vld [vmem:[%s5 + $0x3a8] sm:$0xff]
  %v1291 = vld [vmem:[%s5 + $0x3b0] sm:$0xff]
  %v1292 = vld [vmem:[%s5 + $0x3b8] sm:$0xff]
  %v1293 = vld [vmem:[%s5 + $0x3c0] sm:$0xff]
  %v1294 = vld [vmem:[%s5 + $0x3c8] sm:$0xff]
  %v1295 = vld [vmem:[%s5 + $0x3d0] sm:$0xff]
  %v1296 = vld [vmem:[%s5 + $0x3d8] sm:$0xff]
  %v1297 = vld [vmem:[%s5 + $0x3e0] sm:$0xff]
  %v1298 = vld [vmem:[%s5 + $0x3e8] sm:$0xff]
  %v1299 = vld [vmem:[%s5 + $0x3f0] sm:$0xff]
  %v1300 = vld [vmem:[%s5 + $0x3f8] sm:$0xff]
  %v1301 = vld [vmem:[%s5 + $0x400] sm:$0xff]
  %v1302 = vld [vmem:[%s5 + $0x408] sm:$0xff]
  %v1303 = vld [vmem:[%s5 + $0x410] sm:$0xff]
  %v1304 = vld [vmem:[%s5 + $0x418] sm:$0xff]
  %v1305 = vld [vmem:[%s5 + $0x420] sm:$0xff]
  %v1306 = vld [vmem:[%s5 + $0x428] sm:$0xff]
  %v1307 = vld [vmem:[%s5 + $0x430] sm:$0xff]
  %v1308 = vld [vmem:[%s5 + $0x438] sm:$0xff]
  %v1309 = vld [vmem:[%s5 + $0x440] sm:$0xff]
  %v1310 = vld [vmem:[%s5 + $0x448] sm:$0xff]
  %v1311 = vld [vmem:[%s5 + $0x450] sm:$0xff]
  %v1312 = vld [vmem:[%s5 + $0x458] sm:$0xff]
  %v1313 = vld [vmem:[%s5 + $0x460] sm:$0xff]
  %v1314 = vld [vmem:[%s5 + $0x468] sm:$0xff]
  %v1315 = vld [vmem:[%s5 + $0x470] sm:$0xff]
  %v1316 = vld [vmem:[%s5 + $0x478] sm:$0xff]
  %v1317 = vld [vmem:[%s5 + $0x480] sm:$0xff]
  %v1318 = vld [vmem:[%s5 + $0x488] sm:$0xff]
  %v1319 = vld [vmem:[%s5 + $0x490] sm:$0xff]
  %v1320 = vld [vmem:[%s5 + $0x498] sm:$0xff]
  %v1321 = vld [vmem:[%s5 + $0x4a0] sm:$0xff]
  %v1322 = vld [vmem:[%s5 + $0x4a8] sm:$0xff]
  %v1323 = vld [vmem:[%s5 + $0x4b0] sm:$0xff]
  %v1324 = vld [vmem:[%s5 + $0x4b8] sm:$0xff]
  %v1325 = vld [vmem:[%s5 + $0x4c0] sm:$0xff]
  %v1326 = vld [vmem:[%s5 + $0x4c8] sm:$0xff]
  %v1327 = vld [vmem:[%s5 + $0x4d0] sm:$0xff]
  %v1328 = vld [vmem:[%s5 + $0x4d8] sm:$0xff]
  %v1329 = vld [vmem:[%s5 + $0x4e0] sm:$0xff]
  %v1330 = vld [vmem:[%s5 + $0x4e8] sm:$0xff]
  %v1331 = vld [vmem:[%s5 + $0x4f0] sm:$0xff]
  %v1332 = vld [vmem:[%s5 + $0x4f8] sm:$0xff]
  %v1333 = vld [vmem:[%s5 + $0x500] sm:$0xff]
  %v1334 = vld [vmem:[%s5 + $0x508] sm:$0xff]
  %v1335 = vld [vmem:[%s5 + $0x510] sm:$0xff]
  %v1336 = vld [vmem:[%s5 + $0x518] sm:$0xff]
  %v1337 = vld [vmem:[%s5 + $0x520] sm:$0xff]
  %v1338 = vld [vmem:[%s5 + $0x528] sm:$0xff]
  %v1339 = vld [vmem:[%s5 + $0x530] sm:$0xff]
  %v1340 = vld [vmem:[%s5 + $0x538] sm:$0xff]
  %v1341 = vld [vmem:[%s5 + $0x540] sm:$0xff]
  %v1342 = vld [vmem:[%s5 + $0x548] sm:$0xff]
  %v1343 = vld [vmem:[%s5 + $0x550] sm:$0xff]
  %v1344 = vld [vmem:[%s5 + $0x558] sm:$0xff]
  %v1345 = vld [vmem:[%s5 + $0x560] sm:$0xff]
  %v1346 = vld [vmem:[%s5 + $0x568] sm:$0xff]
  %v1347 = vld [vmem:[%s5 + $0x570] sm:$0xff]
  %v1348 = vld [vmem:[%s5 + $0x578] sm:$0xff]
  %v1349 = vld [vmem:[%s5 + $0x580] sm:$0xff]
  %v1350 = vld [vmem:[%s5 + $0x588] sm:$0xff]
  %v1351 = vld [vmem:[%s5 + $0x590] sm:$0xff]
  %v1352 = vld [vmem:[%s5 + $0x598] sm:$0xff]
  %v1353 = vld [vmem:[%s5 + $0x5a0] sm:$0xff]
  %v1354 = vld [vmem:[%s5 + $0x5a8] sm:$0xff]
  %v1355 = vld [vmem:[%s5 + $0x5b0] sm:$0xff]
  %v1356 = vld [vmem:[%s5 + $0x5b8] sm:$0xff]
  %v1357 = vld [vmem:[%s5 + $0x5c0] sm:$0xff]
  %v1358 = vld [vmem:[%s5 + $0x5c8] sm:$0xff]
  %v1359 = vld [vmem:[%s5 + $0x5d0] sm:$0xff]
  %v1360 = vld [vmem:[%s5 + $0x5d8] sm:$0xff]
  %v1361 = vld [vmem:[%s5 + $0x5e0] sm:$0xff]
  %v1362 = vld [vmem:[%s5 + $0x5e8] sm:$0xff]
  %v1363 = vld [vmem:[%s5 + $0x5f0] sm:$0xff]
  %v1364 = vld [vmem:[%s5 + $0x5f8] sm:$0xff]
  %v1365 = vld [vmem:[%s5 + $0x600] sm:$0xff]
  %v1366 = vld [vmem:[%s5 + $0x608] sm:$0xff]
  %v1367 = vld [vmem:[%s5 + $0x610] sm:$0xff]
  %v1368 = vld [vmem:[%s5 + $0x618] sm:$0xff]
  %v1369 = vld [vmem:[%s5 + $0x620] sm:$0xff]
  %v1370 = vld [vmem:[%s5 + $0x628] sm:$0xff]
  %v1371 = vld [vmem:[%s5 + $0x630] sm:$0xff]
  %v1372 = vld [vmem:[%s5 + $0x638] sm:$0xff]
  %v1373 = vld [vmem:[%s5 + $0x640] sm:$0xff]
  %v1374 = vld [vmem:[%s5 + $0x648] sm:$0xff]
  %v1375 = vld [vmem:[%s5 + $0x650] sm:$0xff]
  %v1376 = vld [vmem:[%s5 + $0x658] sm:$0xff]
  %v1377 = vld [vmem:[%s5 + $0x660] sm:$0xff]
  %v1378 = vld [vmem:[%s5 + $0x668] sm:$0xff]
  %v1379 = vld [vmem:[%s5 + $0x670] sm:$0xff]
  %v1380 = vld [vmem:[%s5 + $0x678] sm:$0xff]
  %v1381 = vld [vmem:[%s5 + $0x680] sm:$0xff]
  %v1382 = vld [vmem:[%s5 + $0x688] sm:$0xff]
  %v1383 = vld [vmem:[%s5 + $0x690] sm:$0xff]
  %v1384 = vld [vmem:[%s5 + $0x698] sm:$0xff]
  %v1385 = vld [vmem:[%s5 + $0x6a0] sm:$0xff]
  %v1386 = vld [vmem:[%s5 + $0x6a8] sm:$0xff]
  %v1387 = vld [vmem:[%s5 + $0x6b0] sm:$0xff]
  %v1388 = vld [vmem:[%s5 + $0x6b8] sm:$0xff]
  %v1389 = vld [vmem:[%s5 + $0x6c0] sm:$0xff]
  %v1390 = vld [vmem:[%s5 + $0x6c8] sm:$0xff]
  %v1391 = vld [vmem:[%s5 + $0x6d0] sm:$0xff]
  %v1392 = vld [vmem:[%s5 + $0x6d8] sm:$0xff]
  %v1393 = vld [vmem:[%s5 + $0x6e0] sm:$0xff]
  %v1394 = vld [vmem:[%s5 + $0x6e8] sm:$0xff]
  %v1395 = vld [vmem:[%s5 + $0x6f0] sm:$0xff]
  %v1396 = vld [vmem:[%s5 + $0x6f8] sm:$0xff]
  %v1397 = vld [vmem:[%s5 + $0x700] sm:$0xff]
  %v1398 = vld [vmem:[%s5 + $0x708] sm:$0xff]
  %v1399 = vld [vmem:[%s5 + $0x710] sm:$0xff]
  %v1400 = vld [vmem:[%s5 + $0x718] sm:$0xff]
  %v1401 = vld [vmem:[%s5 + $0x720] sm:$0xff]
  %v1402 = vld [vmem:[%s5 + $0x728] sm:$0xff]
  %v1403 = vld [vmem:[%s5 + $0x730] sm:$0xff]
  %v1404 = vld [vmem:[%s5 + $0x738] sm:$0xff]
  %v1405 = vld [vmem:[%s5 + $0x740] sm:$0xff]
  %v1406 = vld [vmem:[%s5 + $0x748] sm:$0xff]
  %v1407 = vld [vmem:[%s5 + $0x750] sm:$0xff]
  %v1408 = vld [vmem:[%s5 + $0x758] sm:$0xff]
  %v1409 = vld [vmem:[%s5 + $0x760] sm:$0xff]
  %v1410 = vld [vmem:[%s5 + $0x768] sm:$0xff]
  %v1411 = vld [vmem:[%s5 + $0x770] sm:$0xff]
  %v1412 = vld [vmem:[%s5 + $0x778] sm:$0xff]
  %v1413 = vld [vmem:[%s5 + $0x780] sm:$0xff]
  %v1414 = vld [vmem:[%s5 + $0x788] sm:$0xff]
  %v1415 = vld [vmem:[%s5 + $0x790] sm:$0xff]
  %v1416 = vld [vmem:[%s5 + $0x798] sm:$0xff]
  %v1417 = vld [vmem:[%s5 + $0x7a0] sm:$0xff]
  %v1418 = vld [vmem:[%s5 + $0x7a8] sm:$0xff]
  %v1419 = vld [vmem:[%s5 + $0x7b0] sm:$0xff]
  %v1420 = vld [vmem:[%s5 + $0x7b8] sm:$0xff]
  %v1421 = vld [vmem:[%s5 + $0x7c0] sm:$0xff]
  %v1422 = vld [vmem:[%s5 + $0x7c8] sm:$0xff]
  %v1423 = vld [vmem:[%s5 + $0x7d0] sm:$0xff]
  %v1424 = vld [vmem:[%s5 + $0x7d8] sm:$0xff]
  %v1425 = vld [vmem:[%s5 + $0x7e0] sm:$0xff]
  %v1426 = vld [vmem:[%s5 + $0x7e8] sm:$0xff]
  %v1427 = vld [vmem:[%s5 + $0x7f0] sm:$0xff]
  %v1428 = vld [vmem:[%s5 + $0x7f8] sm:$0xff]
  %v1429 = vld [vmem:[%s5 + $0x800] sm:$0xff]
  %v1430 = vld [vmem:[%s5 + $0x808] sm:$0xff]
  %v1431 = vld [vmem:[%s5 + $0x810] sm:$0xff]
  %v1432 = vld [vmem:[%s5 + $0x818] sm:$0xff]
  %v1433 = vld [vmem:[%s5 + $0x820] sm:$0xff]
  %v1434 = vld [vmem:[%s5 + $0x828] sm:$0xff]
  %v1435 = vld [vmem:[%s5 + $0x830] sm:$0xff]
  %v1436 = vld [vmem:[%s5 + $0x838] sm:$0xff]
  %v1437 = vld [vmem:[%s5 + $0x840] sm:$0xff]
  %v1438 = vld [vmem:[%s5 + $0x848] sm:$0xff]
  %v1439 = vld [vmem:[%s5 + $0x850] sm:$0xff]
  %v1440 = vld [vmem:[%s5 + $0x858] sm:$0xff]
  %v1441 = vld [vmem:[%s5 + $0x860] sm:$0xff]
  %v1442 = vld [vmem:[%s5 + $0x868] sm:$0xff]
  %v1443 = vld [vmem:[%s5 + $0x870] sm:$0xff]
  %v1444 = vld [vmem:[%s5 + $0x878] sm:$0xff]
  %v1445 = vld [vmem:[%s5 + $0x880] sm:$0xff]
  %v1446 = vld [vmem:[%s5 + $0x888] sm:$0xff]
  %v1447 = vld [vmem:[%s5 + $0x890] sm:$0xff]
  %v1448 = vld [vmem:[%s5 + $0x898] sm:$0xff]
  %v1449 = vld [vmem:[%s5 + $0x8a0] sm:$0xff]
  %v1450 = vld [vmem:[%s5 + $0x8a8] sm:$0xff]
  %v1451 = vld [vmem:[%s5 + $0x8b0] sm:$0xff]
  %v1452 = vld [vmem:[%s5 + $0x8b8] sm:$0xff]
  %v1453 = vld [vmem:[%s5 + $0x8c0] sm:$0xff]
  %v1454 = vld [vmem:[%s5 + $0x8c8] sm:$0xff]
  %v1455 = vld [vmem:[%s5 + $0x8d0] sm:$0xff]
  %v1456 = vld [vmem:[%s5 + $0x8d8] sm:$0xff]
  %v1457 = vld [vmem:[%s5 + $0x8e0] sm:$0xff]
  %v1458 = vld [vmem:[%s5 + $0x8e8] sm:$0xff]
  %v1459 = vld [vmem:[%s5 + $0x8f0] sm:$0xff]
  %v1460 = vld [vmem:[%s5 + $0x8f8] sm:$0xff]
  %v1461 = vld [vmem:[%s5 + $0x900] sm:$0xff]
  %v1462 = vld [vmem:[%s5 + $0x908] sm:$0xff]
  %v1463 = vld [vmem:[%s5 + $0x910] sm:$0xff]
  %v1464 = vld [vmem:[%s5 + $0x918] sm:$0xff]
  %v1465 = vld [vmem:[%s5 + $0x920] sm:$0xff]
  %v1466 = vld [vmem:[%s5 + $0x928] sm:$0xff]
  %v1467 = vld [vmem:[%s5 + $0x930] sm:$0xff]
  %v1468 = vld [vmem:[%s5 + $0x938] sm:$0xff]
  %v1469 = vld [vmem:[%s5 + $0x940] sm:$0xff]
  %v1470 = vld [vmem:[%s5 + $0x948] sm:$0xff]
  %v1471 = vld [vmem:[%s5 + $0x950] sm:$0xff]
  %v1472 = vld [vmem:[%s5 + $0x958] sm:$0xff]
  %v1473 = vld [vmem:[%s5 + $0x960] sm:$0xff]
  %v1474 = vld [vmem:[%s5 + $0x968] sm:$0xff]
  %v1475 = vld [vmem:[%s5 + $0x970] sm:$0xff]
  %v1476 = vld [vmem:[%s5 + $0x978] sm:$0xff]
  %v1477 = vld [vmem:[%s5 + $0x980] sm:$0xff]
  %v1478 = vld [vmem:[%s5 + $0x988] sm:$0xff]
  %v1479 = vld [vmem:[%s5 + $0x990] sm:$0xff]
  %v1480 = vld [vmem:[%s5 + $0x998] sm:$0xff]
  %v1481 = vld [vmem:[%s5 + $0x9a0] sm:$0xff]
  %v1482 = vld [vmem:[%s5 + $0x9a8] sm:$0xff]
  %v1483 = vld [vmem:[%s5 + $0x9b0] sm:$0xff]
  %v1484 = vld [vmem:[%s5 + $0x9b8] sm:$0xff]
  %v1485 = vld [vmem:[%s5 + $0x9c0] sm:$0xff]
  %v1486 = vld [vmem:[%s5 + $0x9c8] sm:$0xff]
  %v1487 = vld [vmem:[%s5 + $0x9d0] sm:$0xff]
  %v1488 = vld [vmem:[%s5 + $0x9d8] sm:$0xff]
  %v1489 = vld [vmem:[%s5 + $0x9e0] sm:$0xff]
  %v1490 = vld [vmem:[%s5 + $0x9e8] sm:$0xff]
  %v1491 = vld [vmem:[%s5 + $0x9f0] sm:$0xff]
  %v1492 = vld [vmem:[%s5 + $0x9f8] sm:$0xff]
  %v1493 = vld [vmem:[%s5 + $0xa00] sm:$0xff]
  %v1494 = vld [vmem:[%s5 + $0xa08] sm:$0xff]
  %v1495 = vld [vmem:[%s5 + $0xa10] sm:$0xff]
  %v1496 = vld [vmem:[%s5 + $0xa18] sm:$0xff]
  %v1497 = vld [vmem:[%s5 + $0xa20] sm:$0xff]
  %v1498 = vld [vmem:[%s5 + $0xa28] sm:$0xff]
  %v1499 = vld [vmem:[%s5 + $0xa30] sm:$0xff]
  %v1500 = vld [vmem:[%s5 + $0xa38] sm:$0xff]
  %v1501 = vld [vmem:[%s5 + $0xa40] sm:$0xff]
  %v1502 = vld [vmem:[%s5 + $0xa48] sm:$0xff]
  %v1503 = vld [vmem:[%s5 + $0xa50] sm:$0xff]
  %v1504 = vld [vmem:[%s5 + $0xa58] sm:$0xff]
  %v1505 = vld [vmem:[%s5 + $0xa60] sm:$0xff]
  %v1506 = vld [vmem:[%s5 + $0xa68] sm:$0xff]
  %v1507 = vld [vmem:[%s5 + $0xa70] sm:$0xff]
  %v1508 = vld [vmem:[%s5 + $0xa78] sm:$0xff]
  %v1509 = vld [vmem:[%s5 + $0xa80] sm:$0xff]
  %v1510 = vld [vmem:[%s5 + $0xa88] sm:$0xff]
  %v1511 = vld [vmem:[%s5 + $0xa90] sm:$0xff]
  %v1512 = vld [vmem:[%s5 + $0xa98] sm:$0xff]
  %v1513 = vld [vmem:[%s5 + $0xaa0] sm:$0xff]
  %v1514 = vld [vmem:[%s5 + $0xaa8] sm:$0xff]
  %v1515 = vld [vmem:[%s5 + $0xab0] sm:$0xff]
  %v1516 = vld [vmem:[%s5 + $0xab8] sm:$0xff]
  %v1517 = vld [vmem:[%s5 + $0xac0] sm:$0xff]
  %v1518 = vld [vmem:[%s5 + $0xac8] sm:$0xff]
  %v1519 = vld [vmem:[%s5 + $0xad0] sm:$0xff]
  %v1520 = vld [vmem:[%s5 + $0xad8] sm:$0xff]
  %v1521 = vld [vmem:[%s5 + $0xae0] sm:$0xff]
  %v1522 = vld [vmem:[%s5 + $0xae8] sm:$0xff]
  %v1523 = vld [vmem:[%s5 + $0xaf0] sm:$0xff]
  %v1524 = vld [vmem:[%s5 + $0xaf8] sm:$0xff]
  %v1525 = vld [vmem:[%s5 + $0xb00] sm:$0xff]
  %v1526 = vld [vmem:[%s5 + $0xb08] sm:$0xff]
  %v1527 = vld [vmem:[%s5 + $0xb10] sm:$0xff]
  %v1528 = vld [vmem:[%s5 + $0xb18] sm:$0xff]
  %v1529 = vld [vmem:[%s5 + $0xb20] sm:$0xff]
  %v1530 = vld [vmem:[%s5 + $0xb28] sm:$0xff]
  %v1531 = vld [vmem:[%s5 + $0xb30] sm:$0xff]
  %v1532 = vld [vmem:[%s5 + $0xb38] sm:$0xff]
  %v1533 = vld [vmem:[%s5 + $0xb40] sm:$0xff]
  %v1534 = vld [vmem:[%s5 + $0xb48] sm:$0xff]
  %v1535 = vld [vmem:[%s5 + $0xb50] sm:$0xff]
  %v1536 = vld [vmem:[%s5 + $0xb58] sm:$0xff]
  %v1537 = vld [vmem:[%s5 + $0xb60] sm:$0xff]
  %v1538 = vld [vmem:[%s5 + $0xb68] sm:$0xff]
  %v1539 = vld [vmem:[%s5 + $0xb70] sm:$0xff]
  %v1540 = vld [vmem:[%s5 + $0xb78] sm:$0xff]
  %v1541 = vld [vmem:[%s5 + $0xb80] sm:$0xff]
  %v1542 = vld [vmem:[%s5 + $0xb88] sm:$0xff]
  %v1543 = vld [vmem:[%s5 + $0xb90] sm:$0xff]
  %v1544 = vld [vmem:[%s5 + $0xb98] sm:$0xff]
  %v1545 = vld [vmem:[%s5 + $0xba0] sm:$0xff]
  %v1546 = vld [vmem:[%s5 + $0xba8] sm:$0xff]
  %v1547 = vld [vmem:[%s5 + $0xbb0] sm:$0xff]
  %v1548 = vld [vmem:[%s5 + $0xbb8] sm:$0xff]
  %v1549 = vld [vmem:[%s5 + $0xbc0] sm:$0xff]
  %v1550 = vld [vmem:[%s5 + $0xbc8] sm:$0xff]
  %v1551 = vld [vmem:[%s5 + $0xbd0] sm:$0xff]
  %v1552 = vld [vmem:[%s5 + $0xbd8] sm:$0xff]
  %v1553 = vld [vmem:[%s5 + $0xbe0] sm:$0xff]
  %v1554 = vld [vmem:[%s5 + $0xbe8] sm:$0xff]
  %v1555 = vld [vmem:[%s5 + $0xbf0] sm:$0xff]
  %v1556 = vld [vmem:[%s5 + $0xbf8] sm:$0xff]
  %v1557 = vld [vmem:[%s5 + $0xc00] sm:$0xff]
  %v1558 = vld [vmem:[%s5 + $0xc08] sm:$0xff]
  %v1559 = vld [vmem:[%s5 + $0xc10] sm:$0xff]
  %v1560 = vld [vmem:[%s5 + $0xc18] sm:$0xff]
  %v1561 = vld [vmem:[%s5 + $0xc20] sm:$0xff]
  %v1562 = vld [vmem:[%s5 + $0xc28] sm:$0xff]
  %v1563 = vld [vmem:[%s5 + $0xc30] sm:$0xff]
  %v1564 = vld [vmem:[%s5 + $0xc38] sm:$0xff]
  %v1565 = vld [vmem:[%s5 + $0xc40] sm:$0xff]
  %v1566 = vld [vmem:[%s5 + $0xc48] sm:$0xff]
  %v1567 = vld [vmem:[%s5 + $0xc50] sm:$0xff]
  %v1568 = vld [vmem:[%s5 + $0xc58] sm:$0xff]
  %v1569 = vld [vmem:[%s5 + $0xc60] sm:$0xff]
  %v1570 = vld [vmem:[%s5 + $0xc68] sm:$0xff]
  %v1571 = vld [vmem:[%s5 + $0xc70] sm:$0xff]
  %v1572 = vld [vmem:[%s5 + $0xc78] sm:$0xff]
  %v1573 = vld [vmem:[%s6] sm:$0x3]
  %v1575 = vperm.slane %v1573, 0
  %v1576 = vperm.slane %v1573, 1
  %v1631 = vunpack.c.l.b16 %v1121
  %v1632 = vunpack.c.h.b16 %v1121
  %v1633 = vunpack.c.l.b16 %v1122
  %v1634 = vunpack.c.h.b16 %v1122
  %v1635 = vunpack.c.l.b16 %v1123
  %v1636 = vunpack.c.h.b16 %v1123
  %v1637 = vunpack.c.l.b16 %v1124
  %v1638 = vunpack.c.h.b16 %v1124
  %v1639 = vunpack.c.l.b16 %v1125
  %v1640 = vunpack.c.h.b16 %v1125
  %v1641 = vunpack.c.l.b16 %v1126
  %v1642 = vunpack.c.h.b16 %v1126
  %v1643 = vunpack.c.l.b16 %v1127
  %v1644 = vunpack.c.h.b16 %v1127
  %v1645 = vunpack.c.l.b16 %v1128
  %v1646 = vunpack.c.h.b16 %v1128
  %v1647 = vunpack.c.l.b16 %v1129
  %v1648 = vunpack.c.h.b16 %v1129
  %v1649 = vunpack.c.l.b16 %v1130
  %v1650 = vunpack.c.h.b16 %v1130
  %v1651 = vunpack.c.l.b16 %v1131
  %v1652 = vunpack.c.h.b16 %v1131
  %v1653 = vunpack.c.l.b16 %v1132
  %v1654 = vunpack.c.h.b16 %v1132
  %v1655 = vunpack.c.l.b16 %v1133
  %v1656 = vunpack.c.l.b16 %v1134
  %v1657 = vunpack.c.h.b16 %v1134
  %v1658 = vunpack.c.l.b16 %v1135
  %v1659 = vunpack.c.h.b16 %v1135
  %v1660 = vunpack.c.l.b16 %v1136
  %v1661 = vunpack.c.h.b16 %v1136
  %v1662 = vunpack.c.l.b16 %v1137
  %v1663 = vunpack.c.h.b16 %v1137
  %v1664 = vunpack.c.l.b16 %v1138
  %v1665 = vunpack.c.h.b16 %v1138
  %v1666 = vunpack.c.l.b16 %v1139
  %v1667 = vunpack.c.h.b16 %v1139
  %v1668 = vunpack.c.l.b16 %v1140
  %v1669 = vunpack.c.h.b16 %v1140
  %v1670 = vunpack.c.l.b16 %v1141
  %v1671 = vunpack.c.h.b16 %v1141
  %v1672 = vunpack.c.l.b16 %v1142
  %v1673 = vunpack.c.h.b16 %v1142
  %v1674 = vunpack.c.l.b16 %v1143
  %v1675 = vunpack.c.h.b16 %v1143
  %v1676 = vunpack.c.l.b16 %v1144
  %v1677 = vunpack.c.h.b16 %v1144
  %v1678 = vunpack.c.l.b16 %v1145
  %v1679 = vunpack.c.h.b16 %v1145
  %v1680 = vunpack.c.l.b16 %v1146
  %v1681 = vunpack.c.l.b16 %v1147
  %v1682 = vunpack.c.h.b16 %v1147
  %v1683 = vunpack.c.l.b16 %v1148
  %v1684 = vunpack.c.h.b16 %v1148
  %v1685 = vunpack.c.l.b16 %v1149
  %v1686 = vunpack.c.h.b16 %v1149
  %v1687 = vunpack.c.l.b16 %v1150
  %v1688 = vunpack.c.h.b16 %v1150
  %v1689 = vunpack.c.l.b16 %v1151
  %v1690 = vunpack.c.h.b16 %v1151
  %v1691 = vunpack.c.l.b16 %v1152
  %v1692 = vunpack.c.h.b16 %v1152
  %v1693 = vunpack.c.l.b16 %v1153
  %v1694 = vunpack.c.h.b16 %v1153
  %v1695 = vunpack.c.l.b16 %v1154
  %v1696 = vunpack.c.h.b16 %v1154
  %v1697 = vunpack.c.l.b16 %v1155
  %v1698 = vunpack.c.h.b16 %v1155
  %v1699 = vunpack.c.l.b16 %v1156
  %v1700 = vunpack.c.h.b16 %v1156
  %v1701 = vunpack.c.l.b16 %v1157
  %v1702 = vunpack.c.h.b16 %v1157
  %v1703 = vunpack.c.l.b16 %v1158
  %v1704 = vunpack.c.h.b16 %v1158
  %v1705 = vunpack.c.l.b16 %v1159
  %v1706 = vunpack.c.l.b16 %v1160
  %v1707 = vunpack.c.h.b16 %v1160
  %v1708 = vunpack.c.l.b16 %v1161
  %v1709 = vunpack.c.h.b16 %v1161
  %v1710 = vunpack.c.l.b16 %v1162
  %v1711 = vunpack.c.h.b16 %v1162
  %v1712 = vunpack.c.l.b16 %v1163
  %v1713 = vunpack.c.h.b16 %v1163
  %v1714 = vunpack.c.l.b16 %v1164
  %v1715 = vunpack.c.h.b16 %v1164
  %v1716 = vunpack.c.l.b16 %v1165
  %v1717 = vunpack.c.h.b16 %v1165
  %v1718 = vunpack.c.l.b16 %v1166
  %v1719 = vunpack.c.h.b16 %v1166
  %v1720 = vunpack.c.l.b16 %v1167
  %v1721 = vunpack.c.h.b16 %v1167
  %v1722 = vunpack.c.l.b16 %v1168
  %v1723 = vunpack.c.h.b16 %v1168
  %v1724 = vunpack.c.l.b16 %v1169
  %v1725 = vunpack.c.h.b16 %v1169
  %v1726 = vunpack.c.l.b16 %v1170
  %v1727 = vunpack.c.h.b16 %v1170
  %v1728 = vunpack.c.l.b16 %v1171
  %v1729 = vunpack.c.h.b16 %v1171
  %v1730 = vunpack.c.l.b16 %v1172
  %v1731 = vpack.c.b16 %v1656, %v1631
  %v1732 = vpack.c.b16 %v1657, %v1632
  %v1733 = vpack.c.b16 %v1658, %v1633
  %v1734 = vpack.c.b16 %v1659, %v1634
  %v1735 = vpack.c.b16 %v1660, %v1635
  %v1736 = vpack.c.b16 %v1661, %v1636
  %v1737 = vpack.c.b16 %v1662, %v1637
  %v1738 = vpack.c.b16 %v1663, %v1638
  %v1739 = vpack.c.b16 %v1664, %v1639
  %v1740 = vpack.c.b16 %v1665, %v1640
  %v1741 = vpack.c.b16 %v1666, %v1641
  %v1742 = vpack.c.b16 %v1667, %v1642
  %v1743 = vpack.c.b16 %v1668, %v1643
  %v1744 = vpack.c.b16 %v1669, %v1644
  %v1745 = vpack.c.b16 %v1670, %v1645
  %v1746 = vpack.c.b16 %v1671, %v1646
  %v1747 = vpack.c.b16 %v1672, %v1647
  %v1748 = vpack.c.b16 %v1673, %v1648
  %v1749 = vpack.c.b16 %v1674, %v1649
  %v1750 = vpack.c.b16 %v1675, %v1650
  %v1751 = vpack.c.b16 %v1676, %v1651
  %v1752 = vpack.c.b16 %v1677, %v1652
  %v1753 = vpack.c.b16 %v1678, %v1653
  %v1754 = vpack.c.b16 %v1679, %v1654
  %v1755 = vpack.c.b16 %v1680, %v1655
  %v1756 = vpack.c.b16 %v1706, %v1681
  %v1757 = vpack.c.b16 %v1707, %v1682
  %v1758 = vpack.c.b16 %v1708, %v1683
  %v1759 = vpack.c.b16 %v1709, %v1684
  %v1760 = vpack.c.b16 %v1710, %v1685
  %v1761 = vpack.c.b16 %v1711, %v1686
  %v1762 = vpack.c.b16 %v1712, %v1687
  %v1763 = vpack.c.b16 %v1713, %v1688
  %v1764 = vpack.c.b16 %v1714, %v1689
  %v1765 = vpack.c.b16 %v1715, %v1690
  %v1766 = vpack.c.b16 %v1716, %v1691
  %v1767 = vpack.c.b16 %v1717, %v1692
  %v1768 = vpack.c.b16 %v1718, %v1693
  %v1769 = vpack.c.b16 %v1719, %v1694
  %v1770 = vpack.c.b16 %v1720, %v1695
  %v1771 = vpack.c.b16 %v1721, %v1696
  %v1772 = vpack.c.b16 %v1722, %v1697
  %v1773 = vpack.c.b16 %v1723, %v1698
  %v1774 = vpack.c.b16 %v1724, %v1699
  %v1775 = vpack.c.b16 %v1725, %v1700
  %v1776 = vpack.c.b16 %v1726, %v1701
  %v1777 = vpack.c.b16 %v1727, %v1702
  %v1778 = vpack.c.b16 %v1728, %v1703
  %v1779 = vpack.c.b16 %v1729, %v1704
  %v1780 = vpack.c.b16 %v1730, %v1705
  %v2231 = vunpack.c.l.b16 %v1173
  %v2232 = vunpack.c.h.b16 %v1173
  %v2233 = vunpack.c.l.b16 %v1174
  %v2234 = vunpack.c.h.b16 %v1174
  %v2235 = vunpack.c.l.b16 %v1175
  %v2236 = vunpack.c.h.b16 %v1175
  %v2237 = vunpack.c.l.b16 %v1176
  %v2238 = vunpack.c.h.b16 %v1176
  %v2239 = vunpack.c.l.b16 %v1177
  %v2240 = vunpack.c.h.b16 %v1177
  %v2241 = vunpack.c.l.b16 %v1178
  %v2242 = vunpack.c.h.b16 %v1178
  %v2243 = vunpack.c.l.b16 %v1179
  %v2244 = vunpack.c.h.b16 %v1179
  %v2245 = vunpack.c.l.b16 %v1180
  %v2246 = vunpack.c.h.b16 %v1180
  %v2247 = vunpack.c.l.b16 %v1181
  %v2248 = vunpack.c.h.b16 %v1181
  %v2249 = vunpack.c.l.b16 %v1182
  %v2250 = vunpack.c.h.b16 %v1182
  %v2251 = vunpack.c.l.b16 %v1183
  %v2252 = vunpack.c.h.b16 %v1183
  %v2253 = vunpack.c.l.b16 %v1184
  %v2254 = vunpack.c.h.b16 %v1184
  %v2255 = vunpack.c.l.b16 %v1185
  %v2256 = vunpack.c.h.b16 %v1185
  %v2257 = vunpack.c.l.b16 %v1186
  %v2258 = vunpack.c.h.b16 %v1186
  %v2259 = vunpack.c.l.b16 %v1187
  %v2260 = vunpack.c.h.b16 %v1187
  %v2261 = vunpack.c.l.b16 %v1188
  %v2262 = vunpack.c.h.b16 %v1188
  %v2263 = vunpack.c.l.b16 %v1189
  %v2264 = vunpack.c.h.b16 %v1189
  %v2265 = vunpack.c.l.b16 %v1190
  %v2266 = vunpack.c.h.b16 %v1190
  %v2267 = vunpack.c.l.b16 %v1191
  %v2268 = vunpack.c.h.b16 %v1191
  %v2269 = vunpack.c.l.b16 %v1192
  %v2270 = vunpack.c.h.b16 %v1192
  %v2271 = vunpack.c.l.b16 %v1193
  %v2272 = vunpack.c.h.b16 %v1193
  %v2273 = vunpack.c.l.b16 %v1194
  %v2274 = vunpack.c.h.b16 %v1194
  %v2275 = vunpack.c.l.b16 %v1195
  %v2276 = vunpack.c.h.b16 %v1195
  %v2277 = vunpack.c.l.b16 %v1196
  %v2278 = vunpack.c.h.b16 %v1196
  %v2279 = vunpack.c.l.b16 %v1197
  %v2280 = vunpack.c.h.b16 %v1197
  %v2281 = vunpack.c.l.b16 %v1198
  %v2282 = vunpack.c.h.b16 %v1198
  %v2283 = vunpack.c.l.b16 %v1199
  %v2284 = vunpack.c.h.b16 %v1199
  %v2285 = vunpack.c.l.b16 %v1200
  %v2286 = vunpack.c.h.b16 %v1200
  %v2287 = vunpack.c.l.b16 %v1201
  %v2288 = vunpack.c.h.b16 %v1201
  %v2289 = vunpack.c.l.b16 %v1202
  %v2290 = vunpack.c.h.b16 %v1202
  %v2291 = vunpack.c.l.b16 %v1203
  %v2292 = vunpack.c.h.b16 %v1203
  %v2293 = vunpack.c.l.b16 %v1204
  %v2294 = vunpack.c.h.b16 %v1204
  %v2295 = vunpack.c.l.b16 %v1205
  %v2296 = vunpack.c.h.b16 %v1205
  %v2297 = vunpack.c.l.b16 %v1206
  %v2298 = vunpack.c.h.b16 %v1206
  %v2299 = vunpack.c.l.b16 %v1207
  %v2300 = vunpack.c.h.b16 %v1207
  %v2301 = vunpack.c.l.b16 %v1208
  %v2302 = vunpack.c.h.b16 %v1208
  %v2303 = vunpack.c.l.b16 %v1209
  %v2304 = vunpack.c.h.b16 %v1209
  %v2305 = vunpack.c.l.b16 %v1210
  %v2306 = vunpack.c.h.b16 %v1210
  %v2307 = vunpack.c.l.b16 %v1211
  %v2308 = vunpack.c.h.b16 %v1211
  %v2309 = vunpack.c.l.b16 %v1212
  %v2310 = vunpack.c.h.b16 %v1212
  %v2311 = vunpack.c.l.b16 %v1213
  %v2312 = vunpack.c.h.b16 %v1213
  %v2313 = vunpack.c.l.b16 %v1214
  %v2314 = vunpack.c.h.b16 %v1214
  %v2315 = vunpack.c.l.b16 %v1215
  %v2316 = vunpack.c.h.b16 %v1215
  %v2317 = vunpack.c.l.b16 %v1216
  %v2318 = vunpack.c.h.b16 %v1216
  %v2319 = vunpack.c.l.b16 %v1217
  %v2320 = vunpack.c.h.b16 %v1217
  %v2321 = vunpack.c.l.b16 %v1218
  %v2322 = vunpack.c.h.b16 %v1218
  %v2323 = vunpack.c.l.b16 %v1219
  %v2324 = vunpack.c.h.b16 %v1219
  %v2325 = vunpack.c.l.b16 %v1220
  %v2326 = vunpack.c.h.b16 %v1220
  %v2327 = vunpack.c.l.b16 %v1221
  %v2328 = vunpack.c.h.b16 %v1221
  %v2329 = vunpack.c.l.b16 %v1222
  %v2330 = vunpack.c.h.b16 %v1222
  %v2331 = vunpack.c.l.b16 %v1223
  %v2332 = vunpack.c.h.b16 %v1223
  %v2333 = vunpack.c.l.b16 %v1224
  %v2334 = vunpack.c.h.b16 %v1224
  %v2335 = vunpack.c.l.b16 %v1225
  %v2336 = vunpack.c.h.b16 %v1225
  %v2337 = vunpack.c.l.b16 %v1226
  %v2338 = vunpack.c.h.b16 %v1226
  %v2339 = vunpack.c.l.b16 %v1227
  %v2340 = vunpack.c.h.b16 %v1227
  %v2341 = vunpack.c.l.b16 %v1228
  %v2342 = vunpack.c.h.b16 %v1228
  %v2343 = vunpack.c.l.b16 %v1229
  %v2344 = vunpack.c.h.b16 %v1229
  %v2345 = vunpack.c.l.b16 %v1230
  %v2346 = vunpack.c.h.b16 %v1230
  %v2347 = vunpack.c.l.b16 %v1231
  %v2348 = vunpack.c.h.b16 %v1231
  %v2349 = vunpack.c.l.b16 %v1232
  %v2350 = vunpack.c.h.b16 %v1232
  %v2351 = vunpack.c.l.b16 %v1233
  %v2352 = vunpack.c.h.b16 %v1233
  %v2353 = vunpack.c.l.b16 %v1234
  %v2354 = vunpack.c.h.b16 %v1234
  %v2355 = vunpack.c.l.b16 %v1235
  %v2356 = vunpack.c.h.b16 %v1235
  %v2357 = vunpack.c.l.b16 %v1236
  %v2358 = vunpack.c.h.b16 %v1236
  %v2359 = vunpack.c.l.b16 %v1237
  %v2360 = vunpack.c.h.b16 %v1237
  %v2361 = vunpack.c.l.b16 %v1238
  %v2362 = vunpack.c.h.b16 %v1238
  %v2363 = vunpack.c.l.b16 %v1239
  %v2364 = vunpack.c.h.b16 %v1239
  %v2365 = vunpack.c.l.b16 %v1240
  %v2366 = vunpack.c.h.b16 %v1240
  %v2367 = vunpack.c.l.b16 %v1241
  %v2368 = vunpack.c.h.b16 %v1241
  %v2369 = vunpack.c.l.b16 %v1242
  %v2370 = vunpack.c.h.b16 %v1242
  %v2371 = vunpack.c.l.b16 %v1243
  %v2372 = vunpack.c.h.b16 %v1243
  %v2373 = vunpack.c.l.b16 %v1244
  %v2374 = vunpack.c.h.b16 %v1244
  %v2375 = vunpack.c.l.b16 %v1245
  %v2376 = vunpack.c.h.b16 %v1245
  %v2377 = vunpack.c.l.b16 %v1246
  %v2378 = vunpack.c.h.b16 %v1246
  %v2379 = vunpack.c.l.b16 %v1247
  %v2380 = vunpack.c.h.b16 %v1247
  %v2381 = vunpack.c.l.b16 %v1248
  %v2382 = vunpack.c.h.b16 %v1248
  %v2383 = vunpack.c.l.b16 %v1249
  %v2384 = vunpack.c.h.b16 %v1249
  %v2385 = vunpack.c.l.b16 %v1250
  %v2386 = vunpack.c.h.b16 %v1250
  %v2387 = vunpack.c.l.b16 %v1251
  %v2388 = vunpack.c.h.b16 %v1251
  %v2389 = vunpack.c.l.b16 %v1252
  %v2390 = vunpack.c.h.b16 %v1252
  %v2391 = vunpack.c.l.b16 %v1253
  %v2392 = vunpack.c.h.b16 %v1253
  %v2393 = vunpack.c.l.b16 %v1254
  %v2394 = vunpack.c.h.b16 %v1254
  %v2395 = vunpack.c.l.b16 %v1255
  %v2396 = vunpack.c.h.b16 %v1255
  %v2397 = vunpack.c.l.b16 %v1256
  %v2398 = vunpack.c.h.b16 %v1256
  %v2399 = vunpack.c.l.b16 %v1257
  %v2400 = vunpack.c.h.b16 %v1257
  %v2401 = vunpack.c.l.b16 %v1258
  %v2402 = vunpack.c.h.b16 %v1258
  %v2403 = vunpack.c.l.b16 %v1259
  %v2404 = vunpack.c.h.b16 %v1259
  %v2405 = vunpack.c.l.b16 %v1260
  %v2406 = vunpack.c.h.b16 %v1260
  %v2407 = vunpack.c.l.b16 %v1261
  %v2408 = vunpack.c.h.b16 %v1261
  %v2409 = vunpack.c.l.b16 %v1262
  %v2410 = vunpack.c.h.b16 %v1262
  %v2411 = vunpack.c.l.b16 %v1263
  %v2412 = vunpack.c.h.b16 %v1263
  %v2413 = vunpack.c.l.b16 %v1264
  %v2414 = vunpack.c.h.b16 %v1264
  %v2415 = vunpack.c.l.b16 %v1265
  %v2416 = vunpack.c.h.b16 %v1265
  %v2417 = vunpack.c.l.b16 %v1266
  %v2418 = vunpack.c.h.b16 %v1266
  %v2419 = vunpack.c.l.b16 %v1267
  %v2420 = vunpack.c.h.b16 %v1267
  %v2421 = vunpack.c.l.b16 %v1268
  %v2422 = vunpack.c.h.b16 %v1268
  %v2423 = vunpack.c.l.b16 %v1269
  %v2424 = vunpack.c.h.b16 %v1269
  %v2425 = vunpack.c.l.b16 %v1270
  %v2426 = vunpack.c.h.b16 %v1270
  %v2427 = vunpack.c.l.b16 %v1271
  %v2428 = vunpack.c.h.b16 %v1271
  %v2429 = vunpack.c.l.b16 %v1272
  %v2430 = vunpack.c.h.b16 %v1272
  %v2431 = vunpack.c.l.b16 %v1273
  %v2432 = vunpack.c.h.b16 %v1273
  %v2433 = vunpack.c.l.b16 %v1274
  %v2434 = vunpack.c.h.b16 %v1274
  %v2435 = vunpack.c.l.b16 %v1275
  %v2436 = vunpack.c.h.b16 %v1275
  %v2437 = vunpack.c.l.b16 %v1276
  %v2438 = vunpack.c.h.b16 %v1276
  %v2439 = vunpack.c.l.b16 %v1277
  %v2440 = vunpack.c.h.b16 %v1277
  %v2441 = vunpack.c.l.b16 %v1278
  %v2442 = vunpack.c.h.b16 %v1278
  %v2443 = vunpack.c.l.b16 %v1279
  %v2444 = vunpack.c.h.b16 %v1279
  %v2445 = vunpack.c.l.b16 %v1280
  %v2446 = vunpack.c.h.b16 %v1280
  %v2447 = vunpack.c.l.b16 %v1281
  %v2448 = vunpack.c.h.b16 %v1281
  %v2449 = vunpack.c.l.b16 %v1282
  %v2450 = vunpack.c.h.b16 %v1282
  %v2451 = vunpack.c.l.b16 %v1283
  %v2452 = vunpack.c.h.b16 %v1283
  %v2453 = vunpack.c.l.b16 %v1284
  %v2454 = vunpack.c.h.b16 %v1284
  %v2455 = vunpack.c.l.b16 %v1285
  %v2456 = vunpack.c.h.b16 %v1285
  %v2457 = vunpack.c.l.b16 %v1286
  %v2458 = vunpack.c.h.b16 %v1286
  %v2459 = vunpack.c.l.b16 %v1287
  %v2460 = vunpack.c.h.b16 %v1287
  %v2461 = vunpack.c.l.b16 %v1288
  %v2462 = vunpack.c.h.b16 %v1288
  %v2463 = vunpack.c.l.b16 %v1289
  %v2464 = vunpack.c.h.b16 %v1289
  %v2465 = vunpack.c.l.b16 %v1290
  %v2466 = vunpack.c.h.b16 %v1290
  %v2467 = vunpack.c.l.b16 %v1291
  %v2468 = vunpack.c.h.b16 %v1291
  %v2469 = vunpack.c.l.b16 %v1292
  %v2470 = vunpack.c.h.b16 %v1292
  %v2471 = vunpack.c.l.b16 %v1293
  %v2472 = vunpack.c.h.b16 %v1293
  %v2473 = vunpack.c.l.b16 %v1294
  %v2474 = vunpack.c.h.b16 %v1294
  %v2475 = vunpack.c.l.b16 %v1295
  %v2476 = vunpack.c.h.b16 %v1295
  %v2477 = vunpack.c.l.b16 %v1296
  %v2478 = vunpack.c.h.b16 %v1296
  %v2479 = vunpack.c.l.b16 %v1297
  %v2480 = vunpack.c.h.b16 %v1297
  %v2481 = vunpack.c.l.b16 %v1298
  %v2482 = vunpack.c.h.b16 %v1298
  %v2483 = vunpack.c.l.b16 %v1299
  %v2484 = vunpack.c.h.b16 %v1299
  %v2485 = vunpack.c.l.b16 %v1300
  %v2486 = vunpack.c.h.b16 %v1300
  %v2487 = vunpack.c.l.b16 %v1301
  %v2488 = vunpack.c.h.b16 %v1301
  %v2489 = vunpack.c.l.b16 %v1302
  %v2490 = vunpack.c.h.b16 %v1302
  %v2491 = vunpack.c.l.b16 %v1303
  %v2492 = vunpack.c.h.b16 %v1303
  %v2493 = vunpack.c.l.b16 %v1304
  %v2494 = vunpack.c.h.b16 %v1304
  %v2495 = vunpack.c.l.b16 %v1305
  %v2496 = vunpack.c.h.b16 %v1305
  %v2497 = vunpack.c.l.b16 %v1306
  %v2498 = vunpack.c.h.b16 %v1306
  %v2499 = vunpack.c.l.b16 %v1307
  %v2500 = vunpack.c.h.b16 %v1307
  %v2501 = vunpack.c.l.b16 %v1308
  %v2502 = vunpack.c.h.b16 %v1308
  %v2503 = vunpack.c.l.b16 %v1309
  %v2504 = vunpack.c.h.b16 %v1309
  %v2505 = vunpack.c.l.b16 %v1310
  %v2506 = vunpack.c.h.b16 %v1310
  %v2507 = vunpack.c.l.b16 %v1311
  %v2508 = vunpack.c.h.b16 %v1311
  %v2509 = vunpack.c.l.b16 %v1312
  %v2510 = vunpack.c.h.b16 %v1312
  %v2511 = vunpack.c.l.b16 %v1313
  %v2512 = vunpack.c.h.b16 %v1313
  %v2513 = vunpack.c.l.b16 %v1314
  %v2514 = vunpack.c.h.b16 %v1314
  %v2515 = vunpack.c.l.b16 %v1315
  %v2516 = vunpack.c.h.b16 %v1315
  %v2517 = vunpack.c.l.b16 %v1316
  %v2518 = vunpack.c.h.b16 %v1316
  %v2519 = vunpack.c.l.b16 %v1317
  %v2520 = vunpack.c.h.b16 %v1317
  %v2521 = vunpack.c.l.b16 %v1318
  %v2522 = vunpack.c.h.b16 %v1318
  %v2523 = vunpack.c.l.b16 %v1319
  %v2524 = vunpack.c.h.b16 %v1319
  %v2525 = vunpack.c.l.b16 %v1320
  %v2526 = vunpack.c.h.b16 %v1320
  %v2527 = vunpack.c.l.b16 %v1321
  %v2528 = vunpack.c.h.b16 %v1321
  %v2529 = vunpack.c.l.b16 %v1322
  %v2530 = vunpack.c.h.b16 %v1322
  %v2531 = vunpack.c.l.b16 %v1323
  %v2532 = vunpack.c.h.b16 %v1323
  %v2533 = vunpack.c.l.b16 %v1324
  %v2534 = vunpack.c.h.b16 %v1324
  %v2535 = vunpack.c.l.b16 %v1325
  %v2536 = vunpack.c.h.b16 %v1325
  %v2537 = vunpack.c.l.b16 %v1326
  %v2538 = vunpack.c.h.b16 %v1326
  %v2539 = vunpack.c.l.b16 %v1327
  %v2540 = vunpack.c.h.b16 %v1327
  %v2541 = vunpack.c.l.b16 %v1328
  %v2542 = vunpack.c.h.b16 %v1328
  %v2543 = vunpack.c.l.b16 %v1329
  %v2544 = vunpack.c.h.b16 %v1329
  %v2545 = vunpack.c.l.b16 %v1330
  %v2546 = vunpack.c.h.b16 %v1330
  %v2547 = vunpack.c.l.b16 %v1331
  %v2548 = vunpack.c.h.b16 %v1331
  %v2549 = vunpack.c.l.b16 %v1332
  %v2550 = vunpack.c.h.b16 %v1332
  %v2551 = vunpack.c.l.b16 %v1333
  %v2552 = vunpack.c.h.b16 %v1333
  %v2553 = vunpack.c.l.b16 %v1334
  %v2554 = vunpack.c.h.b16 %v1334
  %v2555 = vunpack.c.l.b16 %v1335
  %v2556 = vunpack.c.h.b16 %v1335
  %v2557 = vunpack.c.l.b16 %v1336
  %v2558 = vunpack.c.h.b16 %v1336
  %v2559 = vunpack.c.l.b16 %v1337
  %v2560 = vunpack.c.h.b16 %v1337
  %v2561 = vunpack.c.l.b16 %v1338
  %v2562 = vunpack.c.h.b16 %v1338
  %v2563 = vunpack.c.l.b16 %v1339
  %v2564 = vunpack.c.h.b16 %v1339
  %v2565 = vunpack.c.l.b16 %v1340
  %v2566 = vunpack.c.h.b16 %v1340
  %v2567 = vunpack.c.l.b16 %v1341
  %v2568 = vunpack.c.h.b16 %v1341
  %v2569 = vunpack.c.l.b16 %v1342
  %v2570 = vunpack.c.h.b16 %v1342
  %v2571 = vunpack.c.l.b16 %v1343
  %v2572 = vunpack.c.h.b16 %v1343
  %v2573 = vunpack.c.l.b16 %v1344
  %v2574 = vunpack.c.h.b16 %v1344
  %v2575 = vunpack.c.l.b16 %v1345
  %v2576 = vunpack.c.h.b16 %v1345
  %v2577 = vunpack.c.l.b16 %v1346
  %v2578 = vunpack.c.h.b16 %v1346
  %v2579 = vunpack.c.l.b16 %v1347
  %v2580 = vunpack.c.h.b16 %v1347
  %v2581 = vunpack.c.l.b16 %v1348
  %v2582 = vunpack.c.h.b16 %v1348
  %v2583 = vunpack.c.l.b16 %v1349
  %v2584 = vunpack.c.h.b16 %v1349
  %v2585 = vunpack.c.l.b16 %v1350
  %v2586 = vunpack.c.h.b16 %v1350
  %v2587 = vunpack.c.l.b16 %v1351
  %v2588 = vunpack.c.h.b16 %v1351
  %v2589 = vunpack.c.l.b16 %v1352
  %v2590 = vunpack.c.h.b16 %v1352
  %v2591 = vunpack.c.l.b16 %v1353
  %v2592 = vunpack.c.h.b16 %v1353
  %v2593 = vunpack.c.l.b16 %v1354
  %v2594 = vunpack.c.h.b16 %v1354
  %v2595 = vunpack.c.l.b16 %v1355
  %v2596 = vunpack.c.h.b16 %v1355
  %v2597 = vunpack.c.l.b16 %v1356
  %v2598 = vunpack.c.h.b16 %v1356
  %v2599 = vunpack.c.l.b16 %v1357
  %v2600 = vunpack.c.h.b16 %v1357
  %v2601 = vunpack.c.l.b16 %v1358
  %v2602 = vunpack.c.h.b16 %v1358
  %v2603 = vunpack.c.l.b16 %v1359
  %v2604 = vunpack.c.h.b16 %v1359
  %v2605 = vunpack.c.l.b16 %v1360
  %v2606 = vunpack.c.h.b16 %v1360
  %v2607 = vunpack.c.l.b16 %v1361
  %v2608 = vunpack.c.h.b16 %v1361
  %v2609 = vunpack.c.l.b16 %v1362
  %v2610 = vunpack.c.h.b16 %v1362
  %v2611 = vunpack.c.l.b16 %v1363
  %v2612 = vunpack.c.h.b16 %v1363
  %v2613 = vunpack.c.l.b16 %v1364
  %v2614 = vunpack.c.h.b16 %v1364
  %v2615 = vunpack.c.l.b16 %v1365
  %v2616 = vunpack.c.h.b16 %v1365
  %v2617 = vunpack.c.l.b16 %v1366
  %v2618 = vunpack.c.h.b16 %v1366
  %v2619 = vunpack.c.l.b16 %v1367
  %v2620 = vunpack.c.h.b16 %v1367
  %v2621 = vunpack.c.l.b16 %v1368
  %v2622 = vunpack.c.h.b16 %v1368
  %v2623 = vunpack.c.l.b16 %v1369
  %v2624 = vunpack.c.h.b16 %v1369
  %v2625 = vunpack.c.l.b16 %v1370
  %v2626 = vunpack.c.h.b16 %v1370
  %v2627 = vunpack.c.l.b16 %v1371
  %v2628 = vunpack.c.h.b16 %v1371
  %v2629 = vunpack.c.l.b16 %v1372
  %v2630 = vunpack.c.h.b16 %v1372
  %v2631 = vunpack.c.l.b16 %v1373
  %v2632 = vunpack.c.h.b16 %v1373
  %v2633 = vunpack.c.l.b16 %v1374
  %v2634 = vunpack.c.h.b16 %v1374
  %v2635 = vunpack.c.l.b16 %v1375
  %v2636 = vunpack.c.h.b16 %v1375
  %v2637 = vunpack.c.l.b16 %v1376
  %v2638 = vunpack.c.h.b16 %v1376
  %v2639 = vunpack.c.l.b16 %v1377
  %v2640 = vunpack.c.h.b16 %v1377
  %v2641 = vunpack.c.l.b16 %v1378
  %v2642 = vunpack.c.h.b16 %v1378
  %v2643 = vunpack.c.l.b16 %v1379
  %v2644 = vunpack.c.h.b16 %v1379
  %v2645 = vunpack.c.l.b16 %v1380
  %v2646 = vunpack.c.h.b16 %v1380
  %v2647 = vunpack.c.l.b16 %v1381
  %v2648 = vunpack.c.h.b16 %v1381
  %v2649 = vunpack.c.l.b16 %v1382
  %v2650 = vunpack.c.h.b16 %v1382
  %v2651 = vunpack.c.l.b16 %v1383
  %v2652 = vunpack.c.h.b16 %v1383
  %v2653 = vunpack.c.l.b16 %v1384
  %v2654 = vunpack.c.h.b16 %v1384
  %v2655 = vunpack.c.l.b16 %v1385
  %v2656 = vunpack.c.h.b16 %v1385
  %v2657 = vunpack.c.l.b16 %v1386
  %v2658 = vunpack.c.h.b16 %v1386
  %v2659 = vunpack.c.l.b16 %v1387
  %v2660 = vunpack.c.h.b16 %v1387
  %v2661 = vunpack.c.l.b16 %v1388
  %v2662 = vunpack.c.h.b16 %v1388
  %v2663 = vunpack.c.l.b16 %v1389
  %v2664 = vunpack.c.h.b16 %v1389
  %v2665 = vunpack.c.l.b16 %v1390
  %v2666 = vunpack.c.h.b16 %v1390
  %v2667 = vunpack.c.l.b16 %v1391
  %v2668 = vunpack.c.h.b16 %v1391
  %v2669 = vunpack.c.l.b16 %v1392
  %v2670 = vunpack.c.h.b16 %v1392
  %v2671 = vunpack.c.l.b16 %v1393
  %v2672 = vunpack.c.h.b16 %v1393
  %v2673 = vunpack.c.l.b16 %v1394
  %v2674 = vunpack.c.h.b16 %v1394
  %v2675 = vunpack.c.l.b16 %v1395
  %v2676 = vunpack.c.h.b16 %v1395
  %v2677 = vunpack.c.l.b16 %v1396
  %v2678 = vunpack.c.h.b16 %v1396
  %v2679 = vunpack.c.l.b16 %v1397
  %v2680 = vunpack.c.h.b16 %v1397
  %v2681 = vunpack.c.l.b16 %v1398
  %v2682 = vunpack.c.h.b16 %v1398
  %v2683 = vunpack.c.l.b16 %v1399
  %v2684 = vunpack.c.h.b16 %v1399
  %v2685 = vunpack.c.l.b16 %v1400
  %v2686 = vunpack.c.h.b16 %v1400
  %v2687 = vunpack.c.l.b16 %v1401
  %v2688 = vunpack.c.h.b16 %v1401
  %v2689 = vunpack.c.l.b16 %v1402
  %v2690 = vunpack.c.h.b16 %v1402
  %v2691 = vunpack.c.l.b16 %v1403
  %v2692 = vunpack.c.h.b16 %v1403
  %v2693 = vunpack.c.l.b16 %v1404
  %v2694 = vunpack.c.h.b16 %v1404
  %v2695 = vunpack.c.l.b16 %v1405
  %v2696 = vunpack.c.h.b16 %v1405
  %v2697 = vunpack.c.l.b16 %v1406
  %v2698 = vunpack.c.h.b16 %v1406
  %v2699 = vunpack.c.l.b16 %v1407
  %v2700 = vunpack.c.h.b16 %v1407
  %v2701 = vunpack.c.l.b16 %v1408
  %v2702 = vunpack.c.h.b16 %v1408
  %v2703 = vunpack.c.l.b16 %v1409
  %v2704 = vunpack.c.h.b16 %v1409
  %v2705 = vunpack.c.l.b16 %v1410
  %v2706 = vunpack.c.h.b16 %v1410
  %v2707 = vunpack.c.l.b16 %v1411
  %v2708 = vunpack.c.h.b16 %v1411
  %v2709 = vunpack.c.l.b16 %v1412
  %v2710 = vunpack.c.h.b16 %v1412
  %v2711 = vunpack.c.l.b16 %v1413
  %v2712 = vunpack.c.h.b16 %v1413
  %v2713 = vunpack.c.l.b16 %v1414
  %v2714 = vunpack.c.h.b16 %v1414
  %v2715 = vunpack.c.l.b16 %v1415
  %v2716 = vunpack.c.h.b16 %v1415
  %v2717 = vunpack.c.l.b16 %v1416
  %v2718 = vunpack.c.h.b16 %v1416
  %v2719 = vunpack.c.l.b16 %v1417
  %v2720 = vunpack.c.h.b16 %v1417
  %v2721 = vunpack.c.l.b16 %v1418
  %v2722 = vunpack.c.h.b16 %v1418
  %v2723 = vunpack.c.l.b16 %v1419
  %v2724 = vunpack.c.h.b16 %v1419
  %v2725 = vunpack.c.l.b16 %v1420
  %v2726 = vunpack.c.h.b16 %v1420
  %v2727 = vunpack.c.l.b16 %v1421
  %v2728 = vunpack.c.h.b16 %v1421
  %v2729 = vunpack.c.l.b16 %v1422
  %v2730 = vunpack.c.h.b16 %v1422
  %v2731 = vunpack.c.l.b16 %v1423
  %v2732 = vunpack.c.h.b16 %v1423
  %v2733 = vunpack.c.l.b16 %v1424
  %v2734 = vunpack.c.h.b16 %v1424
  %v2735 = vunpack.c.l.b16 %v1425
  %v2736 = vunpack.c.h.b16 %v1425
  %v2737 = vunpack.c.l.b16 %v1426
  %v2738 = vunpack.c.h.b16 %v1426
  %v2739 = vunpack.c.l.b16 %v1427
  %v2740 = vunpack.c.h.b16 %v1427
  %v2741 = vunpack.c.l.b16 %v1428
  %v2742 = vunpack.c.h.b16 %v1428
  %v2743 = vunpack.c.l.b16 %v1429
  %v2744 = vunpack.c.h.b16 %v1429
  %v2745 = vunpack.c.l.b16 %v1430
  %v2746 = vunpack.c.h.b16 %v1430
  %v2747 = vunpack.c.l.b16 %v1431
  %v2748 = vunpack.c.h.b16 %v1431
  %v2749 = vunpack.c.l.b16 %v1432
  %v2750 = vunpack.c.h.b16 %v1432
  %v2751 = vunpack.c.l.b16 %v1433
  %v2752 = vunpack.c.h.b16 %v1433
  %v2753 = vunpack.c.l.b16 %v1434
  %v2754 = vunpack.c.h.b16 %v1434
  %v2755 = vunpack.c.l.b16 %v1435
  %v2756 = vunpack.c.h.b16 %v1435
  %v2757 = vunpack.c.l.b16 %v1436
  %v2758 = vunpack.c.h.b16 %v1436
  %v2759 = vunpack.c.l.b16 %v1437
  %v2760 = vunpack.c.h.b16 %v1437
  %v2761 = vunpack.c.l.b16 %v1438
  %v2762 = vunpack.c.h.b16 %v1438
  %v2763 = vunpack.c.l.b16 %v1439
  %v2764 = vunpack.c.h.b16 %v1439
  %v2765 = vunpack.c.l.b16 %v1440
  %v2766 = vunpack.c.h.b16 %v1440
  %v2767 = vunpack.c.l.b16 %v1441
  %v2768 = vunpack.c.h.b16 %v1441
  %v2769 = vunpack.c.l.b16 %v1442
  %v2770 = vunpack.c.h.b16 %v1442
  %v2771 = vunpack.c.l.b16 %v1443
  %v2772 = vunpack.c.h.b16 %v1443
  %v2773 = vunpack.c.l.b16 %v1444
  %v2774 = vunpack.c.h.b16 %v1444
  %v2775 = vunpack.c.l.b16 %v1445
  %v2776 = vunpack.c.h.b16 %v1445
  %v2777 = vunpack.c.l.b16 %v1446
  %v2778 = vunpack.c.h.b16 %v1446
  %v2779 = vunpack.c.l.b16 %v1447
  %v2780 = vunpack.c.h.b16 %v1447
  %v2781 = vunpack.c.l.b16 %v1448
  %v2782 = vunpack.c.h.b16 %v1448
  %v2783 = vunpack.c.l.b16 %v1449
  %v2784 = vunpack.c.h.b16 %v1449
  %v2785 = vunpack.c.l.b16 %v1450
  %v2786 = vunpack.c.h.b16 %v1450
  %v2787 = vunpack.c.l.b16 %v1451
  %v2788 = vunpack.c.h.b16 %v1451
  %v2789 = vunpack.c.l.b16 %v1452
  %v2790 = vunpack.c.h.b16 %v1452
  %v2791 = vunpack.c.l.b16 %v1453
  %v2792 = vunpack.c.h.b16 %v1453
  %v2793 = vunpack.c.l.b16 %v1454
  %v2794 = vunpack.c.h.b16 %v1454
  %v2795 = vunpack.c.l.b16 %v1455
  %v2796 = vunpack.c.h.b16 %v1455
  %v2797 = vunpack.c.l.b16 %v1456
  %v2798 = vunpack.c.h.b16 %v1456
  %v2799 = vunpack.c.l.b16 %v1457
  %v2800 = vunpack.c.h.b16 %v1457
  %v2801 = vunpack.c.l.b16 %v1458
  %v2802 = vunpack.c.h.b16 %v1458
  %v2803 = vunpack.c.l.b16 %v1459
  %v2804 = vunpack.c.h.b16 %v1459
  %v2805 = vunpack.c.l.b16 %v1460
  %v2806 = vunpack.c.h.b16 %v1460
  %v2807 = vunpack.c.l.b16 %v1461
  %v2808 = vunpack.c.h.b16 %v1461
  %v2809 = vunpack.c.l.b16 %v1462
  %v2810 = vunpack.c.h.b16 %v1462
  %v2811 = vunpack.c.l.b16 %v1463
  %v2812 = vunpack.c.h.b16 %v1463
  %v2813 = vunpack.c.l.b16 %v1464
  %v2814 = vunpack.c.h.b16 %v1464
  %v2815 = vunpack.c.l.b16 %v1465
  %v2816 = vunpack.c.h.b16 %v1465
  %v2817 = vunpack.c.l.b16 %v1466
  %v2818 = vunpack.c.h.b16 %v1466
  %v2819 = vunpack.c.l.b16 %v1467
  %v2820 = vunpack.c.h.b16 %v1467
  %v2821 = vunpack.c.l.b16 %v1468
  %v2822 = vunpack.c.h.b16 %v1468
  %v2823 = vunpack.c.l.b16 %v1469
  %v2824 = vunpack.c.h.b16 %v1469
  %v2825 = vunpack.c.l.b16 %v1470
  %v2826 = vunpack.c.h.b16 %v1470
  %v2827 = vunpack.c.l.b16 %v1471
  %v2828 = vunpack.c.h.b16 %v1471
  %v2829 = vunpack.c.l.b16 %v1472
  %v2830 = vunpack.c.h.b16 %v1472
  %v2831 = vunpack.c.l.b16 %v1473
  %v2832 = vunpack.c.h.b16 %v1473
  %v2833 = vunpack.c.l.b16 %v1474
  %v2834 = vunpack.c.h.b16 %v1474
  %v2835 = vunpack.c.l.b16 %v1475
  %v2836 = vunpack.c.h.b16 %v1475
  %v2837 = vunpack.c.l.b16 %v1476
  %v2838 = vunpack.c.h.b16 %v1476
  %v2839 = vunpack.c.l.b16 %v1477
  %v2840 = vunpack.c.h.b16 %v1477
  %v2841 = vunpack.c.l.b16 %v1478
  %v2842 = vunpack.c.h.b16 %v1478
  %v2843 = vunpack.c.l.b16 %v1479
  %v2844 = vunpack.c.h.b16 %v1479
  %v2845 = vunpack.c.l.b16 %v1480
  %v2846 = vunpack.c.h.b16 %v1480
  %v2847 = vunpack.c.l.b16 %v1481
  %v2848 = vunpack.c.h.b16 %v1481
  %v2849 = vunpack.c.l.b16 %v1482
  %v2850 = vunpack.c.h.b16 %v1482
  %v2851 = vunpack.c.l.b16 %v1483
  %v2852 = vunpack.c.h.b16 %v1483
  %v2853 = vunpack.c.l.b16 %v1484
  %v2854 = vunpack.c.h.b16 %v1484
  %v2855 = vunpack.c.l.b16 %v1485
  %v2856 = vunpack.c.h.b16 %v1485
  %v2857 = vunpack.c.l.b16 %v1486
  %v2858 = vunpack.c.h.b16 %v1486
  %v2859 = vunpack.c.l.b16 %v1487
  %v2860 = vunpack.c.h.b16 %v1487
  %v2861 = vunpack.c.l.b16 %v1488
  %v2862 = vunpack.c.h.b16 %v1488
  %v2863 = vunpack.c.l.b16 %v1489
  %v2864 = vunpack.c.h.b16 %v1489
  %v2865 = vunpack.c.l.b16 %v1490
  %v2866 = vunpack.c.h.b16 %v1490
  %v2867 = vunpack.c.l.b16 %v1491
  %v2868 = vunpack.c.h.b16 %v1491
  %v2869 = vunpack.c.l.b16 %v1492
  %v2870 = vunpack.c.h.b16 %v1492
  %v2871 = vunpack.c.l.b16 %v1493
  %v2872 = vunpack.c.h.b16 %v1493
  %v2873 = vunpack.c.l.b16 %v1494
  %v2874 = vunpack.c.h.b16 %v1494
  %v2875 = vunpack.c.l.b16 %v1495
  %v2876 = vunpack.c.h.b16 %v1495
  %v2877 = vunpack.c.l.b16 %v1496
  %v2878 = vunpack.c.h.b16 %v1496
  %v2879 = vunpack.c.l.b16 %v1497
  %v2880 = vunpack.c.h.b16 %v1497
  %v2881 = vunpack.c.l.b16 %v1498
  %v2882 = vunpack.c.h.b16 %v1498
  %v2883 = vunpack.c.l.b16 %v1499
  %v2884 = vunpack.c.h.b16 %v1499
  %v2885 = vunpack.c.l.b16 %v1500
  %v2886 = vunpack.c.h.b16 %v1500
  %v2887 = vunpack.c.l.b16 %v1501
  %v2888 = vunpack.c.h.b16 %v1501
  %v2889 = vunpack.c.l.b16 %v1502
  %v2890 = vunpack.c.h.b16 %v1502
  %v2891 = vunpack.c.l.b16 %v1503
  %v2892 = vunpack.c.h.b16 %v1503
  %v2893 = vunpack.c.l.b16 %v1504
  %v2894 = vunpack.c.h.b16 %v1504
  %v2895 = vunpack.c.l.b16 %v1505
  %v2896 = vunpack.c.h.b16 %v1505
  %v2897 = vunpack.c.l.b16 %v1506
  %v2898 = vunpack.c.h.b16 %v1506
  %v2899 = vunpack.c.l.b16 %v1507
  %v2900 = vunpack.c.h.b16 %v1507
  %v2901 = vunpack.c.l.b16 %v1508
  %v2902 = vunpack.c.h.b16 %v1508
  %v2903 = vunpack.c.l.b16 %v1509
  %v2904 = vunpack.c.h.b16 %v1509
  %v2905 = vunpack.c.l.b16 %v1510
  %v2906 = vunpack.c.h.b16 %v1510
  %v2907 = vunpack.c.l.b16 %v1511
  %v2908 = vunpack.c.h.b16 %v1511
  %v2909 = vunpack.c.l.b16 %v1512
  %v2910 = vunpack.c.h.b16 %v1512
  %v2911 = vunpack.c.l.b16 %v1513
  %v2912 = vunpack.c.h.b16 %v1513
  %v2913 = vunpack.c.l.b16 %v1514
  %v2914 = vunpack.c.h.b16 %v1514
  %v2915 = vunpack.c.l.b16 %v1515
  %v2916 = vunpack.c.h.b16 %v1515
  %v2917 = vunpack.c.l.b16 %v1516
  %v2918 = vunpack.c.h.b16 %v1516
  %v2919 = vunpack.c.l.b16 %v1517
  %v2920 = vunpack.c.h.b16 %v1517
  %v2921 = vunpack.c.l.b16 %v1518
  %v2922 = vunpack.c.h.b16 %v1518
  %v2923 = vunpack.c.l.b16 %v1519
  %v2924 = vunpack.c.h.b16 %v1519
  %v2925 = vunpack.c.l.b16 %v1520
  %v2926 = vunpack.c.h.b16 %v1520
  %v2927 = vunpack.c.l.b16 %v1521
  %v2928 = vunpack.c.h.b16 %v1521
  %v2929 = vunpack.c.l.b16 %v1522
  %v2930 = vunpack.c.h.b16 %v1522
  %v2931 = vunpack.c.l.b16 %v1523
  %v2932 = vunpack.c.h.b16 %v1523
  %v2933 = vunpack.c.l.b16 %v1524
  %v2934 = vunpack.c.h.b16 %v1524
  %v2935 = vunpack.c.l.b16 %v1525
  %v2936 = vunpack.c.h.b16 %v1525
  %v2937 = vunpack.c.l.b16 %v1526
  %v2938 = vunpack.c.h.b16 %v1526
  %v2939 = vunpack.c.l.b16 %v1527
  %v2940 = vunpack.c.h.b16 %v1527
  %v2941 = vunpack.c.l.b16 %v1528
  %v2942 = vunpack.c.h.b16 %v1528
  %v2943 = vunpack.c.l.b16 %v1529
  %v2944 = vunpack.c.h.b16 %v1529
  %v2945 = vunpack.c.l.b16 %v1530
  %v2946 = vunpack.c.h.b16 %v1530
  %v2947 = vunpack.c.l.b16 %v1531
  %v2948 = vunpack.c.h.b16 %v1531
  %v2949 = vunpack.c.l.b16 %v1532
  %v2950 = vunpack.c.h.b16 %v1532
  %v2951 = vunpack.c.l.b16 %v1533
  %v2952 = vunpack.c.h.b16 %v1533
  %v2953 = vunpack.c.l.b16 %v1534
  %v2954 = vunpack.c.h.b16 %v1534
  %v2955 = vunpack.c.l.b16 %v1535
  %v2956 = vunpack.c.h.b16 %v1535
  %v2957 = vunpack.c.l.b16 %v1536
  %v2958 = vunpack.c.h.b16 %v1536
  %v2959 = vunpack.c.l.b16 %v1537
  %v2960 = vunpack.c.h.b16 %v1537
  %v2961 = vunpack.c.l.b16 %v1538
  %v2962 = vunpack.c.h.b16 %v1538
  %v2963 = vunpack.c.l.b16 %v1539
  %v2964 = vunpack.c.h.b16 %v1539
  %v2965 = vunpack.c.l.b16 %v1540
  %v2966 = vunpack.c.h.b16 %v1540
  %v2967 = vunpack.c.l.b16 %v1541
  %v2968 = vunpack.c.h.b16 %v1541
  %v2969 = vunpack.c.l.b16 %v1542
  %v2970 = vunpack.c.h.b16 %v1542
  %v2971 = vunpack.c.l.b16 %v1543
  %v2972 = vunpack.c.h.b16 %v1543
  %v2973 = vunpack.c.l.b16 %v1544
  %v2974 = vunpack.c.h.b16 %v1544
  %v2975 = vunpack.c.l.b16 %v1545
  %v2976 = vunpack.c.h.b16 %v1545
  %v2977 = vunpack.c.l.b16 %v1546
  %v2978 = vunpack.c.h.b16 %v1546
  %v2979 = vunpack.c.l.b16 %v1547
  %v2980 = vunpack.c.h.b16 %v1547
  %v2981 = vunpack.c.l.b16 %v1548
  %v2982 = vunpack.c.h.b16 %v1548
  %v2983 = vunpack.c.l.b16 %v1549
  %v2984 = vunpack.c.h.b16 %v1549
  %v2985 = vunpack.c.l.b16 %v1550
  %v2986 = vunpack.c.h.b16 %v1550
  %v2987 = vunpack.c.l.b16 %v1551
  %v2988 = vunpack.c.h.b16 %v1551
  %v2989 = vunpack.c.l.b16 %v1552
  %v2990 = vunpack.c.h.b16 %v1552
  %v2991 = vunpack.c.l.b16 %v1553
  %v2992 = vunpack.c.h.b16 %v1553
  %v2993 = vunpack.c.l.b16 %v1554
  %v2994 = vunpack.c.h.b16 %v1554
  %v2995 = vunpack.c.l.b16 %v1555
  %v2996 = vunpack.c.h.b16 %v1555
  %v2997 = vunpack.c.l.b16 %v1556
  %v2998 = vunpack.c.h.b16 %v1556
  %v2999 = vunpack.c.l.b16 %v1557
  %v3000 = vunpack.c.h.b16 %v1557
  %v3001 = vunpack.c.l.b16 %v1558
  %v3002 = vunpack.c.h.b16 %v1558
  %v3003 = vunpack.c.l.b16 %v1559
  %v3004 = vunpack.c.h.b16 %v1559
  %v3005 = vunpack.c.l.b16 %v1560
  %v3006 = vunpack.c.h.b16 %v1560
  %v3007 = vunpack.c.l.b16 %v1561
  %v3008 = vunpack.c.h.b16 %v1561
  %v3009 = vunpack.c.l.b16 %v1562
  %v3010 = vunpack.c.h.b16 %v1562
  %v3011 = vunpack.c.l.b16 %v1563
  %v3012 = vunpack.c.h.b16 %v1563
  %v3013 = vunpack.c.l.b16 %v1564
  %v3014 = vunpack.c.h.b16 %v1564
  %v3015 = vunpack.c.l.b16 %v1565
  %v3016 = vunpack.c.h.b16 %v1565
  %v3017 = vunpack.c.l.b16 %v1566
  %v3018 = vunpack.c.h.b16 %v1566
  %v3019 = vunpack.c.l.b16 %v1567
  %v3020 = vunpack.c.h.b16 %v1567
  %v3021 = vunpack.c.l.b16 %v1568
  %v3022 = vunpack.c.h.b16 %v1568
  %v3023 = vunpack.c.l.b16 %v1569
  %v3024 = vunpack.c.h.b16 %v1569
  %v3025 = vunpack.c.l.b16 %v1570
  %v3026 = vunpack.c.h.b16 %v1570
  %v3027 = vunpack.c.l.b16 %v1571
  %v3028 = vunpack.c.h.b16 %v1571
  %v3029 = vunpack.c.l.b16 %v1572
  %v3030 = vunpack.c.h.b16 %v1572
  %v3031 = vpack.c.b16 %v2233, %v2231
  %v3032 = vpack.c.b16 %v2234, %v2232
  %v3033 = vpack.c.b16 %v2237, %v2235
  %v3034 = vpack.c.b16 %v2238, %v2236
  %v3035 = vpack.c.b16 %v2241, %v2239
  %v3036 = vpack.c.b16 %v2242, %v2240
  %v3037 = vpack.c.b16 %v2245, %v2243
  %v3038 = vpack.c.b16 %v2246, %v2244
  %v3039 = vpack.c.b16 %v2249, %v2247
  %v3040 = vpack.c.b16 %v2250, %v2248
  %v3041 = vpack.c.b16 %v2253, %v2251
  %v3042 = vpack.c.b16 %v2254, %v2252
  %v3043 = vpack.c.b16 %v2257, %v2255
  %v3044 = vpack.c.b16 %v2258, %v2256
  %v3045 = vpack.c.b16 %v2261, %v2259
  %v3046 = vpack.c.b16 %v2262, %v2260
  %v3047 = vpack.c.b16 %v2265, %v2263
  %v3048 = vpack.c.b16 %v2266, %v2264
  %v3049 = vpack.c.b16 %v2269, %v2267
  %v3050 = vpack.c.b16 %v2270, %v2268
  %v3051 = vpack.c.b16 %v2273, %v2271
  %v3052 = vpack.c.b16 %v2274, %v2272
  %v3053 = vpack.c.b16 %v2277, %v2275
  %v3054 = vpack.c.b16 %v2278, %v2276
  %v3055 = vpack.c.b16 %v2281, %v2279
  %v3056 = vpack.c.b16 %v2282, %v2280
  %v3057 = vpack.c.b16 %v2285, %v2283
  %v3058 = vpack.c.b16 %v2286, %v2284
  %v3059 = vpack.c.b16 %v2289, %v2287
  %v3060 = vpack.c.b16 %v2290, %v2288
  %v3061 = vpack.c.b16 %v2293, %v2291
  %v3062 = vpack.c.b16 %v2294, %v2292
  %v3063 = vpack.c.b16 %v2297, %v2295
  %v3064 = vpack.c.b16 %v2298, %v2296
  %v3065 = vpack.c.b16 %v2301, %v2299
  %v3066 = vpack.c.b16 %v2302, %v2300
  %v3067 = vpack.c.b16 %v2305, %v2303
  %v3068 = vpack.c.b16 %v2306, %v2304
  %v3069 = vpack.c.b16 %v2309, %v2307
  %v3070 = vpack.c.b16 %v2310, %v2308
  %v3071 = vpack.c.b16 %v2313, %v2311
  %v3072 = vpack.c.b16 %v2314, %v2312
  %v3073 = vpack.c.b16 %v2317, %v2315
  %v3074 = vpack.c.b16 %v2318, %v2316
  %v3075 = vpack.c.b16 %v2321, %v2319
  %v3076 = vpack.c.b16 %v2322, %v2320
  %v3077 = vpack.c.b16 %v2325, %v2323
  %v3078 = vpack.c.b16 %v2326, %v2324
  %v3079 = vpack.c.b16 %v2329, %v2327
  %v3080 = vpack.c.b16 %v2330, %v2328
  %v3081 = vpack.c.b16 %v2333, %v2331
  %v3082 = vpack.c.b16 %v2334, %v2332
  %v3083 = vpack.c.b16 %v2337, %v2335
  %v3084 = vpack.c.b16 %v2338, %v2336
  %v3085 = vpack.c.b16 %v2341, %v2339
  %v3086 = vpack.c.b16 %v2342, %v2340
  %v3087 = vpack.c.b16 %v2345, %v2343
  %v3088 = vpack.c.b16 %v2346, %v2344
  %v3089 = vpack.c.b16 %v2349, %v2347
  %v3090 = vpack.c.b16 %v2350, %v2348
  %v3091 = vpack.c.b16 %v2353, %v2351
  %v3092 = vpack.c.b16 %v2354, %v2352
  %v3093 = vpack.c.b16 %v2357, %v2355
  %v3094 = vpack.c.b16 %v2358, %v2356
  %v3095 = vpack.c.b16 %v2361, %v2359
  %v3096 = vpack.c.b16 %v2362, %v2360
  %v3097 = vpack.c.b16 %v2365, %v2363
  %v3098 = vpack.c.b16 %v2366, %v2364
  %v3099 = vpack.c.b16 %v2369, %v2367
  %v3100 = vpack.c.b16 %v2370, %v2368
  %v3101 = vpack.c.b16 %v2373, %v2371
  %v3102 = vpack.c.b16 %v2374, %v2372
  %v3103 = vpack.c.b16 %v2377, %v2375
  %v3104 = vpack.c.b16 %v2378, %v2376
  %v3105 = vpack.c.b16 %v2381, %v2379
  %v3106 = vpack.c.b16 %v2382, %v2380
  %v3107 = vpack.c.b16 %v2385, %v2383
  %v3108 = vpack.c.b16 %v2386, %v2384
  %v3109 = vpack.c.b16 %v2389, %v2387
  %v3110 = vpack.c.b16 %v2390, %v2388
  %v3111 = vpack.c.b16 %v2393, %v2391
  %v3112 = vpack.c.b16 %v2394, %v2392
  %v3113 = vpack.c.b16 %v2397, %v2395
  %v3114 = vpack.c.b16 %v2398, %v2396
  %v3115 = vpack.c.b16 %v2401, %v2399
  %v3116 = vpack.c.b16 %v2402, %v2400
  %v3117 = vpack.c.b16 %v2405, %v2403
  %v3118 = vpack.c.b16 %v2406, %v2404
  %v3119 = vpack.c.b16 %v2409, %v2407
  %v3120 = vpack.c.b16 %v2410, %v2408
  %v3121 = vpack.c.b16 %v2413, %v2411
  %v3122 = vpack.c.b16 %v2414, %v2412
  %v3123 = vpack.c.b16 %v2417, %v2415
  %v3124 = vpack.c.b16 %v2418, %v2416
  %v3125 = vpack.c.b16 %v2421, %v2419
  %v3126 = vpack.c.b16 %v2422, %v2420
  %v3127 = vpack.c.b16 %v2425, %v2423
  %v3128 = vpack.c.b16 %v2426, %v2424
  %v3129 = vpack.c.b16 %v2429, %v2427
  %v3130 = vpack.c.b16 %v2430, %v2428
  %v3131 = vpack.c.b16 %v2433, %v2431
  %v3132 = vpack.c.b16 %v2434, %v2432
  %v3133 = vpack.c.b16 %v2437, %v2435
  %v3134 = vpack.c.b16 %v2438, %v2436
  %v3135 = vpack.c.b16 %v2441, %v2439
  %v3136 = vpack.c.b16 %v2442, %v2440
  %v3137 = vpack.c.b16 %v2445, %v2443
  %v3138 = vpack.c.b16 %v2446, %v2444
  %v3139 = vpack.c.b16 %v2449, %v2447
  %v3140 = vpack.c.b16 %v2450, %v2448
  %v3141 = vpack.c.b16 %v2453, %v2451
  %v3142 = vpack.c.b16 %v2454, %v2452
  %v3143 = vpack.c.b16 %v2457, %v2455
  %v3144 = vpack.c.b16 %v2458, %v2456
  %v3145 = vpack.c.b16 %v2461, %v2459
  %v3146 = vpack.c.b16 %v2462, %v2460
  %v3147 = vpack.c.b16 %v2465, %v2463
  %v3148 = vpack.c.b16 %v2466, %v2464
  %v3149 = vpack.c.b16 %v2469, %v2467
  %v3150 = vpack.c.b16 %v2470, %v2468
  %v3151 = vpack.c.b16 %v2473, %v2471
  %v3152 = vpack.c.b16 %v2474, %v2472
  %v3153 = vpack.c.b16 %v2477, %v2475
  %v3154 = vpack.c.b16 %v2478, %v2476
  %v3155 = vpack.c.b16 %v2481, %v2479
  %v3156 = vpack.c.b16 %v2482, %v2480
  %v3157 = vpack.c.b16 %v2485, %v2483
  %v3158 = vpack.c.b16 %v2486, %v2484
  %v3159 = vpack.c.b16 %v2489, %v2487
  %v3160 = vpack.c.b16 %v2490, %v2488
  %v3161 = vpack.c.b16 %v2493, %v2491
  %v3162 = vpack.c.b16 %v2494, %v2492
  %v3163 = vpack.c.b16 %v2497, %v2495
  %v3164 = vpack.c.b16 %v2498, %v2496
  %v3165 = vpack.c.b16 %v2501, %v2499
  %v3166 = vpack.c.b16 %v2502, %v2500
  %v3167 = vpack.c.b16 %v2505, %v2503
  %v3168 = vpack.c.b16 %v2506, %v2504
  %v3169 = vpack.c.b16 %v2509, %v2507
  %v3170 = vpack.c.b16 %v2510, %v2508
  %v3171 = vpack.c.b16 %v2513, %v2511
  %v3172 = vpack.c.b16 %v2514, %v2512
  %v3173 = vpack.c.b16 %v2517, %v2515
  %v3174 = vpack.c.b16 %v2518, %v2516
  %v3175 = vpack.c.b16 %v2521, %v2519
  %v3176 = vpack.c.b16 %v2522, %v2520
  %v3177 = vpack.c.b16 %v2525, %v2523
  %v3178 = vpack.c.b16 %v2526, %v2524
  %v3179 = vpack.c.b16 %v2529, %v2527
  %v3180 = vpack.c.b16 %v2530, %v2528
  %v3181 = vpack.c.b16 %v2533, %v2531
  %v3182 = vpack.c.b16 %v2534, %v2532
  %v3183 = vpack.c.b16 %v2537, %v2535
  %v3184 = vpack.c.b16 %v2538, %v2536
  %v3185 = vpack.c.b16 %v2541, %v2539
  %v3186 = vpack.c.b16 %v2542, %v2540
  %v3187 = vpack.c.b16 %v2545, %v2543
  %v3188 = vpack.c.b16 %v2546, %v2544
  %v3189 = vpack.c.b16 %v2549, %v2547
  %v3190 = vpack.c.b16 %v2550, %v2548
  %v3191 = vpack.c.b16 %v2553, %v2551
  %v3192 = vpack.c.b16 %v2554, %v2552
  %v3193 = vpack.c.b16 %v2557, %v2555
  %v3194 = vpack.c.b16 %v2558, %v2556
  %v3195 = vpack.c.b16 %v2561, %v2559
  %v3196 = vpack.c.b16 %v2562, %v2560
  %v3197 = vpack.c.b16 %v2565, %v2563
  %v3198 = vpack.c.b16 %v2566, %v2564
  %v3199 = vpack.c.b16 %v2569, %v2567
  %v3200 = vpack.c.b16 %v2570, %v2568
  %v3201 = vpack.c.b16 %v2573, %v2571
  %v3202 = vpack.c.b16 %v2574, %v2572
  %v3203 = vpack.c.b16 %v2577, %v2575
  %v3204 = vpack.c.b16 %v2578, %v2576
  %v3205 = vpack.c.b16 %v2581, %v2579
  %v3206 = vpack.c.b16 %v2582, %v2580
  %v3207 = vpack.c.b16 %v2585, %v2583
  %v3208 = vpack.c.b16 %v2586, %v2584
  %v3209 = vpack.c.b16 %v2589, %v2587
  %v3210 = vpack.c.b16 %v2590, %v2588
  %v3211 = vpack.c.b16 %v2593, %v2591
  %v3212 = vpack.c.b16 %v2594, %v2592
  %v3213 = vpack.c.b16 %v2597, %v2595
  %v3214 = vpack.c.b16 %v2598, %v2596
  %v3215 = vpack.c.b16 %v2601, %v2599
  %v3216 = vpack.c.b16 %v2602, %v2600
  %v3217 = vpack.c.b16 %v2605, %v2603
  %v3218 = vpack.c.b16 %v2606, %v2604
  %v3219 = vpack.c.b16 %v2609, %v2607
  %v3220 = vpack.c.b16 %v2610, %v2608
  %v3221 = vpack.c.b16 %v2613, %v2611
  %v3222 = vpack.c.b16 %v2614, %v2612
  %v3223 = vpack.c.b16 %v2617, %v2615
  %v3224 = vpack.c.b16 %v2618, %v2616
  %v3225 = vpack.c.b16 %v2621, %v2619
  %v3226 = vpack.c.b16 %v2622, %v2620
  %v3227 = vpack.c.b16 %v2625, %v2623
  %v3228 = vpack.c.b16 %v2626, %v2624
  %v3229 = vpack.c.b16 %v2629, %v2627
  %v3230 = vpack.c.b16 %v2630, %v2628
  %v3231 = vpack.c.b16 %v2633, %v2631
  %v3232 = vpack.c.b16 %v2634, %v2632
  %v3233 = vpack.c.b16 %v2637, %v2635
  %v3234 = vpack.c.b16 %v2638, %v2636
  %v3235 = vpack.c.b16 %v2641, %v2639
  %v3236 = vpack.c.b16 %v2642, %v2640
  %v3237 = vpack.c.b16 %v2645, %v2643
  %v3238 = vpack.c.b16 %v2646, %v2644
  %v3239 = vpack.c.b16 %v2649, %v2647
  %v3240 = vpack.c.b16 %v2650, %v2648
  %v3241 = vpack.c.b16 %v2653, %v2651
  %v3242 = vpack.c.b16 %v2654, %v2652
  %v3243 = vpack.c.b16 %v2657, %v2655
  %v3244 = vpack.c.b16 %v2658, %v2656
  %v3245 = vpack.c.b16 %v2661, %v2659
  %v3246 = vpack.c.b16 %v2662, %v2660
  %v3247 = vpack.c.b16 %v2665, %v2663
  %v3248 = vpack.c.b16 %v2666, %v2664
  %v3249 = vpack.c.b16 %v2669, %v2667
  %v3250 = vpack.c.b16 %v2670, %v2668
  %v3251 = vpack.c.b16 %v2673, %v2671
  %v3252 = vpack.c.b16 %v2674, %v2672
  %v3253 = vpack.c.b16 %v2677, %v2675
  %v3254 = vpack.c.b16 %v2678, %v2676
  %v3255 = vpack.c.b16 %v2681, %v2679
  %v3256 = vpack.c.b16 %v2682, %v2680
  %v3257 = vpack.c.b16 %v2685, %v2683
  %v3258 = vpack.c.b16 %v2686, %v2684
  %v3259 = vpack.c.b16 %v2689, %v2687
  %v3260 = vpack.c.b16 %v2690, %v2688
  %v3261 = vpack.c.b16 %v2693, %v2691
  %v3262 = vpack.c.b16 %v2694, %v2692
  %v3263 = vpack.c.b16 %v2697, %v2695
  %v3264 = vpack.c.b16 %v2698, %v2696
  %v3265 = vpack.c.b16 %v2701, %v2699
  %v3266 = vpack.c.b16 %v2702, %v2700
  %v3267 = vpack.c.b16 %v2705, %v2703
  %v3268 = vpack.c.b16 %v2706, %v2704
  %v3269 = vpack.c.b16 %v2709, %v2707
  %v3270 = vpack.c.b16 %v2710, %v2708
  %v3271 = vpack.c.b16 %v2713, %v2711
  %v3272 = vpack.c.b16 %v2714, %v2712
  %v3273 = vpack.c.b16 %v2717, %v2715
  %v3274 = vpack.c.b16 %v2718, %v2716
  %v3275 = vpack.c.b16 %v2721, %v2719
  %v3276 = vpack.c.b16 %v2722, %v2720
  %v3277 = vpack.c.b16 %v2725, %v2723
  %v3278 = vpack.c.b16 %v2726, %v2724
  %v3279 = vpack.c.b16 %v2729, %v2727
  %v3280 = vpack.c.b16 %v2730, %v2728
  %v3281 = vpack.c.b16 %v2733, %v2731
  %v3282 = vpack.c.b16 %v2734, %v2732
  %v3283 = vpack.c.b16 %v2737, %v2735
  %v3284 = vpack.c.b16 %v2738, %v2736
  %v3285 = vpack.c.b16 %v2741, %v2739
  %v3286 = vpack.c.b16 %v2742, %v2740
  %v3287 = vpack.c.b16 %v2745, %v2743
  %v3288 = vpack.c.b16 %v2746, %v2744
  %v3289 = vpack.c.b16 %v2749, %v2747
  %v3290 = vpack.c.b16 %v2750, %v2748
  %v3291 = vpack.c.b16 %v2753, %v2751
  %v3292 = vpack.c.b16 %v2754, %v2752
  %v3293 = vpack.c.b16 %v2757, %v2755
  %v3294 = vpack.c.b16 %v2758, %v2756
  %v3295 = vpack.c.b16 %v2761, %v2759
  %v3296 = vpack.c.b16 %v2762, %v2760
  %v3297 = vpack.c.b16 %v2765, %v2763
  %v3298 = vpack.c.b16 %v2766, %v2764
  %v3299 = vpack.c.b16 %v2769, %v2767
  %v3300 = vpack.c.b16 %v2770, %v2768
  %v3301 = vpack.c.b16 %v2773, %v2771
  %v3302 = vpack.c.b16 %v2774, %v2772
  %v3303 = vpack.c.b16 %v2777, %v2775
  %v3304 = vpack.c.b16 %v2778, %v2776
  %v3305 = vpack.c.b16 %v2781, %v2779
  %v3306 = vpack.c.b16 %v2782, %v2780
  %v3307 = vpack.c.b16 %v2785, %v2783
  %v3308 = vpack.c.b16 %v2786, %v2784
  %v3309 = vpack.c.b16 %v2789, %v2787
  %v3310 = vpack.c.b16 %v2790, %v2788
  %v3311 = vpack.c.b16 %v2793, %v2791
  %v3312 = vpack.c.b16 %v2794, %v2792
  %v3313 = vpack.c.b16 %v2797, %v2795
  %v3314 = vpack.c.b16 %v2798, %v2796
  %v3315 = vpack.c.b16 %v2801, %v2799
  %v3316 = vpack.c.b16 %v2802, %v2800
  %v3317 = vpack.c.b16 %v2805, %v2803
  %v3318 = vpack.c.b16 %v2806, %v2804
  %v3319 = vpack.c.b16 %v2809, %v2807
  %v3320 = vpack.c.b16 %v2810, %v2808
  %v3321 = vpack.c.b16 %v2813, %v2811
  %v3322 = vpack.c.b16 %v2814, %v2812
  %v3323 = vpack.c.b16 %v2817, %v2815
  %v3324 = vpack.c.b16 %v2818, %v2816
  %v3325 = vpack.c.b16 %v2821, %v2819
  %v3326 = vpack.c.b16 %v2822, %v2820
  %v3327 = vpack.c.b16 %v2825, %v2823
  %v3328 = vpack.c.b16 %v2826, %v2824
  %v3329 = vpack.c.b16 %v2829, %v2827
  %v3330 = vpack.c.b16 %v2830, %v2828
  %v3331 = vpack.c.b16 %v2833, %v2831
  %v3332 = vpack.c.b16 %v2834, %v2832
  %v3333 = vpack.c.b16 %v2837, %v2835
  %v3334 = vpack.c.b16 %v2838, %v2836
  %v3335 = vpack.c.b16 %v2841, %v2839
  %v3336 = vpack.c.b16 %v2842, %v2840
  %v3337 = vpack.c.b16 %v2845, %v2843
  %v3338 = vpack.c.b16 %v2846, %v2844
  %v3339 = vpack.c.b16 %v2849, %v2847
  %v3340 = vpack.c.b16 %v2850, %v2848
  %v3341 = vpack.c.b16 %v2853, %v2851
  %v3342 = vpack.c.b16 %v2854, %v2852
  %v3343 = vpack.c.b16 %v2857, %v2855
  %v3344 = vpack.c.b16 %v2858, %v2856
  %v3345 = vpack.c.b16 %v2861, %v2859
  %v3346 = vpack.c.b16 %v2862, %v2860
  %v3347 = vpack.c.b16 %v2865, %v2863
  %v3348 = vpack.c.b16 %v2866, %v2864
  %v3349 = vpack.c.b16 %v2869, %v2867
  %v3350 = vpack.c.b16 %v2870, %v2868
  %v3351 = vpack.c.b16 %v2873, %v2871
  %v3352 = vpack.c.b16 %v2874, %v2872
  %v3353 = vpack.c.b16 %v2877, %v2875
  %v3354 = vpack.c.b16 %v2878, %v2876
  %v3355 = vpack.c.b16 %v2881, %v2879
  %v3356 = vpack.c.b16 %v2882, %v2880
  %v3357 = vpack.c.b16 %v2885, %v2883
  %v3358 = vpack.c.b16 %v2886, %v2884
  %v3359 = vpack.c.b16 %v2889, %v2887
  %v3360 = vpack.c.b16 %v2890, %v2888
  %v3361 = vpack.c.b16 %v2893, %v2891
  %v3362 = vpack.c.b16 %v2894, %v2892
  %v3363 = vpack.c.b16 %v2897, %v2895
  %v3364 = vpack.c.b16 %v2898, %v2896
  %v3365 = vpack.c.b16 %v2901, %v2899
  %v3366 = vpack.c.b16 %v2902, %v2900
  %v3367 = vpack.c.b16 %v2905, %v2903
  %v3368 = vpack.c.b16 %v2906, %v2904
  %v3369 = vpack.c.b16 %v2909, %v2907
  %v3370 = vpack.c.b16 %v2910, %v2908
  %v3371 = vpack.c.b16 %v2913, %v2911
  %v3372 = vpack.c.b16 %v2914, %v2912
  %v3373 = vpack.c.b16 %v2917, %v2915
  %v3374 = vpack.c.b16 %v2918, %v2916
  %v3375 = vpack.c.b16 %v2921, %v2919
  %v3376 = vpack.c.b16 %v2922, %v2920
  %v3377 = vpack.c.b16 %v2925, %v2923
  %v3378 = vpack.c.b16 %v2926, %v2924
  %v3379 = vpack.c.b16 %v2929, %v2927
  %v3380 = vpack.c.b16 %v2930, %v2928
  %v3381 = vpack.c.b16 %v2933, %v2931
  %v3382 = vpack.c.b16 %v2934, %v2932
  %v3383 = vpack.c.b16 %v2937, %v2935
  %v3384 = vpack.c.b16 %v2938, %v2936
  %v3385 = vpack.c.b16 %v2941, %v2939
  %v3386 = vpack.c.b16 %v2942, %v2940
  %v3387 = vpack.c.b16 %v2945, %v2943
  %v3388 = vpack.c.b16 %v2946, %v2944
  %v3389 = vpack.c.b16 %v2949, %v2947
  %v3390 = vpack.c.b16 %v2950, %v2948
  %v3391 = vpack.c.b16 %v2953, %v2951
  %v3392 = vpack.c.b16 %v2954, %v2952
  %v3393 = vpack.c.b16 %v2957, %v2955
  %v3394 = vpack.c.b16 %v2958, %v2956
  %v3395 = vpack.c.b16 %v2961, %v2959
  %v3396 = vpack.c.b16 %v2962, %v2960
  %v3397 = vpack.c.b16 %v2965, %v2963
  %v3398 = vpack.c.b16 %v2966, %v2964
  %v3399 = vpack.c.b16 %v2969, %v2967
  %v3400 = vpack.c.b16 %v2970, %v2968
  %v3401 = vpack.c.b16 %v2973, %v2971
  %v3402 = vpack.c.b16 %v2974, %v2972
  %v3403 = vpack.c.b16 %v2977, %v2975
  %v3404 = vpack.c.b16 %v2978, %v2976
  %v3405 = vpack.c.b16 %v2981, %v2979
  %v3406 = vpack.c.b16 %v2982, %v2980
  %v3407 = vpack.c.b16 %v2985, %v2983
  %v3408 = vpack.c.b16 %v2986, %v2984
  %v3409 = vpack.c.b16 %v2989, %v2987
  %v3410 = vpack.c.b16 %v2990, %v2988
  %v3411 = vpack.c.b16 %v2993, %v2991
  %v3412 = vpack.c.b16 %v2994, %v2992
  %v3413 = vpack.c.b16 %v2997, %v2995
  %v3414 = vpack.c.b16 %v2998, %v2996
  %v3415 = vpack.c.b16 %v3001, %v2999
  %v3416 = vpack.c.b16 %v3002, %v3000
  %v3417 = vpack.c.b16 %v3005, %v3003
  %v3418 = vpack.c.b16 %v3006, %v3004
  %v3419 = vpack.c.b16 %v3009, %v3007
  %v3420 = vpack.c.b16 %v3010, %v3008
  %v3421 = vpack.c.b16 %v3013, %v3011
  %v3422 = vpack.c.b16 %v3014, %v3012
  %v3423 = vpack.c.b16 %v3017, %v3015
  %v3424 = vpack.c.b16 %v3018, %v3016
  %v3425 = vpack.c.b16 %v3021, %v3019
  %v3426 = vpack.c.b16 %v3022, %v3020
  %v3427 = vpack.c.b16 %v3025, %v3023
  %v3428 = vpack.c.b16 %v3026, %v3024
  %v3429 = vpack.c.b16 %v3029, %v3027
  %v3430 = vpack.c.b16 %v3030, %v3028
  %3831 = vmatpush.bf16.msra.mxu0 %v3045
  %3832 = vmatpush.bf16.msra.mxu0 %v3043
  %3833 = vmatpush.bf16.msra.mxu0 %v3041
  %3834 = vmatpush.bf16.msra.mxu0 %v3039
  %3835 = vmatpush.bf16.msra.mxu0 %v3037
  %3836 = vmatpush.bf16.msra.mxu0 %v3035
  %3837 = vmatpush.bf16.msra.mxu0 %v3033
  %3838 = vmatpush.bf16.msra.mxu0 %v3031
  %3839 = vmatmul.bf16.gmra.mxu0 %v1731
  %v3840 = vpop.f32.mrf.mxu0
  %v3841 = vadd.f32 %v1575, %v3840
  %v3842 = vpop.f32.mrf.mxu0
  %v3843 = vadd.f32 %v1575, %v3842
  %3844 = vmatmul.bf16.gmra.mxu0 %v1756
  %v3845 = vpop.f32.mrf.mxu0
  %v3846 = vadd.f32 %v1575, %v3845
  %v3847 = vpop.f32.mrf.mxu0
  %v3848 = vadd.f32 %v1575, %v3847
  %3849 = vdwg.mxu0
  %3850 = vmatpush.bf16.msra.mxu0 %v3061
  %3851 = vmatpush.bf16.msra.mxu0 %v3059
  %3852 = vmatpush.bf16.msra.mxu0 %v3057
  %3853 = vmatpush.bf16.msra.mxu0 %v3055
  %3854 = vmatpush.bf16.msra.mxu0 %v3053
  %3855 = vmatpush.bf16.msra.mxu0 %v3051
  %3856 = vmatpush.bf16.msra.mxu0 %v3049
  %3857 = vmatpush.bf16.msra.mxu0 %v3047
  %3858 = vmatmul.bf16.gmra.mxu0 %v1732
  %v3859 = vpop.f32.mrf.mxu0
  %v3860 = vadd.f32 %v3841, %v3859
  %v3861 = vpop.f32.mrf.mxu0
  %v3862 = vadd.f32 %v3843, %v3861
  %3863 = vmatmul.bf16.gmra.mxu0 %v1757
  %v3864 = vpop.f32.mrf.mxu0
  %v3865 = vadd.f32 %v3846, %v3864
  %v3866 = vpop.f32.mrf.mxu0
  %v3867 = vadd.f32 %v3848, %v3866
  %3868 = vdwg.mxu0
  %3869 = vmatpush.bf16.msra.mxu0 %v3077
  %3870 = vmatpush.bf16.msra.mxu0 %v3075
  %3871 = vmatpush.bf16.msra.mxu0 %v3073
  %3872 = vmatpush.bf16.msra.mxu0 %v3071
  %3873 = vmatpush.bf16.msra.mxu0 %v3069
  %3874 = vmatpush.bf16.msra.mxu0 %v3067
  %3875 = vmatpush.bf16.msra.mxu0 %v3065
  %3876 = vmatpush.bf16.msra.mxu0 %v3063
  %3877 = vmatmul.bf16.gmra.mxu0 %v1733
  %v3878 = vpop.f32.mrf.mxu0
  %v3879 = vadd.f32 %v3860, %v3878
  %v3880 = vpop.f32.mrf.mxu0
  %v3881 = vadd.f32 %v3862, %v3880
  %3882 = vmatmul.bf16.gmra.mxu0 %v1758
  %v3883 = vpop.f32.mrf.mxu0
  %v3884 = vadd.f32 %v3865, %v3883
  %v3885 = vpop.f32.mrf.mxu0
  %v3886 = vadd.f32 %v3867, %v3885
  %3887 = vdwg.mxu0
  %3888 = vmatpush.bf16.msra.mxu0 %v3093
  %3889 = vmatpush.bf16.msra.mxu0 %v3091
  %3890 = vmatpush.bf16.msra.mxu0 %v3089
  %3891 = vmatpush.bf16.msra.mxu0 %v3087
  %3892 = vmatpush.bf16.msra.mxu0 %v3085
  %3893 = vmatpush.bf16.msra.mxu0 %v3083
  %3894 = vmatpush.bf16.msra.mxu0 %v3081
  %3895 = vmatpush.bf16.msra.mxu0 %v3079
  %3896 = vmatmul.bf16.gmra.mxu0 %v1734
  %v3897 = vpop.f32.mrf.mxu0
  %v3898 = vadd.f32 %v3879, %v3897
  %v3899 = vpop.f32.mrf.mxu0
  %v3900 = vadd.f32 %v3881, %v3899
  %3901 = vmatmul.bf16.gmra.mxu0 %v1759
  %v3902 = vpop.f32.mrf.mxu0
  %v3903 = vadd.f32 %v3884, %v3902
  %v3904 = vpop.f32.mrf.mxu0
  %v3905 = vadd.f32 %v3886, %v3904
  %3906 = vdwg.mxu0
  %3907 = vmatpush.bf16.msra.mxu0 %v3109
  %3908 = vmatpush.bf16.msra.mxu0 %v3107
  %3909 = vmatpush.bf16.msra.mxu0 %v3105
  %3910 = vmatpush.bf16.msra.mxu0 %v3103
  %3911 = vmatpush.bf16.msra.mxu0 %v3101
  %3912 = vmatpush.bf16.msra.mxu0 %v3099
  %3913 = vmatpush.bf16.msra.mxu0 %v3097
  %3914 = vmatpush.bf16.msra.mxu0 %v3095
  %3915 = vmatmul.bf16.gmra.mxu0 %v1735
  %v3916 = vpop.f32.mrf.mxu0
  %v3917 = vadd.f32 %v3898, %v3916
  %v3918 = vpop.f32.mrf.mxu0
  %v3919 = vadd.f32 %v3900, %v3918
  %3920 = vmatmul.bf16.gmra.mxu0 %v1760
  %v3921 = vpop.f32.mrf.mxu0
  %v3922 = vadd.f32 %v3903, %v3921
  %v3923 = vpop.f32.mrf.mxu0
  %v3924 = vadd.f32 %v3905, %v3923
  %3925 = vdwg.mxu0
  %3926 = vmatpush.bf16.msra.mxu0 %v3125
  %3927 = vmatpush.bf16.msra.mxu0 %v3123
  %3928 = vmatpush.bf16.msra.mxu0 %v3121
  %3929 = vmatpush.bf16.msra.mxu0 %v3119
  %3930 = vmatpush.bf16.msra.mxu0 %v3117
  %3931 = vmatpush.bf16.msra.mxu0 %v3115
  %3932 = vmatpush.bf16.msra.mxu0 %v3113
  %3933 = vmatpush.bf16.msra.mxu0 %v3111
  %3934 = vmatmul.bf16.gmra.mxu0 %v1736
  %v3935 = vpop.f32.mrf.mxu0
  %v3936 = vadd.f32 %v3917, %v3935
  %v3937 = vpop.f32.mrf.mxu0
  %v3938 = vadd.f32 %v3919, %v3937
  %3939 = vmatmul.bf16.gmra.mxu0 %v1761
  %v3940 = vpop.f32.mrf.mxu0
  %v3941 = vadd.f32 %v3922, %v3940
  %v3942 = vpop.f32.mrf.mxu0
  %v3943 = vadd.f32 %v3924, %v3942
  %3944 = vdwg.mxu0
  %3945 = vmatpush.bf16.msra.mxu0 %v3141
  %3946 = vmatpush.bf16.msra.mxu0 %v3139
  %3947 = vmatpush.bf16.msra.mxu0 %v3137
  %3948 = vmatpush.bf16.msra.mxu0 %v3135
  %3949 = vmatpush.bf16.msra.mxu0 %v3133
  %3950 = vmatpush.bf16.msra.mxu0 %v3131
  %3951 = vmatpush.bf16.msra.mxu0 %v3129
  %3952 = vmatpush.bf16.msra.mxu0 %v3127
  %3953 = vmatmul.bf16.gmra.mxu0 %v1737
  %v3954 = vpop.f32.mrf.mxu0
  %v3955 = vadd.f32 %v3936, %v3954
  %v3956 = vpop.f32.mrf.mxu0
  %v3957 = vadd.f32 %v3938, %v3956
  %3958 = vmatmul.bf16.gmra.mxu0 %v1762
  %v3959 = vpop.f32.mrf.mxu0
  %v3960 = vadd.f32 %v3941, %v3959
  %v3961 = vpop.f32.mrf.mxu0
  %v3962 = vadd.f32 %v3943, %v3961
  %3963 = vdwg.mxu0
  %3964 = vmatpush.bf16.msra.mxu0 %v3157
  %3965 = vmatpush.bf16.msra.mxu0 %v3155
  %3966 = vmatpush.bf16.msra.mxu0 %v3153
  %3967 = vmatpush.bf16.msra.mxu0 %v3151
  %3968 = vmatpush.bf16.msra.mxu0 %v3149
  %3969 = vmatpush.bf16.msra.mxu0 %v3147
  %3970 = vmatpush.bf16.msra.mxu0 %v3145
  %3971 = vmatpush.bf16.msra.mxu0 %v3143
  %3972 = vmatmul.bf16.gmra.mxu0 %v1738
  %v3973 = vpop.f32.mrf.mxu0
  %v3974 = vadd.f32 %v3955, %v3973
  %v3975 = vpop.f32.mrf.mxu0
  %v3976 = vadd.f32 %v3957, %v3975
  %3977 = vmatmul.bf16.gmra.mxu0 %v1763
  %v3978 = vpop.f32.mrf.mxu0
  %v3979 = vadd.f32 %v3960, %v3978
  %v3980 = vpop.f32.mrf.mxu0
  %v3981 = vadd.f32 %v3962, %v3980
  %3982 = vdwg.mxu0
  %3983 = vmatpush.bf16.msra.mxu0 %v3173
  %3984 = vmatpush.bf16.msra.mxu0 %v3171
  %3985 = vmatpush.bf16.msra.mxu0 %v3169
  %3986 = vmatpush.bf16.msra.mxu0 %v3167
  %3987 = vmatpush.bf16.msra.mxu0 %v3165
  %3988 = vmatpush.bf16.msra.mxu0 %v3163
  %3989 = vmatpush.bf16.msra.mxu0 %v3161
  %3990 = vmatpush.bf16.msra.mxu0 %v3159
  %3991 = vmatmul.bf16.gmra.mxu0 %v1739
  %v3992 = vpop.f32.mrf.mxu0
  %v3993 = vadd.f32 %v3974, %v3992
  %v3994 = vpop.f32.mrf.mxu0
  %v3995 = vadd.f32 %v3976, %v3994
  %3996 = vmatmul.bf16.gmra.mxu0 %v1764
  %v3997 = vpop.f32.mrf.mxu0
  %v3998 = vadd.f32 %v3979, %v3997
  %v3999 = vpop.f32.mrf.mxu0
  %v4000 = vadd.f32 %v3981, %v3999
  %4001 = vdwg.mxu0
  %4002 = vmatpush.bf16.msra.mxu0 %v3189
  %4003 = vmatpush.bf16.msra.mxu0 %v3187
  %4004 = vmatpush.bf16.msra.mxu0 %v3185
  %4005 = vmatpush.bf16.msra.mxu0 %v3183
  %4006 = vmatpush.bf16.msra.mxu0 %v3181
  %4007 = vmatpush.bf16.msra.mxu0 %v3179
  %4008 = vmatpush.bf16.msra.mxu0 %v3177
  %4009 = vmatpush.bf16.msra.mxu0 %v3175
  %4010 = vmatmul.bf16.gmra.mxu0 %v1740
  %v4011 = vpop.f32.mrf.mxu0
  %v4012 = vadd.f32 %v3993, %v4011
  %v4013 = vpop.f32.mrf.mxu0
  %v4014 = vadd.f32 %v3995, %v4013
  %4015 = vmatmul.bf16.gmra.mxu0 %v1765
  %v4016 = vpop.f32.mrf.mxu0
  %v4017 = vadd.f32 %v3998, %v4016
  %v4018 = vpop.f32.mrf.mxu0
  %v4019 = vadd.f32 %v4000, %v4018
  %4020 = vdwg.mxu0
  %4021 = vmatpush.bf16.msra.mxu0 %v3205
  %4022 = vmatpush.bf16.msra.mxu0 %v3203
  %4023 = vmatpush.bf16.msra.mxu0 %v3201
  %4024 = vmatpush.bf16.msra.mxu0 %v3199
  %4025 = vmatpush.bf16.msra.mxu0 %v3197
  %4026 = vmatpush.bf16.msra.mxu0 %v3195
  %4027 = vmatpush.bf16.msra.mxu0 %v3193
  %4028 = vmatpush.bf16.msra.mxu0 %v3191
  %4029 = vmatmul.bf16.gmra.mxu0 %v1741
  %v4030 = vpop.f32.mrf.mxu0
  %v4031 = vadd.f32 %v4012, %v4030
  %v4032 = vpop.f32.mrf.mxu0
  %v4033 = vadd.f32 %v4014, %v4032
  %4034 = vmatmul.bf16.gmra.mxu0 %v1766
  %v4035 = vpop.f32.mrf.mxu0
  %v4036 = vadd.f32 %v4017, %v4035
  %v4037 = vpop.f32.mrf.mxu0
  %v4038 = vadd.f32 %v4019, %v4037
  %4039 = vdwg.mxu0
  %4040 = vmatpush.bf16.msra.mxu0 %v3221
  %4041 = vmatpush.bf16.msra.mxu0 %v3219
  %4042 = vmatpush.bf16.msra.mxu0 %v3217
  %4043 = vmatpush.bf16.msra.mxu0 %v3215
  %4044 = vmatpush.bf16.msra.mxu0 %v3213
  %4045 = vmatpush.bf16.msra.mxu0 %v3211
  %4046 = vmatpush.bf16.msra.mxu0 %v3209
  %4047 = vmatpush.bf16.msra.mxu0 %v3207
  %4048 = vmatmul.bf16.gmra.mxu0 %v1742
  %v4049 = vpop.f32.mrf.mxu0
  %v4050 = vadd.f32 %v4031, %v4049
  %v4051 = vpop.f32.mrf.mxu0
  %v4052 = vadd.f32 %v4033, %v4051
  %4053 = vmatmul.bf16.gmra.mxu0 %v1767
  %v4054 = vpop.f32.mrf.mxu0
  %v4055 = vadd.f32 %v4036, %v4054
  %v4056 = vpop.f32.mrf.mxu0
  %v4057 = vadd.f32 %v4038, %v4056
  %4058 = vdwg.mxu0
  %4059 = vmatpush.bf16.msra.mxu0 %v3237
  %4060 = vmatpush.bf16.msra.mxu0 %v3235
  %4061 = vmatpush.bf16.msra.mxu0 %v3233
  %4062 = vmatpush.bf16.msra.mxu0 %v3231
  %4063 = vmatpush.bf16.msra.mxu0 %v3229
  %4064 = vmatpush.bf16.msra.mxu0 %v3227
  %4065 = vmatpush.bf16.msra.mxu0 %v3225
  %4066 = vmatpush.bf16.msra.mxu0 %v3223
  %4067 = vmatmul.bf16.gmra.mxu0 %v1743
  %v4068 = vpop.f32.mrf.mxu0
  %v4069 = vadd.f32 %v4050, %v4068
  %v4070 = vpop.f32.mrf.mxu0
  %v4071 = vadd.f32 %v4052, %v4070
  %4072 = vmatmul.bf16.gmra.mxu0 %v1768
  %v4073 = vpop.f32.mrf.mxu0
  %v4074 = vadd.f32 %v4055, %v4073
  %v4075 = vpop.f32.mrf.mxu0
  %v4076 = vadd.f32 %v4057, %v4075
  %4077 = vdwg.mxu0
  %4078 = vmatpush.bf16.msra.mxu0 %v3253
  %4079 = vmatpush.bf16.msra.mxu0 %v3251
  %4080 = vmatpush.bf16.msra.mxu0 %v3249
  %4081 = vmatpush.bf16.msra.mxu0 %v3247
  %4082 = vmatpush.bf16.msra.mxu0 %v3245
  %4083 = vmatpush.bf16.msra.mxu0 %v3243
  %4084 = vmatpush.bf16.msra.mxu0 %v3241
  %4085 = vmatpush.bf16.msra.mxu0 %v3239
  %4086 = vmatmul.bf16.gmra.mxu0 %v1744
  %v4087 = vpop.f32.mrf.mxu0
  %v4088 = vadd.f32 %v4069, %v4087
  %v4089 = vpop.f32.mrf.mxu0
  %v4090 = vadd.f32 %v4071, %v4089
  %4091 = vmatmul.bf16.gmra.mxu0 %v1769
  %v4092 = vpop.f32.mrf.mxu0
  %v4093 = vadd.f32 %v4074, %v4092
  %v4094 = vpop.f32.mrf.mxu0
  %v4095 = vadd.f32 %v4076, %v4094
  %4096 = vdwg.mxu0
  %4097 = vmatpush.bf16.msra.mxu0 %v3269
  %4098 = vmatpush.bf16.msra.mxu0 %v3267
  %4099 = vmatpush.bf16.msra.mxu0 %v3265
  %4100 = vmatpush.bf16.msra.mxu0 %v3263
  %4101 = vmatpush.bf16.msra.mxu0 %v3261
  %4102 = vmatpush.bf16.msra.mxu0 %v3259
  %4103 = vmatpush.bf16.msra.mxu0 %v3257
  %4104 = vmatpush.bf16.msra.mxu0 %v3255
  %4105 = vmatmul.bf16.gmra.mxu0 %v1745
  %v4106 = vpop.f32.mrf.mxu0
  %v4107 = vadd.f32 %v4088, %v4106
  %v4108 = vpop.f32.mrf.mxu0
  %v4109 = vadd.f32 %v4090, %v4108
  %4110 = vmatmul.bf16.gmra.mxu0 %v1770
  %v4111 = vpop.f32.mrf.mxu0
  %v4112 = vadd.f32 %v4093, %v4111
  %v4113 = vpop.f32.mrf.mxu0
  %v4114 = vadd.f32 %v4095, %v4113
  %4115 = vdwg.mxu0
  %4116 = vmatpush.bf16.msra.mxu0 %v3285
  %4117 = vmatpush.bf16.msra.mxu0 %v3283
  %4118 = vmatpush.bf16.msra.mxu0 %v3281
  %4119 = vmatpush.bf16.msra.mxu0 %v3279
  %4120 = vmatpush.bf16.msra.mxu0 %v3277
  %4121 = vmatpush.bf16.msra.mxu0 %v3275
  %4122 = vmatpush.bf16.msra.mxu0 %v3273
  %4123 = vmatpush.bf16.msra.mxu0 %v3271
  %4124 = vmatmul.bf16.gmra.mxu0 %v1746
  %v4125 = vpop.f32.mrf.mxu0
  %v4126 = vadd.f32 %v4107, %v4125
  %v4127 = vpop.f32.mrf.mxu0
  %v4128 = vadd.f32 %v4109, %v4127
  %4129 = vmatmul.bf16.gmra.mxu0 %v1771
  %v4130 = vpop.f32.mrf.mxu0
  %v4131 = vadd.f32 %v4112, %v4130
  %v4132 = vpop.f32.mrf.mxu0
  %v4133 = vadd.f32 %v4114, %v4132
  %4134 = vdwg.mxu0
  %4135 = vmatpush.bf16.msra.mxu0 %v3301
  %4136 = vmatpush.bf16.msra.mxu0 %v3299
  %4137 = vmatpush.bf16.msra.mxu0 %v3297
  %4138 = vmatpush.bf16.msra.mxu0 %v3295
  %4139 = vmatpush.bf16.msra.mxu0 %v3293
  %4140 = vmatpush.bf16.msra.mxu0 %v3291
  %4141 = vmatpush.bf16.msra.mxu0 %v3289
  %4142 = vmatpush.bf16.msra.mxu0 %v3287
  %4143 = vmatmul.bf16.gmra.mxu0 %v1747
  %v4144 = vpop.f32.mrf.mxu0
  %v4145 = vadd.f32 %v4126, %v4144
  %v4146 = vpop.f32.mrf.mxu0
  %v4147 = vadd.f32 %v4128, %v4146
  %4148 = vmatmul.bf16.gmra.mxu0 %v1772
  %v4149 = vpop.f32.mrf.mxu0
  %v4150 = vadd.f32 %v4131, %v4149
  %v4151 = vpop.f32.mrf.mxu0
  %v4152 = vadd.f32 %v4133, %v4151
  %4153 = vdwg.mxu0
  %4154 = vmatpush.bf16.msra.mxu0 %v3317
  %4155 = vmatpush.bf16.msra.mxu0 %v3315
  %4156 = vmatpush.bf16.msra.mxu0 %v3313
  %4157 = vmatpush.bf16.msra.mxu0 %v3311
  %4158 = vmatpush.bf16.msra.mxu0 %v3309
  %4159 = vmatpush.bf16.msra.mxu0 %v3307
  %4160 = vmatpush.bf16.msra.mxu0 %v3305
  %4161 = vmatpush.bf16.msra.mxu0 %v3303
  %4162 = vmatmul.bf16.gmra.mxu0 %v1748
  %v4163 = vpop.f32.mrf.mxu0
  %v4164 = vadd.f32 %v4145, %v4163
  %v4165 = vpop.f32.mrf.mxu0
  %v4166 = vadd.f32 %v4147, %v4165
  %4167 = vmatmul.bf16.gmra.mxu0 %v1773
  %v4168 = vpop.f32.mrf.mxu0
  %v4169 = vadd.f32 %v4150, %v4168
  %v4170 = vpop.f32.mrf.mxu0
  %v4171 = vadd.f32 %v4152, %v4170
  %4172 = vdwg.mxu0
  %4173 = vmatpush.bf16.msra.mxu0 %v3333
  %4174 = vmatpush.bf16.msra.mxu0 %v3331
  %4175 = vmatpush.bf16.msra.mxu0 %v3329
  %4176 = vmatpush.bf16.msra.mxu0 %v3327
  %4177 = vmatpush.bf16.msra.mxu0 %v3325
  %4178 = vmatpush.bf16.msra.mxu0 %v3323
  %4179 = vmatpush.bf16.msra.mxu0 %v3321
  %4180 = vmatpush.bf16.msra.mxu0 %v3319
  %4181 = vmatmul.bf16.gmra.mxu0 %v1749
  %v4182 = vpop.f32.mrf.mxu0
  %v4183 = vadd.f32 %v4164, %v4182
  %v4184 = vpop.f32.mrf.mxu0
  %v4185 = vadd.f32 %v4166, %v4184
  %4186 = vmatmul.bf16.gmra.mxu0 %v1774
  %v4187 = vpop.f32.mrf.mxu0
  %v4188 = vadd.f32 %v4169, %v4187
  %v4189 = vpop.f32.mrf.mxu0
  %v4190 = vadd.f32 %v4171, %v4189
  %4191 = vdwg.mxu0
  %4192 = vmatpush.bf16.msra.mxu0 %v3349
  %4193 = vmatpush.bf16.msra.mxu0 %v3347
  %4194 = vmatpush.bf16.msra.mxu0 %v3345
  %4195 = vmatpush.bf16.msra.mxu0 %v3343
  %4196 = vmatpush.bf16.msra.mxu0 %v3341
  %4197 = vmatpush.bf16.msra.mxu0 %v3339
  %4198 = vmatpush.bf16.msra.mxu0 %v3337
  %4199 = vmatpush.bf16.msra.mxu0 %v3335
  %4200 = vmatmul.bf16.gmra.mxu0 %v1750
  %v4201 = vpop.f32.mrf.mxu0
  %v4202 = vadd.f32 %v4183, %v4201
  %v4203 = vpop.f32.mrf.mxu0
  %v4204 = vadd.f32 %v4185, %v4203
  %4205 = vmatmul.bf16.gmra.mxu0 %v1775
  %v4206 = vpop.f32.mrf.mxu0
  %v4207 = vadd.f32 %v4188, %v4206
  %v4208 = vpop.f32.mrf.mxu0
  %v4209 = vadd.f32 %v4190, %v4208
  %4210 = vdwg.mxu0
  %4211 = vmatpush.bf16.msra.mxu0 %v3365
  %4212 = vmatpush.bf16.msra.mxu0 %v3363
  %4213 = vmatpush.bf16.msra.mxu0 %v3361
  %4214 = vmatpush.bf16.msra.mxu0 %v3359
  %4215 = vmatpush.bf16.msra.mxu0 %v3357
  %4216 = vmatpush.bf16.msra.mxu0 %v3355
  %4217 = vmatpush.bf16.msra.mxu0 %v3353
  %4218 = vmatpush.bf16.msra.mxu0 %v3351
  %4219 = vmatmul.bf16.gmra.mxu0 %v1751
  %v4220 = vpop.f32.mrf.mxu0
  %v4221 = vadd.f32 %v4202, %v4220
  %v4222 = vpop.f32.mrf.mxu0
  %v4223 = vadd.f32 %v4204, %v4222
  %4224 = vmatmul.bf16.gmra.mxu0 %v1776
  %v4225 = vpop.f32.mrf.mxu0
  %v4226 = vadd.f32 %v4207, %v4225
  %v4227 = vpop.f32.mrf.mxu0
  %v4228 = vadd.f32 %v4209, %v4227
  %4229 = vdwg.mxu0
  %4230 = vmatpush.bf16.msra.mxu0 %v3381
  %4231 = vmatpush.bf16.msra.mxu0 %v3379
  %4232 = vmatpush.bf16.msra.mxu0 %v3377
  %4233 = vmatpush.bf16.msra.mxu0 %v3375
  %4234 = vmatpush.bf16.msra.mxu0 %v3373
  %4235 = vmatpush.bf16.msra.mxu0 %v3371
  %4236 = vmatpush.bf16.msra.mxu0 %v3369
  %4237 = vmatpush.bf16.msra.mxu0 %v3367
  %4238 = vmatmul.bf16.gmra.mxu0 %v1752
  %v4239 = vpop.f32.mrf.mxu0
  %v4240 = vadd.f32 %v4221, %v4239
  %v4241 = vpop.f32.mrf.mxu0
  %v4242 = vadd.f32 %v4223, %v4241
  %4243 = vmatmul.bf16.gmra.mxu0 %v1777
  %v4244 = vpop.f32.mrf.mxu0
  %v4245 = vadd.f32 %v4226, %v4244
  %v4246 = vpop.f32.mrf.mxu0
  %v4247 = vadd.f32 %v4228, %v4246
  %4248 = vdwg.mxu0
  %4249 = vmatpush.bf16.msra.mxu0 %v3397
  %4250 = vmatpush.bf16.msra.mxu0 %v3395
  %4251 = vmatpush.bf16.msra.mxu0 %v3393
  %4252 = vmatpush.bf16.msra.mxu0 %v3391
  %4253 = vmatpush.bf16.msra.mxu0 %v3389
  %4254 = vmatpush.bf16.msra.mxu0 %v3387
  %4255 = vmatpush.bf16.msra.mxu0 %v3385
  %4256 = vmatpush.bf16.msra.mxu0 %v3383
  %4257 = vmatmul.bf16.gmra.mxu0 %v1753
  %v4258 = vpop.f32.mrf.mxu0
  %v4259 = vadd.f32 %v4240, %v4258
  %v4260 = vpop.f32.mrf.mxu0
  %v4261 = vadd.f32 %v4242, %v4260
  %4262 = vmatmul.bf16.gmra.mxu0 %v1778
  %v4263 = vpop.f32.mrf.mxu0
  %v4264 = vadd.f32 %v4245, %v4263
  %v4265 = vpop.f32.mrf.mxu0
  %v4266 = vadd.f32 %v4247, %v4265
  %4267 = vdwg.mxu0
  %4268 = vmatpush.bf16.msra.mxu0 %v3413
  %4269 = vmatpush.bf16.msra.mxu0 %v3411
  %4270 = vmatpush.bf16.msra.mxu0 %v3409
  %4271 = vmatpush.bf16.msra.mxu0 %v3407
  %4272 = vmatpush.bf16.msra.mxu0 %v3405
  %4273 = vmatpush.bf16.msra.mxu0 %v3403
  %4274 = vmatpush.bf16.msra.mxu0 %v3401
  %4275 = vmatpush.bf16.msra.mxu0 %v3399
  %4276 = vmatmul.bf16.gmra.mxu0 %v1754
  %v4277 = vpop.f32.mrf.mxu0
  %v4278 = vadd.f32 %v4259, %v4277
  %v4279 = vpop.f32.mrf.mxu0
  %v4280 = vadd.f32 %v4261, %v4279
  %4281 = vmatmul.bf16.gmra.mxu0 %v1779
  %v4282 = vpop.f32.mrf.mxu0
  %v4283 = vadd.f32 %v4264, %v4282
  %v4284 = vpop.f32.mrf.mxu0
  %v4285 = vadd.f32 %v4266, %v4284
  %4286 = vdwg.mxu0
  %4287 = vmatpush.bf16.msra.mxu0 %v3429
  %4288 = vmatpush.bf16.msra.mxu0 %v3427
  %4289 = vmatpush.bf16.msra.mxu0 %v3425
  %4290 = vmatpush.bf16.msra.mxu0 %v3423
  %4291 = vmatpush.bf16.msra.mxu0 %v3421
  %4292 = vmatpush.bf16.msra.mxu0 %v3419
  %4293 = vmatpush.bf16.msra.mxu0 %v3417
  %4294 = vmatpush.bf16.msra.mxu0 %v3415
  %4295 = vmatmul.bf16.gmra.mxu0 %v1755
  %v4296 = vpop.f32.mrf.mxu0
  %v4297 = vadd.f32 %v4278, %v4296
  %v4298 = vpop.f32.mrf.mxu0
  %v4299 = vadd.f32 %v4280, %v4298
  %4300 = vmatmul.bf16.gmra.mxu0 %v1780
  %v4301 = vpop.f32.mrf.mxu0
  %v4302 = vadd.f32 %v4283, %v4301
  %v4303 = vpop.f32.mrf.mxu0
  %v4304 = vadd.f32 %v4285, %v4303
  %4305 = vdwg.mxu0
  %4306 = vmatpush.bf16.msra.mxu0 %v3046
  %4307 = vmatpush.bf16.msra.mxu0 %v3044
  %4308 = vmatpush.bf16.msra.mxu0 %v3042
  %4309 = vmatpush.bf16.msra.mxu0 %v3040
  %4310 = vmatpush.bf16.msra.mxu0 %v3038
  %4311 = vmatpush.bf16.msra.mxu0 %v3036
  %4312 = vmatpush.bf16.msra.mxu0 %v3034
  %4313 = vmatpush.bf16.msra.mxu0 %v3032
  %4314 = vmatmul.bf16.gmra.mxu0 %v1731
  %v4315 = vpop.f32.mrf.mxu0
  %v4316 = vadd.f32 %v1576, %v4315
  %v4317 = vpop.f32.mrf.mxu0
  %v4318 = vadd.f32 %v1576, %v4317
  %4319 = vmatmul.bf16.gmra.mxu0 %v1756
  %v4320 = vpop.f32.mrf.mxu0
  %v4321 = vadd.f32 %v1576, %v4320
  %v4322 = vpop.f32.mrf.mxu0
  %v4323 = vadd.f32 %v1576, %v4322
  %4324 = vdwg.mxu0
  %4325 = vmatpush.bf16.msra.mxu0 %v3062
  %4326 = vmatpush.bf16.msra.mxu0 %v3060
  %4327 = vmatpush.bf16.msra.mxu0 %v3058
  %4328 = vmatpush.bf16.msra.mxu0 %v3056
  %4329 = vmatpush.bf16.msra.mxu0 %v3054
  %4330 = vmatpush.bf16.msra.mxu0 %v3052
  %4331 = vmatpush.bf16.msra.mxu0 %v3050
  %4332 = vmatpush.bf16.msra.mxu0 %v3048
  %4333 = vmatmul.bf16.gmra.mxu0 %v1732
  %v4334 = vpop.f32.mrf.mxu0
  %v4335 = vadd.f32 %v4316, %v4334
  %v4336 = vpop.f32.mrf.mxu0
  %v4337 = vadd.f32 %v4318, %v4336
  %4338 = vmatmul.bf16.gmra.mxu0 %v1757
  %v4339 = vpop.f32.mrf.mxu0
  %v4340 = vadd.f32 %v4321, %v4339
  %v4341 = vpop.f32.mrf.mxu0
  %v4342 = vadd.f32 %v4323, %v4341
  %4343 = vdwg.mxu0
  %4344 = vmatpush.bf16.msra.mxu0 %v3078
  %4345 = vmatpush.bf16.msra.mxu0 %v3076
  %4346 = vmatpush.bf16.msra.mxu0 %v3074
  %4347 = vmatpush.bf16.msra.mxu0 %v3072
  %4348 = vmatpush.bf16.msra.mxu0 %v3070
  %4349 = vmatpush.bf16.msra.mxu0 %v3068
  %4350 = vmatpush.bf16.msra.mxu0 %v3066
  %4351 = vmatpush.bf16.msra.mxu0 %v3064
  %4352 = vmatmul.bf16.gmra.mxu0 %v1733
  %v4353 = vpop.f32.mrf.mxu0
  %v4354 = vadd.f32 %v4335, %v4353
  %v4355 = vpop.f32.mrf.mxu0
  %v4356 = vadd.f32 %v4337, %v4355
  %4357 = vmatmul.bf16.gmra.mxu0 %v1758
  %v4358 = vpop.f32.mrf.mxu0
  %v4359 = vadd.f32 %v4340, %v4358
  %v4360 = vpop.f32.mrf.mxu0
  %v4361 = vadd.f32 %v4342, %v4360
  %4362 = vdwg.mxu0
  %4363 = vmatpush.bf16.msra.mxu0 %v3094
  %4364 = vmatpush.bf16.msra.mxu0 %v3092
  %4365 = vmatpush.bf16.msra.mxu0 %v3090
  %4366 = vmatpush.bf16.msra.mxu0 %v3088
  %4367 = vmatpush.bf16.msra.mxu0 %v3086
  %4368 = vmatpush.bf16.msra.mxu0 %v3084
  %4369 = vmatpush.bf16.msra.mxu0 %v3082
  %4370 = vmatpush.bf16.msra.mxu0 %v3080
  %4371 = vmatmul.bf16.gmra.mxu0 %v1734
  %v4372 = vpop.f32.mrf.mxu0
  %v4373 = vadd.f32 %v4354, %v4372
  %v4374 = vpop.f32.mrf.mxu0
  %v4375 = vadd.f32 %v4356, %v4374
  %4376 = vmatmul.bf16.gmra.mxu0 %v1759
  %v4377 = vpop.f32.mrf.mxu0
  %v4378 = vadd.f32 %v4359, %v4377
  %v4379 = vpop.f32.mrf.mxu0
  %v4380 = vadd.f32 %v4361, %v4379
  %4381 = vdwg.mxu0
  %4382 = vmatpush.bf16.msra.mxu0 %v3110
  %4383 = vmatpush.bf16.msra.mxu0 %v3108
  %4384 = vmatpush.bf16.msra.mxu0 %v3106
  %4385 = vmatpush.bf16.msra.mxu0 %v3104
  %4386 = vmatpush.bf16.msra.mxu0 %v3102
  %4387 = vmatpush.bf16.msra.mxu0 %v3100
  %4388 = vmatpush.bf16.msra.mxu0 %v3098
  %4389 = vmatpush.bf16.msra.mxu0 %v3096
  %4390 = vmatmul.bf16.gmra.mxu0 %v1735
  %v4391 = vpop.f32.mrf.mxu0
  %v4392 = vadd.f32 %v4373, %v4391
  %v4393 = vpop.f32.mrf.mxu0
  %v4394 = vadd.f32 %v4375, %v4393
  %4395 = vmatmul.bf16.gmra.mxu0 %v1760
  %v4396 = vpop.f32.mrf.mxu0
  %v4397 = vadd.f32 %v4378, %v4396
  %v4398 = vpop.f32.mrf.mxu0
  %v4399 = vadd.f32 %v4380, %v4398
  %4400 = vdwg.mxu0
  %4401 = vmatpush.bf16.msra.mxu0 %v3126
  %4402 = vmatpush.bf16.msra.mxu0 %v3124
  %4403 = vmatpush.bf16.msra.mxu0 %v3122
  %4404 = vmatpush.bf16.msra.mxu0 %v3120
  %4405 = vmatpush.bf16.msra.mxu0 %v3118
  %4406 = vmatpush.bf16.msra.mxu0 %v3116
  %4407 = vmatpush.bf16.msra.mxu0 %v3114
  %4408 = vmatpush.bf16.msra.mxu0 %v3112
  %4409 = vmatmul.bf16.gmra.mxu0 %v1736
  %v4410 = vpop.f32.mrf.mxu0
  %v4411 = vadd.f32 %v4392, %v4410
  %v4412 = vpop.f32.mrf.mxu0
  %v4413 = vadd.f32 %v4394, %v4412
  %4414 = vmatmul.bf16.gmra.mxu0 %v1761
  %v4415 = vpop.f32.mrf.mxu0
  %v4416 = vadd.f32 %v4397, %v4415
  %v4417 = vpop.f32.mrf.mxu0
  %v4418 = vadd.f32 %v4399, %v4417
  %4419 = vdwg.mxu0
  %4420 = vmatpush.bf16.msra.mxu0 %v3142
  %4421 = vmatpush.bf16.msra.mxu0 %v3140
  %4422 = vmatpush.bf16.msra.mxu0 %v3138
  %4423 = vmatpush.bf16.msra.mxu0 %v3136
  %4424 = vmatpush.bf16.msra.mxu0 %v3134
  %4425 = vmatpush.bf16.msra.mxu0 %v3132
  %4426 = vmatpush.bf16.msra.mxu0 %v3130
  %4427 = vmatpush.bf16.msra.mxu0 %v3128
  %4428 = vmatmul.bf16.gmra.mxu0 %v1737
  %v4429 = vpop.f32.mrf.mxu0
  %v4430 = vadd.f32 %v4411, %v4429
  %v4431 = vpop.f32.mrf.mxu0
  %v4432 = vadd.f32 %v4413, %v4431
  %4433 = vmatmul.bf16.gmra.mxu0 %v1762
  %v4434 = vpop.f32.mrf.mxu0
  %v4435 = vadd.f32 %v4416, %v4434
  %v4436 = vpop.f32.mrf.mxu0
  %v4437 = vadd.f32 %v4418, %v4436
  %4438 = vdwg.mxu0
  %4439 = vmatpush.bf16.msra.mxu0 %v3158
  %4440 = vmatpush.bf16.msra.mxu0 %v3156
  %4441 = vmatpush.bf16.msra.mxu0 %v3154
  %4442 = vmatpush.bf16.msra.mxu0 %v3152
  %4443 = vmatpush.bf16.msra.mxu0 %v3150
  %4444 = vmatpush.bf16.msra.mxu0 %v3148
  %4445 = vmatpush.bf16.msra.mxu0 %v3146
  %4446 = vmatpush.bf16.msra.mxu0 %v3144
  %4447 = vmatmul.bf16.gmra.mxu0 %v1738
  %v4448 = vpop.f32.mrf.mxu0
  %v4449 = vadd.f32 %v4430, %v4448
  %v4450 = vpop.f32.mrf.mxu0
  %v4451 = vadd.f32 %v4432, %v4450
  %4452 = vmatmul.bf16.gmra.mxu0 %v1763
  %v4453 = vpop.f32.mrf.mxu0
  %v4454 = vadd.f32 %v4435, %v4453
  %v4455 = vpop.f32.mrf.mxu0
  %v4456 = vadd.f32 %v4437, %v4455
  %4457 = vdwg.mxu0
  %4458 = vmatpush.bf16.msra.mxu0 %v3174
  %4459 = vmatpush.bf16.msra.mxu0 %v3172
  %4460 = vmatpush.bf16.msra.mxu0 %v3170
  %4461 = vmatpush.bf16.msra.mxu0 %v3168
  %4462 = vmatpush.bf16.msra.mxu0 %v3166
  %4463 = vmatpush.bf16.msra.mxu0 %v3164
  %4464 = vmatpush.bf16.msra.mxu0 %v3162
  %4465 = vmatpush.bf16.msra.mxu0 %v3160
  %4466 = vmatmul.bf16.gmra.mxu0 %v1739
  %v4467 = vpop.f32.mrf.mxu0
  %v4468 = vadd.f32 %v4449, %v4467
  %v4469 = vpop.f32.mrf.mxu0
  %v4470 = vadd.f32 %v4451, %v4469
  %4471 = vmatmul.bf16.gmra.mxu0 %v1764
  %v4472 = vpop.f32.mrf.mxu0
  %v4473 = vadd.f32 %v4454, %v4472
  %v4474 = vpop.f32.mrf.mxu0
  %v4475 = vadd.f32 %v4456, %v4474
  %4476 = vdwg.mxu0
  %4477 = vmatpush.bf16.msra.mxu0 %v3190
  %4478 = vmatpush.bf16.msra.mxu0 %v3188
  %4479 = vmatpush.bf16.msra.mxu0 %v3186
  %4480 = vmatpush.bf16.msra.mxu0 %v3184
  %4481 = vmatpush.bf16.msra.mxu0 %v3182
  %4482 = vmatpush.bf16.msra.mxu0 %v3180
  %4483 = vmatpush.bf16.msra.mxu0 %v3178
  %4484 = vmatpush.bf16.msra.mxu0 %v3176
  %4485 = vmatmul.bf16.gmra.mxu0 %v1740
  %v4486 = vpop.f32.mrf.mxu0
  %v4487 = vadd.f32 %v4468, %v4486
  %v4488 = vpop.f32.mrf.mxu0
  %v4489 = vadd.f32 %v4470, %v4488
  %4490 = vmatmul.bf16.gmra.mxu0 %v1765
  %v4491 = vpop.f32.mrf.mxu0
  %v4492 = vadd.f32 %v4473, %v4491
  %v4493 = vpop.f32.mrf.mxu0
  %v4494 = vadd.f32 %v4475, %v4493
  %4495 = vdwg.mxu0
  %4496 = vmatpush.bf16.msra.mxu0 %v3206
  %4497 = vmatpush.bf16.msra.mxu0 %v3204
  %4498 = vmatpush.bf16.msra.mxu0 %v3202
  %4499 = vmatpush.bf16.msra.mxu0 %v3200
  %4500 = vmatpush.bf16.msra.mxu0 %v3198
  %4501 = vmatpush.bf16.msra.mxu0 %v3196
  %4502 = vmatpush.bf16.msra.mxu0 %v3194
  %4503 = vmatpush.bf16.msra.mxu0 %v3192
  %4504 = vmatmul.bf16.gmra.mxu0 %v1741
  %v4505 = vpop.f32.mrf.mxu0
  %v4506 = vadd.f32 %v4487, %v4505
  %v4507 = vpop.f32.mrf.mxu0
  %v4508 = vadd.f32 %v4489, %v4507
  %4509 = vmatmul.bf16.gmra.mxu0 %v1766
  %v4510 = vpop.f32.mrf.mxu0
  %v4511 = vadd.f32 %v4492, %v4510
  %v4512 = vpop.f32.mrf.mxu0
  %v4513 = vadd.f32 %v4494, %v4512
  %4514 = vdwg.mxu0
  %4515 = vmatpush.bf16.msra.mxu0 %v3222
  %4516 = vmatpush.bf16.msra.mxu0 %v3220
  %4517 = vmatpush.bf16.msra.mxu0 %v3218
  %4518 = vmatpush.bf16.msra.mxu0 %v3216
  %4519 = vmatpush.bf16.msra.mxu0 %v3214
  %4520 = vmatpush.bf16.msra.mxu0 %v3212
  %4521 = vmatpush.bf16.msra.mxu0 %v3210
  %4522 = vmatpush.bf16.msra.mxu0 %v3208
  %4523 = vmatmul.bf16.gmra.mxu0 %v1742
  %v4524 = vpop.f32.mrf.mxu0
  %v4525 = vadd.f32 %v4506, %v4524
  %v4526 = vpop.f32.mrf.mxu0
  %v4527 = vadd.f32 %v4508, %v4526
  %4528 = vmatmul.bf16.gmra.mxu0 %v1767
  %v4529 = vpop.f32.mrf.mxu0
  %v4530 = vadd.f32 %v4511, %v4529
  %v4531 = vpop.f32.mrf.mxu0
  %v4532 = vadd.f32 %v4513, %v4531
  %4533 = vdwg.mxu0
  %4534 = vmatpush.bf16.msra.mxu0 %v3238
  %4535 = vmatpush.bf16.msra.mxu0 %v3236
  %4536 = vmatpush.bf16.msra.mxu0 %v3234
  %4537 = vmatpush.bf16.msra.mxu0 %v3232
  %4538 = vmatpush.bf16.msra.mxu0 %v3230
  %4539 = vmatpush.bf16.msra.mxu0 %v3228
  %4540 = vmatpush.bf16.msra.mxu0 %v3226
  %4541 = vmatpush.bf16.msra.mxu0 %v3224
  %4542 = vmatmul.bf16.gmra.mxu0 %v1743
  %v4543 = vpop.f32.mrf.mxu0
  %v4544 = vadd.f32 %v4525, %v4543
  %v4545 = vpop.f32.mrf.mxu0
  %v4546 = vadd.f32 %v4527, %v4545
  %4547 = vmatmul.bf16.gmra.mxu0 %v1768
  %v4548 = vpop.f32.mrf.mxu0
  %v4549 = vadd.f32 %v4530, %v4548
  %v4550 = vpop.f32.mrf.mxu0
  %v4551 = vadd.f32 %v4532, %v4550
  %4552 = vdwg.mxu0
  %4553 = vmatpush.bf16.msra.mxu0 %v3254
  %4554 = vmatpush.bf16.msra.mxu0 %v3252
  %4555 = vmatpush.bf16.msra.mxu0 %v3250
  %4556 = vmatpush.bf16.msra.mxu0 %v3248
  %4557 = vmatpush.bf16.msra.mxu0 %v3246
  %4558 = vmatpush.bf16.msra.mxu0 %v3244
  %4559 = vmatpush.bf16.msra.mxu0 %v3242
  %4560 = vmatpush.bf16.msra.mxu0 %v3240
  %4561 = vmatmul.bf16.gmra.mxu0 %v1744
  %v4562 = vpop.f32.mrf.mxu0
  %v4563 = vadd.f32 %v4544, %v4562
  %v4564 = vpop.f32.mrf.mxu0
  %v4565 = vadd.f32 %v4546, %v4564
  %4566 = vmatmul.bf16.gmra.mxu0 %v1769
  %v4567 = vpop.f32.mrf.mxu0
  %v4568 = vadd.f32 %v4549, %v4567
  %v4569 = vpop.f32.mrf.mxu0
  %v4570 = vadd.f32 %v4551, %v4569
  %4571 = vdwg.mxu0
  %4572 = vmatpush.bf16.msra.mxu0 %v3270
  %4573 = vmatpush.bf16.msra.mxu0 %v3268
  %4574 = vmatpush.bf16.msra.mxu0 %v3266
  %4575 = vmatpush.bf16.msra.mxu0 %v3264
  %4576 = vmatpush.bf16.msra.mxu0 %v3262
  %4577 = vmatpush.bf16.msra.mxu0 %v3260
  %4578 = vmatpush.bf16.msra.mxu0 %v3258
  %4579 = vmatpush.bf16.msra.mxu0 %v3256
  %4580 = vmatmul.bf16.gmra.mxu0 %v1745
  %v4581 = vpop.f32.mrf.mxu0
  %v4582 = vadd.f32 %v4563, %v4581
  %v4583 = vpop.f32.mrf.mxu0
  %v4584 = vadd.f32 %v4565, %v4583
  %4585 = vmatmul.bf16.gmra.mxu0 %v1770
  %v4586 = vpop.f32.mrf.mxu0
  %v4587 = vadd.f32 %v4568, %v4586
  %v4588 = vpop.f32.mrf.mxu0
  %v4589 = vadd.f32 %v4570, %v4588
  %4590 = vdwg.mxu0
  %4591 = vmatpush.bf16.msra.mxu0 %v3286
  %4592 = vmatpush.bf16.msra.mxu0 %v3284
  %4593 = vmatpush.bf16.msra.mxu0 %v3282
  %4594 = vmatpush.bf16.msra.mxu0 %v3280
  %4595 = vmatpush.bf16.msra.mxu0 %v3278
  %4596 = vmatpush.bf16.msra.mxu0 %v3276
  %4597 = vmatpush.bf16.msra.mxu0 %v3274
  %4598 = vmatpush.bf16.msra.mxu0 %v3272
  %4599 = vmatmul.bf16.gmra.mxu0 %v1746
  %v4600 = vpop.f32.mrf.mxu0
  %v4601 = vadd.f32 %v4582, %v4600
  %v4602 = vpop.f32.mrf.mxu0
  %v4603 = vadd.f32 %v4584, %v4602
  %4604 = vmatmul.bf16.gmra.mxu0 %v1771
  %v4605 = vpop.f32.mrf.mxu0
  %v4606 = vadd.f32 %v4587, %v4605
  %v4607 = vpop.f32.mrf.mxu0
  %v4608 = vadd.f32 %v4589, %v4607
  %4609 = vdwg.mxu0
  %4610 = vmatpush.bf16.msra.mxu0 %v3302
  %4611 = vmatpush.bf16.msra.mxu0 %v3300
  %4612 = vmatpush.bf16.msra.mxu0 %v3298
  %4613 = vmatpush.bf16.msra.mxu0 %v3296
  %4614 = vmatpush.bf16.msra.mxu0 %v3294
  %4615 = vmatpush.bf16.msra.mxu0 %v3292
  %4616 = vmatpush.bf16.msra.mxu0 %v3290
  %4617 = vmatpush.bf16.msra.mxu0 %v3288
  %4618 = vmatmul.bf16.gmra.mxu0 %v1747
  %v4619 = vpop.f32.mrf.mxu0
  %v4620 = vadd.f32 %v4601, %v4619
  %v4621 = vpop.f32.mrf.mxu0
  %v4622 = vadd.f32 %v4603, %v4621
  %4623 = vmatmul.bf16.gmra.mxu0 %v1772
  %v4624 = vpop.f32.mrf.mxu0
  %v4625 = vadd.f32 %v4606, %v4624
  %v4626 = vpop.f32.mrf.mxu0
  %v4627 = vadd.f32 %v4608, %v4626
  %4628 = vdwg.mxu0
  %4629 = vmatpush.bf16.msra.mxu0 %v3318
  %4630 = vmatpush.bf16.msra.mxu0 %v3316
  %4631 = vmatpush.bf16.msra.mxu0 %v3314
  %4632 = vmatpush.bf16.msra.mxu0 %v3312
  %4633 = vmatpush.bf16.msra.mxu0 %v3310
  %4634 = vmatpush.bf16.msra.mxu0 %v3308
  %4635 = vmatpush.bf16.msra.mxu0 %v3306
  %4636 = vmatpush.bf16.msra.mxu0 %v3304
  %4637 = vmatmul.bf16.gmra.mxu0 %v1748
  %v4638 = vpop.f32.mrf.mxu0
  %v4639 = vadd.f32 %v4620, %v4638
  %v4640 = vpop.f32.mrf.mxu0
  %v4641 = vadd.f32 %v4622, %v4640
  %4642 = vmatmul.bf16.gmra.mxu0 %v1773
  %v4643 = vpop.f32.mrf.mxu0
  %v4644 = vadd.f32 %v4625, %v4643
  %v4645 = vpop.f32.mrf.mxu0
  %v4646 = vadd.f32 %v4627, %v4645
  %4647 = vdwg.mxu0
  %4648 = vmatpush.bf16.msra.mxu0 %v3334
  %4649 = vmatpush.bf16.msra.mxu0 %v3332
  %4650 = vmatpush.bf16.msra.mxu0 %v3330
  %4651 = vmatpush.bf16.msra.mxu0 %v3328
  %4652 = vmatpush.bf16.msra.mxu0 %v3326
  %4653 = vmatpush.bf16.msra.mxu0 %v3324
  %4654 = vmatpush.bf16.msra.mxu0 %v3322
  %4655 = vmatpush.bf16.msra.mxu0 %v3320
  %4656 = vmatmul.bf16.gmra.mxu0 %v1749
  %v4657 = vpop.f32.mrf.mxu0
  %v4658 = vadd.f32 %v4639, %v4657
  %v4659 = vpop.f32.mrf.mxu0
  %v4660 = vadd.f32 %v4641, %v4659
  %4661 = vmatmul.bf16.gmra.mxu0 %v1774
  %v4662 = vpop.f32.mrf.mxu0
  %v4663 = vadd.f32 %v4644, %v4662
  %v4664 = vpop.f32.mrf.mxu0
  %v4665 = vadd.f32 %v4646, %v4664
  %4666 = vdwg.mxu0
  %4667 = vmatpush.bf16.msra.mxu0 %v3350
  %4668 = vmatpush.bf16.msra.mxu0 %v3348
  %4669 = vmatpush.bf16.msra.mxu0 %v3346
  %4670 = vmatpush.bf16.msra.mxu0 %v3344
  %4671 = vmatpush.bf16.msra.mxu0 %v3342
  %4672 = vmatpush.bf16.msra.mxu0 %v3340
  %4673 = vmatpush.bf16.msra.mxu0 %v3338
  %4674 = vmatpush.bf16.msra.mxu0 %v3336
  %4675 = vmatmul.bf16.gmra.mxu0 %v1750
  %v4676 = vpop.f32.mrf.mxu0
  %v4677 = vadd.f32 %v4658, %v4676
  %v4678 = vpop.f32.mrf.mxu0
  %v4679 = vadd.f32 %v4660, %v4678
  %4680 = vmatmul.bf16.gmra.mxu0 %v1775
  %v4681 = vpop.f32.mrf.mxu0
  %v4682 = vadd.f32 %v4663, %v4681
  %v4683 = vpop.f32.mrf.mxu0
  %v4684 = vadd.f32 %v4665, %v4683
  %4685 = vdwg.mxu0
  %4686 = vmatpush.bf16.msra.mxu0 %v3366
  %4687 = vmatpush.bf16.msra.mxu0 %v3364
  %4688 = vmatpush.bf16.msra.mxu0 %v3362
  %4689 = vmatpush.bf16.msra.mxu0 %v3360
  %4690 = vmatpush.bf16.msra.mxu0 %v3358
  %4691 = vmatpush.bf16.msra.mxu0 %v3356
  %4692 = vmatpush.bf16.msra.mxu0 %v3354
  %4693 = vmatpush.bf16.msra.mxu0 %v3352
  %4694 = vmatmul.bf16.gmra.mxu0 %v1751
  %v4695 = vpop.f32.mrf.mxu0
  %v4696 = vadd.f32 %v4677, %v4695
  %v4697 = vpop.f32.mrf.mxu0
  %v4698 = vadd.f32 %v4679, %v4697
  %4699 = vmatmul.bf16.gmra.mxu0 %v1776
  %v4700 = vpop.f32.mrf.mxu0
  %v4701 = vadd.f32 %v4682, %v4700
  %v4702 = vpop.f32.mrf.mxu0
  %v4703 = vadd.f32 %v4684, %v4702
  %4704 = vdwg.mxu0
  %4705 = vmatpush.bf16.msra.mxu0 %v3382
  %4706 = vmatpush.bf16.msra.mxu0 %v3380
  %4707 = vmatpush.bf16.msra.mxu0 %v3378
  %4708 = vmatpush.bf16.msra.mxu0 %v3376
  %4709 = vmatpush.bf16.msra.mxu0 %v3374
  %4710 = vmatpush.bf16.msra.mxu0 %v3372
  %4711 = vmatpush.bf16.msra.mxu0 %v3370
  %4712 = vmatpush.bf16.msra.mxu0 %v3368
  %4713 = vmatmul.bf16.gmra.mxu0 %v1752
  %v4714 = vpop.f32.mrf.mxu0
  %v4715 = vadd.f32 %v4696, %v4714
  %v4716 = vpop.f32.mrf.mxu0
  %v4717 = vadd.f32 %v4698, %v4716
  %4718 = vmatmul.bf16.gmra.mxu0 %v1777
  %v4719 = vpop.f32.mrf.mxu0
  %v4720 = vadd.f32 %v4701, %v4719
  %v4721 = vpop.f32.mrf.mxu0
  %v4722 = vadd.f32 %v4703, %v4721
  %4723 = vdwg.mxu0
  %4724 = vmatpush.bf16.msra.mxu0 %v3398
  %4725 = vmatpush.bf16.msra.mxu0 %v3396
  %4726 = vmatpush.bf16.msra.mxu0 %v3394
  %4727 = vmatpush.bf16.msra.mxu0 %v3392
  %4728 = vmatpush.bf16.msra.mxu0 %v3390
  %4729 = vmatpush.bf16.msra.mxu0 %v3388
  %4730 = vmatpush.bf16.msra.mxu0 %v3386
  %4731 = vmatpush.bf16.msra.mxu0 %v3384
  %4732 = vmatmul.bf16.gmra.mxu0 %v1753
  %v4733 = vpop.f32.mrf.mxu0
  %v4734 = vadd.f32 %v4715, %v4733
  %v4735 = vpop.f32.mrf.mxu0
  %v4736 = vadd.f32 %v4717, %v4735
  %4737 = vmatmul.bf16.gmra.mxu0 %v1778
  %v4738 = vpop.f32.mrf.mxu0
  %v4739 = vadd.f32 %v4720, %v4738
  %v4740 = vpop.f32.mrf.mxu0
  %v4741 = vadd.f32 %v4722, %v4740
  %4742 = vdwg.mxu0
  %4743 = vmatpush.bf16.msra.mxu0 %v3414
  %4744 = vmatpush.bf16.msra.mxu0 %v3412
  %4745 = vmatpush.bf16.msra.mxu0 %v3410
  %4746 = vmatpush.bf16.msra.mxu0 %v3408
  %4747 = vmatpush.bf16.msra.mxu0 %v3406
  %4748 = vmatpush.bf16.msra.mxu0 %v3404
  %4749 = vmatpush.bf16.msra.mxu0 %v3402
  %4750 = vmatpush.bf16.msra.mxu0 %v3400
  %4751 = vmatmul.bf16.gmra.mxu0 %v1754
  %v4752 = vpop.f32.mrf.mxu0
  %v4753 = vadd.f32 %v4734, %v4752
  %v4754 = vpop.f32.mrf.mxu0
  %v4755 = vadd.f32 %v4736, %v4754
  %4756 = vmatmul.bf16.gmra.mxu0 %v1779
  %v4757 = vpop.f32.mrf.mxu0
  %v4758 = vadd.f32 %v4739, %v4757
  %v4759 = vpop.f32.mrf.mxu0
  %v4760 = vadd.f32 %v4741, %v4759
  %4761 = vdwg.mxu0
  %4762 = vmatpush.bf16.msra.mxu0 %v3430
  %4763 = vmatpush.bf16.msra.mxu0 %v3428
  %4764 = vmatpush.bf16.msra.mxu0 %v3426
  %4765 = vmatpush.bf16.msra.mxu0 %v3424
  %4766 = vmatpush.bf16.msra.mxu0 %v3422
  %4767 = vmatpush.bf16.msra.mxu0 %v3420
  %4768 = vmatpush.bf16.msra.mxu0 %v3418
  %4769 = vmatpush.bf16.msra.mxu0 %v3416
  %4770 = vmatmul.bf16.gmra.mxu0 %v1755
  %v4771 = vpop.f32.mrf.mxu0
  %v4772 = vadd.f32 %v4753, %v4771
  %v4773 = vpop.f32.mrf.mxu0
  %v4774 = vadd.f32 %v4755, %v4773
  %4775 = vmatmul.bf16.gmra.mxu0 %v1780
  %v4776 = vpop.f32.mrf.mxu0
  %v4777 = vadd.f32 %v4758, %v4776
  %v4778 = vpop.f32.mrf.mxu0
  %v4779 = vadd.f32 %v4760, %v4778
  %4780 = vdwg.mxu0
  %v4781 = vld [vmem:[%s7] sm:$0x3]
  %v4782 = vld [vmem:[%s8] sm:$0x3]
  %v4783 = vadd.f32 %v4297, %v4299
  %v4784 = vadd.f32 %v4783, %v4302
  %v4785 = vadd.f32 %v4784, %v4304
  %v4786 = vrot.slane %v4785, 4
  %v4787 = vadd.f32 %v4785, %v4786
  %v4788 = vrot.slane %v4787, 2
  %v4789 = vadd.f32 %v4787, %v4788
  %v4790 = vrot.slane %v4789, 1
  %v4791 = vadd.f32 %v4789, %v4790
  %v4792 = vadd.f32 %v4772, %v4774
  %v4793 = vadd.f32 %v4792, %v4777
  %v4794 = vadd.f32 %v4793, %v4779
  %v4795 = vrot.slane %v4794, 4
  %v4796 = vadd.f32 %v4794, %v4795
  %v4797 = vrot.slane %v4796, 2
  %v4798 = vadd.f32 %v4796, %v4797
  %v4799 = vrot.slane %v4798, 1
  %v4800 = vadd.f32 %v4798, %v4799
  %v4801 = vrcp.pop 32.0
  %v4802 = vmul.f32 32.0, %v4801
  %v4803 = vsub.f32 1.0, %v4802
  %v4804 = vmul.f32 %v4801, %v4803
  %v4805 = vadd.f32 %v4801, %v4804
  %vm4806 = vweird.f32 %v4801
  %v4807 = vsel %vm4806, %v4801, %v4805
  %v4808 = vmul.f32 %v4791, %v4807
  %v4809 = vmul.f32 %v4800, %v4807
  %v4810 = vsub.f32 %v4297, %v4808
  %v4811 = vsub.f32 %v4772, %v4809
  %v4812 = vsub.f32 %v4299, %v4808
  %v4813 = vsub.f32 %v4774, %v4809
  %v4814 = vsub.f32 %v4302, %v4808
  %v4815 = vsub.f32 %v4777, %v4809
  %v4816 = vsub.f32 %v4304, %v4808
  %v4817 = vsub.f32 %v4779, %v4809
  %v4818 = vmul.f32 %v4810, %v4810
  %v4819 = vmul.f32 %v4811, %v4811
  %v4820 = vmul.f32 %v4812, %v4812
  %v4821 = vmul.f32 %v4813, %v4813
  %v4822 = vmul.f32 %v4814, %v4814
  %v4823 = vmul.f32 %v4815, %v4815
  %v4824 = vmul.f32 %v4816, %v4816
  %v4825 = vmul.f32 %v4817, %v4817
  %v4826 = vadd.f32 %v4818, %v4820
  %v4827 = vadd.f32 %v4826, %v4822
  %v4828 = vadd.f32 %v4827, %v4824
  %v4829 = vrot.slane %v4828, 4
  %v4830 = vadd.f32 %v4828, %v4829
  %v4831 = vrot.slane %v4830, 2
  %v4832 = vadd.f32 %v4830, %v4831
  %v4833 = vrot.slane %v4832, 1
  %v4834 = vadd.f32 %v4832, %v4833
  %v4835 = vadd.f32 %v4819, %v4821
  %v4836 = vadd.f32 %v4835, %v4823
  %v4837 = vadd.f32 %v4836, %v4825
  %v4838 = vrot.slane %v4837, 4
  %v4839 = vadd.f32 %v4837, %v4838
  %v4840 = vrot.slane %v4839, 2
  %v4841 = vadd.f32 %v4839, %v4840
  %v4842 = vrot.slane %v4841, 1
  %v4843 = vadd.f32 %v4841, %v4842
  %v4844 = vmul.f32 %v4834, %v4807
  %v4845 = vmul.f32 %v4843, %v4807
  %v4846 = vadd.f32 %v4844, 1e-05
  %v4847 = vadd.f32 %v4845, 1e-05
  %v4848 = vrsqrt.pop %v4846
  %v4849 = vmul.f32 %v4848, %v4846
  %v4850 = vmul.f32 %v4849, %v4848
  %v4851 = vmul.f32 0.5, %v4850
  %v4852 = vsub.f32 1.5, %v4851
  %v4853 = vmul.f32 %v4848, %v4852
  %vm4854 = vweird.f32 %v4846
  %vm4855 = vweird.f32 %v4848
  %vm4856 = vmor %vm4854, %vm4855
  %v4857 = vsel %vm4856, %v4848, %v4853
  %v4858 = vrsqrt.pop %v4847
  %v4859 = vmul.f32 %v4858, %v4847
  %v4860 = vmul.f32 %v4859, %v4858
  %v4861 = vmul.f32 0.5, %v4860
  %v4862 = vsub.f32 1.5, %v4861
  %v4863 = vmul.f32 %v4858, %v4862
  %vm4864 = vweird.f32 %v4847
  %vm4865 = vweird.f32 %v4858
  %vm4866 = vmor %vm4864, %vm4865
  %v4867 = vsel %vm4866, %v4858, %v4863
  %v4869 = vperm.slane %v4781, 0
  %v4870 = vperm.slane %v4781, 1
  %v4873 = vmul.f32 %v4857, %v4869
  %v4874 = vmul.f32 %v4867, %v4870
  %v4875 = vperm.slane %v4873, 0
  %v4876 = vperm.slane %v4874, 0
  %v4877 = vmul.f32 %v4810, %v4875
  %v4878 = vmul.f32 %v4811, %v4876
  %v4879 = vmul.f32 %v4812, %v4875
  %v4880 = vmul.f32 %v4813, %v4876
  %v4881 = vmul.f32 %v4814, %v4875
  %v4882 = vmul.f32 %v4815, %v4876
  %v4883 = vmul.f32 %v4816, %v4875
  %v4884 = vmul.f32 %v4817, %v4876
  %v4886 = vperm.slane %v4782, 0
  %v4887 = vperm.slane %v4782, 1
  %v4890 = vadd.f32 %v4877, %v4886
  %v4891 = vadd.f32 %v4878, %v4887
  %v4892 = vadd.f32 %v4879, %v4886
  %v4893 = vadd.f32 %v4880, %v4887
  %v4894 = vadd.f32 %v4881, %v4886
  %v4895 = vadd.f32 %v4882, %v4887
  %v4896 = vadd.f32 %v4883, %v4886
  %v4897 = vadd.f32 %v4884, %v4887
  %vm4898 = vcmp.ge.f32.partialorder %v4890, 0.0
  %vm4899 = vcmp.ge.f32.partialorder %v4891, 0.0
  %vm4900 = vcmp.ge.f32.partialorder %v4892, 0.0
  %vm4901 = vcmp.ge.f32.partialorder %v4893, 0.0
  %vm4902 = vcmp.ge.f32.partialorder %v4894, 0.0
  %vm4903 = vcmp.ge.f32.partialorder %v4895, 0.0
  %vm4904 = vcmp.ge.f32.partialorder %v4896, 0.0
  %vm4905 = vcmp.ge.f32.partialorder %v4897, 0.0
  %v4906 = vmul.f32 %v4890, 0.2
  %v4907 = vmul.f32 %v4891, 0.2
  %v4908 = vmul.f32 %v4892, 0.2
  %v4909 = vmul.f32 %v4893, 0.2
  %v4910 = vmul.f32 %v4894, 0.2
  %v4911 = vmul.f32 %v4895, 0.2
  %v4912 = vmul.f32 %v4896, 0.2
  %v4913 = vmul.f32 %v4897, 0.2
  %v4914 = vsel %vm4898, %v4890, %v4906
  %v4915 = vsel %vm4899, %v4891, %v4907
  %v4916 = vsel %vm4900, %v4892, %v4908
  %v4917 = vsel %vm4901, %v4893, %v4909
  %v4918 = vsel %vm4902, %v4894, %v4910
  %v4919 = vsel %vm4903, %v4895, %v4911
  %v4920 = vsel %vm4904, %v4896, %v4912
  %v4921 = vsel %vm4905, %v4897, %v4913
  %v4922 = vld [vmem:[%s9] sm:$0xff]
  %v4923 = vld [vmem:[%s9 + $0x8] sm:$0xff]
  %v4924 = vld [vmem:[%s9 + $0x10] sm:$0xff]
  %v4925 = vld [vmem:[%s9 + $0x18] sm:$0xff]
  %v4926 = vmul.f32 %v4914, %v4922
  %v4927 = vmul.f32 %v4915, %v4923
  %v4928 = vmul.f32 %v4916, %v4924
  %v4929 = vmul.f32 %v4917, %v4925
  %v4930 = vmul.f32 %v4918, %v4922
  %v4931 = vmul.f32 %v4919, %v4923
  %v4932 = vmul.f32 %v4920, %v4924
  %v4933 = vmul.f32 %v4921, %v4925
  %v4934 = vadd.f32 %v4926, %v4927
  %4935 = vadd.xlane.f32.xlu0 %v4934
  %v4936 = vpop.xlane.xlu0 %4935
  %v4937 = vadd.f32 %v4928, %v4929
  %4938 = vadd.xlane.f32.xlu0 %v4937
  %v4939 = vpop.xlane.xlu0 %4938
  %v4940 = vadd.f32 %v4930, %v4931
  %4941 = vadd.xlane.f32.xlu0 %v4940
  %v4942 = vpop.xlane.xlu0 %4941
  %v4943 = vadd.f32 %v4932, %v4933
  %4944 = vadd.xlane.f32.xlu0 %v4943
  %v4945 = vpop.xlane.xlu0 %4944
  %v4950 = vlaneseq
  %v4951 = vand.u32 %v4950, 127
  %v4952 = vperm.slane %v4936, %v4951
  %v4953 = vadd.s32 %v4951, 4294967288
  %v4954 = vperm.slane %v4939, %v4953
  %vm4955 = vcmask 130112
  %v4956 = vsel %vm4955, %v4954, %v4952
  %v4957 = vperm.slane %v4942, %v4951
  %v4958 = vperm.slane %v4945, %v4953
  %v4959 = vsel %vm4955, %v4958, %v4957
  %vm4960 = vcmask 1041409
  %v4961 = vsel %vm4960, %v4959, %v4956
  %vm4963 = vcmask 123904
  %v4964 = vsel %vm4963, %v4961, 0.0
  %4965 = vadd.xlane.f32.xlu0 %v4964
  %v4966 = vpop.xlane.xlu0 %4965
  %v4967 = vld [vmem:[#allocation5] sm:$0x1]
  %v4969 = vperm.slane %v4967, 0
  %v4971 = vadd.f32 %v4966, %v4969
  %vm4972 = vcmask 1024
  %4973 = vst.msk [vmem:[%s11] sm:$0x3] %vm4972, %v4971
  // Predicated region
  $region60: #{discriminator_forward.1} parent=0 // pred_check
    _
  $region61: #{discriminator_forward.1} parent=0 // pred_check_branch
    %4975 = sbr.rel (0) target = $region63
  $region62: #{discriminator_forward.1} parent=0 // pred_region
    _
  $region63: #{discriminator_forward.1} parent=0 // pred_fallthru
    _
  // Predicated region
  $region64: #{discriminator_forward.1} parent=0 // pred_check
    _
  $region65: #{discriminator_forward.1} parent=0 // pred_check_branch
    %4977 = sbr.rel (0) target = $region67
  $region66: #{discriminator_forward.1} parent=0 // pred_region
    _
  $region67: #{discriminator_forward.1} parent=0 // pred_fallthru
    _

</llo_original>
